<compile_context>
chip_gen: v7x
topology: tpu7x:2x2x1
jax: 0.10.0
libtpu: 0.0.40
codegen_flags: <defaults>
</compile_context>

<pallas_src>
import functools

import jax
import jax.numpy as jnp
from jax.experimental import pallas as pl
from jax.experimental.pallas import tpu as pltpu

_SMEM_SPEC = pl.BlockSpec(memory_space=pltpu.MemorySpace.SMEM)   # scalar (1,1) params


def _vmem_limit_bytes():
    # Generation-aware budget: ~75% of physical VMEM (v5e/v6e: 128MiB -> 96MiB, v7x: 64MiB -> 48MiB).
    try:
        cap = pltpu.get_tpu_info().vmem_capacity_bytes
    except Exception:
        cap = 64 * 1024 * 1024
    return min(int(cap) * 3 // 4, 112 * 1024 * 1024)


_VMEM_LIMIT = _vmem_limit_bytes()


def _round_up(n, m):
    return ((n + m - 1) // m) * m


def _pad_mid(c):
    """Expanded-channel padding policy: full lane width when below 128, else mult-of-16 only."""
    if c % 128 == 0:
        return c
    if c < 128:
        return 128
    return _round_up(c, 16)


def _pick_row_tile(m, multiple=8):
    """Largest aligned row tile that divides m (avoids OOB garbage feeding the amax)."""
    for t in (1024, 512, 256, 128, 64, 32, 16, 8):
        if t % multiple == 0 and m % t == 0:
            return t
    return m   # fallback for odd small shapes


def _pick_strip(ho):
    """Output-row strip size for the depthwise conv."""
    if ho <= 16:
        return ho
    for t in (16, 14, 12, 10, 8, 7, 6, 5, 4, 3, 2):
        if ho % t == 0:
            return t
    return 1


def _finish_scale(partials):
    """Reduce per-tile partial amaxes to a (1,1) symmetric int8 scale (tiny XLA reduce)."""
    return jnp.maximum(jnp.max(partials) / 127.0, 1e-8).reshape(1, 1).astype(jnp.float32)


# ----------------------------- Pallas kernels --------------------------------

def _amax_partial_kernel(x_ref, amax_ref):
    """Per-row-tile partial amax of the raw block input (QuantAct stats pass)."""
    a = jnp.max(jnp.abs(x_ref[...].astype(jnp.float32)))
    amax_ref[...] = jnp.full(amax_ref.shape, a, jnp.float32)


def _pw_fused_kernel(*refs, relu6, residual):
    """1x1 conv: q(x) @ q(W) on the MXU in bf16 (exact integer values), rescale, +bias,
    optional ReLU6, optional residual; per-row-tile partial-amax epilogue."""
    if residual:
        (s_ref, x_ref, w_ref, ws_ref, b_ref, idn_ref,
         o_ref, amax_ref, xq_ref) = refs
    else:
        (s_ref, x_ref, w_ref, ws_ref, b_ref,
         o_ref, amax_ref, xq_ref) = refs
        idn_ref = None
    j = pl.program_id(1)
    s = s_ref[0, 0]

    @pl.when(j == 0)
    def _():
        # Quantize the x row-tile once per i (cached across the output-channel tiles j).
        inv_s = 1.0 / s
        q = jnp.clip(jnp.round(x_ref[...].astype(jnp.float32) * inv_s), -127.0, 127.0)
        xq_ref[...] = q.astype(xq_ref.dtype)              # integers, exact in bf16
        amax_ref[...] = jnp.zeros_like(amax_ref)

    # bf16 x bf16 -> f32 on the MXU; values are integer so the product is exact.
    acc = jnp.dot(xq_ref[...], w_ref[...], preferred_element_type=jnp.float32)
    acc = acc * (ws_ref[...] * s) + b_ref[...]            # s * ws_j rescale + folded-BN bias
    if relu6:
        acc = jnp.clip(acc, 0.0, 6.0)
    if residual:
        acc = acc + idn_ref[...].astype(jnp.float32)
    o_ref[...] = acc.astype(o_ref.dtype)

    amax_ref[...] = jnp.maximum(amax_ref[...], jnp.max(jnp.abs(acc)))


def _dw_fused_kernel(s_ref, x_ref, w_ref, b_ref, o_ref, amax_ref, xpad_ref,
                     *, H, W, Wo, Ts, stride):
    """3x3 depthwise conv over one output-row strip: quantized/haloed image is built once per
    (n, c) block in a VMEM scratch; each strip does 9 indexed taps with strip-sized f32 temps."""
    s_idx = pl.program_id(2)
    cb = x_ref.shape[3]
    scale = s_ref[0, 0]

    @pl.when(s_idx == 0)
    def _():
        # Build the quantized + zero-haloed image (integers stored as f32) and reset the amax.
        inv_s = 1.0 / scale
        q = jnp.clip(jnp.round(x_ref[0].astype(jnp.float32) * inv_s), -127.0, 127.0)
        zrow = jnp.zeros((1, W + 2, cb), xpad_ref.dtype)
        zcol = jnp.zeros((H + 2, 1, cb), xpad_ref.dtype)
        xpad_ref[0:1, :, :] = zrow
        xpad_ref[H + 1:H + 2, :, :] = zrow
        xpad_ref[:, 0:1, :] = zcol
        xpad_ref[:, W + 1:W + 2, :] = zcol
        xpad_ref[1:H + 1, 1:W + 1, :] = q.astype(xpad_ref.dtype)
        amax_ref[...] = jnp.zeros_like(amax_ref)

    row_base = s_idx * (Ts * stride)
    if (Ts * stride) % 8 == 0:
        row_base = pl.multiple_of(row_base, 8)

    w_all = w_ref[...]                                     # (9, cb) fake-quantized weights
    acc = jnp.zeros((Ts, Wo, cb), jnp.float32)
    for kh in range(3):
        rsl = pl.ds(row_base + kh, Ts) if stride == 1 else pl.ds(row_base + kh, Ts, stride)
        for kw in range(3):
            csl = pl.ds(kw, Wo) if stride == 1 else pl.ds(kw, Wo, stride)
            tap = xpad_ref[rsl, csl, :]
            acc = acc + tap * w_all[kh * 3 + kw].reshape(1, 1, cb)
    # acc = sum q * wq ; activation scale applied once at the end.
    acc = jnp.clip(acc * scale + b_ref[...].reshape(1, 1, cb), 0.0, 6.0)
    o_ref[0] = acc.astype(o_ref.dtype)

    amax_ref[...] = jnp.maximum(amax_ref[...], jnp.max(acc))    # acc >= 0 after ReLU6


# ----------------------------- kernel wrappers --------------------------------

def amax_partials(x2d):
    m, c = x2d.shape
    tm = _pick_row_tile(m, 8)
    gi = m // tm
    return pl.pallas_call(
        _amax_partial_kernel,
        grid=(gi,),
        out_shape=jax.ShapeDtypeStruct((gi, 1, 128), jnp.float32),
        in_specs=[pl.BlockSpec((tm, c), lambda i: (i, 0))],
        out_specs=pl.BlockSpec((1, 1, 128), lambda i: (i, 0, 0)),
        compiler_params=pltpu.CompilerParams(
            dimension_semantics=("parallel",),
            vmem_limit_bytes=_VMEM_LIMIT),
    )(x2d)


def pw_conv_fused(x2d, s_in, w_int, ws, b, *, relu6, identity=None,
                  out_dtype=jnp.float32):
    """1x1 conv (matmul) with fused input fake-quant (bf16 integer MXU operands), per-channel
    weight rescale, folded-BN bias, optional ReLU6, optional residual, partial-amax epilogue."""
    m, k = x2d.shape
    k2, cout = w_int.shape
    assert k == k2
    tm = _pick_row_tile(m, 16 if out_dtype == jnp.bfloat16 else 8)
    tn = 128 if cout % 128 == 0 else cout
    gi, gj = m // tm, cout // tn

    in_specs = [
        _SMEM_SPEC,                                          # s_in  (1,1) scalar
        pl.BlockSpec((tm, k), lambda i, j: (i, 0)),          # x: resident across inner j loop
        pl.BlockSpec((k, tn), lambda i, j: (0, j)),          # W (bf16, integer valued)
        pl.BlockSpec((1, tn), lambda i, j: (0, j)),          # per-channel weight scales
        pl.BlockSpec((1, tn), lambda i, j: (0, j)),          # folded-BN bias
    ]
    args = [s_in, x2d, w_int, ws.reshape(1, cout), b.reshape(1, cout)]
    if identity is not None:
        in_specs.append(pl.BlockSpec((tm, tn), lambda i, j: (i, j)))
        args.append(identity)

    kernel = functools.partial(_pw_fused_kernel, relu6=relu6,
                               residual=identity is not None)
    y, partials = pl.pallas_call(
        kernel,
        grid=(gi, gj),
        out_shape=(jax.ShapeDtypeStruct((m, cout), out_dtype),
                   jax.ShapeDtypeStruct((gi, 1, 128), jnp.float32)),
        in_specs=in_specs,
        out_specs=(pl.BlockSpec((tm, tn), lambda i, j: (i, j)),
                   pl.BlockSpec((1, 1, 128), lambda i, j: (i, 0, 0))),
        scratch_shapes=[pltpu.VMEM((tm, k), jnp.bfloat16)],   # cached quantized x tile
        compiler_params=pltpu.CompilerParams(
            # row axis parallel (megacore-splittable); channel axis sequential so the
            # cached xq tile and the per-row amax accumulation stay correct.
            dimension_semantics=("parallel", "arbitrary"),
            vmem_limit_bytes=_VMEM_LIMIT),
    )(*args)
    return y, _finish_scale(partials)


def dw_conv_fused(x_nhwc, s_in, w9c, b, *, stride, out_dtype=jnp.bfloat16):
    """3x3 depthwise conv (padding=1, stride) with fused input fake-quant, in-kernel zero halo,
    output-row-strip tiling, folded-BN bias, ReLU6 and a partial-amax epilogue."""
    n, h, w, c = x_nhwc.shape
    ho = (h - 1) // stride + 1
    wo = (w - 1) // stride + 1
    cb = 128 if c % 128 == 0 else c
    gc = c // cb
    ts = _pick_strip(ho)
    gs = ho // ts
    kernel = functools.partial(_dw_fused_kernel, H=h, W=w, Wo=wo, Ts=ts, stride=stride)
    y, partials = pl.pallas_call(
        kernel,
        grid=(n, gc, gs),
        out_shape=(jax.ShapeDtypeStruct((n, ho, wo, c), out_dtype),
                   jax.ShapeDtypeStruct((n * gc, 1, 128), jnp.float32)),
        in_specs=[
            _SMEM_SPEC,
            pl.BlockSpec((1, h, w, cb), lambda i, j, k: (i, 0, 0, j)),   # resident across strips
            pl.BlockSpec((9, cb), lambda i, j, k: (0, j)),
            pl.BlockSpec((1, cb), lambda i, j, k: (0, j)),
        ],
        out_specs=(pl.BlockSpec((1, ts, wo, cb), lambda i, j, k: (i, k, 0, j)),
                   pl.BlockSpec((1, 1, 128), lambda i, j, k: (i * gc + j, 0, 0))),
        # TODO(synk): bf16 halo scratch + bf16 VPU taps on v6e/v7x would halve VMEM ld bytes.
        scratch_shapes=[pltpu.VMEM((h + 2, w + 2, cb), jnp.float32)],
        compiler_params=pltpu.CompilerParams(
            dimension_semantics=("parallel", "parallel", "arbitrary"),
            vmem_limit_bytes=_VMEM_LIMIT),
    )(s_in, x_nhwc, w9c, b.reshape(1, c))
    return y, _finish_scale(partials)


# ----------------------------- param setup (glue) ------------------------------

def _fold_bn(w_oihw, gamma, beta, mean, var, eps=1e-5):
    scale = gamma / jnp.sqrt(var + eps)
    w_f = w_oihw * scale.reshape(-1, 1, 1, 1)
    b_f = beta - mean * scale
    return w_f, b_f


def _quantize_weight_per_channel(w_oihw):
    """Per-output-channel symmetric 8-bit quant: integer-valued weights + per-channel scale."""
    cout = w_oihw.shape[0]
    flat = w_oihw.reshape(cout, -1)
    ws = jnp.maximum(jnp.max(jnp.abs(flat), axis=1) / 127.0, 1e-8)
    q = jnp.clip(jnp.round(flat / ws[:, None]), -127.0, 127.0)
    return q.reshape(w_oihw.shape), ws


class QLinearBottleneckPallas:
    """JAX/Pallas reimplementation of Q_LinearBottleneck's forward pass."""

    def __init__(self, key, in_channels, out_channels, stride, expansion,
                 remove_exp_conv):
        self.in_channels = in_channels
        self.out_channels = out_channels
        self.stride = stride
        self.residual = (in_channels == out_channels) and (stride == 1)
        mid_channels = in_channels * 6 if expansion else in_channels
        self.use_exp_conv = expansion or (not remove_exp_conv)
        self.mid = mid_channels
        self.mid_p = _pad_mid(mid_channels) if self.use_exp_conv else mid_channels
        self.cout_p = _round_up(out_channels, 128)   # lane-dense conv3 output / MXU N dim

        keys = jax.random.split(key, 6)

        def bn_params(k, cn):
            k1, k2, k3, k4 = jax.random.split(k, 4)
            gamma = 1.0 + 0.1 * jax.random.normal(k1, (cn,), jnp.float32)
            beta = 0.1 * jax.random.normal(k2, (cn,), jnp.float32)
            mean = 0.1 * jax.random.normal(k3, (cn,), jnp.float32)
            var = jnp.abs(jax.random.normal(k4, (cn,), jnp.float32)) + 0.5
            return gamma, beta, mean, var

        pad_mid = self.mid_p - mid_channels
        pad_out = self.cout_p - out_channels

        # conv1: 1x1 (mid, in, 1, 1) + BN  (only if use_exp_conv)
        if self.use_exp_conv:
            w1 = 0.1 * jax.random.normal(keys[0], (mid_channels, in_channels, 1, 1),
                                         jnp.float32)
            w1f, b1f = _fold_bn(w1, *bn_params(keys[1], mid_channels))
            q1, ws1 = _quantize_weight_per_channel(w1f)
            w1_2d = jnp.transpose(q1[:, :, 0, 0], (1, 0))               # (Cin, Cmid) integers
            self.w1 = jnp.pad(w1_2d, ((0, 0), (0, pad_mid))).astype(jnp.bfloat16)
            self.w1_ws = jnp.pad(ws1, ((0, pad_mid),), constant_values=1.0).astype(jnp.float32)
            self.b1 = jnp.pad(b1f, ((0, pad_mid),)).astype(jnp.float32)
            # TODO(synk): HAWQ quantizes bias with act_scale*weight_scale; kept as folded float.

        # conv2: depthwise 3x3 (mid, 1, 3, 3) + BN  (stored as fake-quantized float weights)
        w2 = 0.1 * jax.random.normal(keys[2], (mid_channels, 1, 3, 3), jnp.float32)
        w2f, b2f = _fold_bn(w2, *bn_params(keys[3], mid_channels))
        q2, ws2 = _quantize_weight_per_channel(w2f)
        w2q = q2 * ws2.reshape(-1, 1, 1, 1)
        w2_2d = jnp.transpose(w2q[:, 0, :, :].reshape(mid_channels, 9), (1, 0))  # (9, Cmid)
        self.w2 = jnp.pad(w2_2d, ((0, 0), (0, pad_mid))).astype(jnp.float32)
        self.b2 = jnp.pad(b2f, ((0, pad_mid),)).astype(jnp.float32)

        # conv3: 1x1 (out, mid, 1, 1) + BN  (linear bottleneck: no activation)
        w3 = 0.1 * jax.random.normal(keys[4], (out_channels, mid_channels, 1, 1),
                                     jnp.float32)
        w3f, b3f = _fold_bn(w3, *bn_params(keys[5], out_channels))
        q3, ws3 = _quantize_weight_per_channel(w3f)
        w3_2d = jnp.transpose(q3[:, :, 0, 0], (1, 0))                   # (Cmid, Cout) integers
        self.w3 = jnp.pad(w3_2d, ((0, pad_mid), (0, pad_out))).astype(jnp.bfloat16)
        self.w3_ws = jnp.pad(ws3, ((0, pad_out),), constant_values=1.0).astype(jnp.float32)
        self.b3 = jnp.pad(b3f, ((0, pad_out),)).astype(jnp.float32)

    def __call__(self, x_nchw, scaling_factor_int32=None):
        n, c, h, w = x_nchw.shape
        assert c == self.in_channels
        x_nhwc = jnp.transpose(x_nchw, (0, 2, 3, 1)).astype(jnp.float32)   # NHWC
        x2d = x_nhwc.reshape(n * h * w, c)

        # quant_act: per-tensor scale of the raw input; the round/clip/scale itself is fused
        # into the consumer conv's prologue.
        s0 = _finish_scale(amax_partials(x2d))

        if self.use_exp_conv:
            # conv1 (1x1) + ReLU6; quant_act1 partial-amax fused; bf16 carry.
            y1, s1 = pw_conv_fused(x2d, s0, self.w1, self.w1_ws, self.b1,
                                   relu6=True, out_dtype=jnp.bfloat16)
            dw_in = y1.reshape(n, h, w, self.mid_p)
            s_dw = s1
        else:
            dw_in = x_nhwc
            s_dw = s0

        # conv2 (3x3 depthwise, stride, in-kernel halo + row strips) + ReLU6; quant_act2 fused.
        y2, s2 = dw_conv_fused(dw_in, s_dw, self.w2, self.b2, stride=self.stride,
                               out_dtype=jnp.bfloat16)
        _, ho, wo, cp = y2.shape
        y2_2d = y2.reshape(n * ho * wo, cp)

        identity = None
        if self.residual:
            identity = jnp.pad(x2d, ((0, 0), (0, self.cout_p - self.out_channels)))

        # conv3 (1x1, linear) + fused residual add; quant_act_int32 partial-amax fused.
        y3, s3 = pw_conv_fused(y2_2d, s2, self.w3, self.w3_ws, self.b3,
                               relu6=False, identity=identity, out_dtype=jnp.float32)

        # quant_act_int32 requantization: done by XLA, fused into the slice + NCHW transpose.
        s3v = s3[0, 0]
        out2d = jnp.clip(jnp.round(y3[:, :self.out_channels] * (1.0 / s3v)),
                         -127.0, 127.0) * s3v
        out = out2d.reshape(n, ho, wo, self.out_channels)
        out = jnp.transpose(out, (0, 3, 1, 2))                           # back to NCHW
        return out, s3v


# ----------------------------------- main --------------------------------------

if __name__ == "__main__":
    key = jax.random.PRNGKey(0)
    k_param_a, k_param_b, k_xa, k_xb = jax.random.split(key, 4)

    # Config A: expansion block (mid=24 padded to 128), stride=1, residual path active.
    N, C, H, W = 2, 4, 16, 16
    block_a = QLinearBottleneckPallas(k_param_a, in_channels=C, out_channels=C,
                                      stride=1, expansion=True, remove_exp_conv=False)
    xa = jax.random.normal(k_xa, (N, C, H, W), jnp.float32)
    ya, sa = jax.jit(block_a)(xa)
    ya = jax.block_until_ready(ya)
    sa = jax.block_until_ready(sa)
    assert ya.shape == (N, C, H, W)
    assert bool(jnp.isfinite(ya).all())
    assert float(sa) > 0.0

    # Config B: no expansion conv (remove_exp_conv), stride=1, residual path active.
    N2, C2, H2, W2 = 2, 8, 8, 8
    block_b = QLinearBottleneckPallas(k_param_b, in_channels=C2, out_channels=C2,
                                      stride=1, expansion=False, remove_exp_conv=True)
    xb = jax.random.normal(k_xb, (N2, C2, H2, W2), jnp.float32)
    yb, sb = jax.jit(block_b)(xb)
    yb = jax.block_until_ready(yb)
    sb = jax.block_until_ready(sb)
    assert yb.shape == (N2, C2, H2, W2)
    assert bool(jnp.isfinite(yb).all())
    assert float(sb) > 0.0

    print("KERNEL_OK")
</pallas_src>

<mosaic_0001>
module attributes {stable_mosaic.version = 11 : i64} {
  func.func @_pw_fused_kernel(%arg0: i32, %arg1: i32, %arg2: memref<1x1xf32, #tpu.memory_space<smem>>, %arg3: memref<512x4xf32, #tpu.memory_space<vmem>>, %arg4: memref<4x128xbf16, #tpu.memory_space<vmem>>, %arg5: memref<1x128xf32, #tpu.memory_space<vmem>>, %arg6: memref<1x128xf32, #tpu.memory_space<vmem>>, %arg7: memref<512x128xbf16, #tpu.memory_space<vmem>>, %arg8: memref<1x1x128xf32, #tpu.memory_space<vmem>>, %arg9: memref<512x4xbf16, #tpu.memory_space<vmem>>) attributes {dimension_semantics = [#tpu.dimension_semantics<parallel>, #tpu.dimension_semantics<arbitrary>], iteration_bounds = array<i64: 1, 1>, scalar_prefetch = 0 : i64, scratch_operands = 1 : i64, tpu.core_type = #tpu.core_type<tc>, window_params = [{transform_indices = @transform_0, window_bounds = array<i64: 1, 1>}, {transform_indices = @transform_1, window_bounds = array<i64: 512, 4>}, {transform_indices = @transform_2, window_bounds = array<i64: 4, 128>}, {transform_indices = @transform_3, window_bounds = array<i64: 1, 128>}, {transform_indices = @transform_4, window_bounds = array<i64: 1, 128>}, {transform_indices = @transform_5, window_bounds = array<i64: 512, 128>}, {transform_indices = @transform_6, window_bounds = array<i64: 1, 1, 128>}]} {
    %c0 = arith.constant 0 : index
    %c0_0 = arith.constant 0 : index
    %0 = memref.load %arg2[%c0, %c0_0] : memref<1x1xf32, #tpu.memory_space<smem>>
    %c0_i32 = arith.constant 0 : i32
    %1 = arith.cmpi eq, %arg1, %c0_i32 : i32
    %2 = arith.extui %1 : i1 to i32
    %c0_i32_1 = arith.constant 0 : i32
    %3 = arith.cmpi ne, %2, %c0_i32_1 : i32
    scf.if %3 {
      %cst_21 = arith.constant 1.000000e+00 : f32
      %30 = arith.divf %cst_21, %0 : f32
      %c0_22 = arith.constant 0 : index
      %c0_23 = arith.constant 0 : index
      %31 = vector.load %arg3[%c0_22, %c0_23] : memref<512x4xf32, #tpu.memory_space<vmem>>, vector<512x4xf32>
      %32 = vector.broadcast %30 : f32 to vector<512x4xf32>
      %33 = arith.mulf %31, %32 : vector<512x4xf32>
      %34 = math.roundeven %33 : vector<512x4xf32>
      %cst_24 = arith.constant -1.270000e+02 : f32
      %cst_25 = arith.constant 1.270000e+02 : f32
      %35 = vector.broadcast %cst_24 : f32 to vector<512x4xf32>
      %36 = arith.maximumf %35, %34 : vector<512x4xf32>
      %37 = vector.broadcast %cst_25 : f32 to vector<512x4xf32>
      %38 = arith.minimumf %37, %36 : vector<512x4xf32>
      %39 = arith.truncf %38 : vector<512x4xf32> to vector<512x4xbf16>
      %c0_26 = arith.constant 0 : index
      %c0_27 = arith.constant 0 : index
      %40 = vector.load %arg9[%c0_26, %c0_27] : memref<512x4xbf16, #tpu.memory_space<vmem>>, vector<512x4xbf16>
      tpu.vector_store %arg9[%c0_26, %c0_27], %39 {strides = array<i32>} : memref<512x4xbf16, #tpu.memory_space<vmem>>, vector<512x4xbf16>,
      %cst_28 = arith.constant 0.000000e+00 : f32
      %41 = vector.broadcast %cst_28 : f32 to vector<1x1x128xf32>
      %c0_29 = arith.constant 0 : index
      %c0_30 = arith.constant 0 : index
      %c0_31 = arith.constant 0 : index
      %42 = vector.load %arg8[%c0_29, %c0_30, %c0_31] : memref<1x1x128xf32, #tpu.memory_space<vmem>>, vector<1x1x128xf32>
      tpu.vector_store %arg8[%c0_29, %c0_30, %c0_31], %41 {strides = array<i32>} : memref<1x1x128xf32, #tpu.memory_space<vmem>>, vector<1x1x128xf32>,
    } else {
    }
    %c0_2 = arith.constant 0 : index
    %c0_3 = arith.constant 0 : index
    %4 = vector.load %arg9[%c0_2, %c0_3] : memref<512x4xbf16, #tpu.memory_space<vmem>>, vector<512x4xbf16>
    %c0_4 = arith.constant 0 : index
    %c0_5 = arith.constant 0 : index
    %5 = vector.load %arg4[%c0_4, %c0_5] : memref<4x128xbf16, #tpu.memory_space<vmem>>, vector<4x128xbf16>
    %cst = arith.constant dense<0.000000e+00> : vector<512x128xf32>
    %6 = tpu.matmul %4, %5, %cst {dimension_numbers = #tpu.dot_dimension_numbers<[1], [0], [0], [1], [0, 0, 1, 1], [], []>} : vector<512x4xbf16>, vector<4x128xbf16>, vector<512x128xf32> -> vector<512x128xf32>
    %c0_6 = arith.constant 0 : index
    %c0_7 = arith.constant 0 : index
    %7 = vector.load %arg5[%c0_6, %c0_7] : memref<1x128xf32, #tpu.memory_space<vmem>>, vector<1x128xf32>
    %8 = vector.broadcast %0 : f32 to vector<1x128xf32>
    %9 = arith.mulf %7, %8 : vector<1x128xf32>
    %10 = vector.broadcast %9 : vector<1x128xf32> to vector<512x128xf32>
    %11 = arith.mulf %6, %10 : vector<512x128xf32>
    %c0_8 = arith.constant 0 : index
    %c0_9 = arith.constant 0 : index
    %12 = vector.load %arg6[%c0_8, %c0_9] : memref<1x128xf32, #tpu.memory_space<vmem>>, vector<1x128xf32>
    %13 = vector.broadcast %12 : vector<1x128xf32> to vector<512x128xf32>
    %14 = arith.addf %11, %13 : vector<512x128xf32>
    %cst_10 = arith.constant 0.000000e+00 : f32
    %cst_11 = arith.constant 6.000000e+00 : f32
    %15 = vector.broadcast %cst_10 : f32 to vector<512x128xf32>
    %16 = arith.maximumf %15, %14 : vector<512x128xf32>
    %17 = vector.broadcast %cst_11 : f32 to vector<512x128xf32>
    %18 = arith.minimumf %17, %16 : vector<512x128xf32>
    %19 = arith.truncf %18 : vector<512x128xf32> to vector<512x128xbf16>
    %c0_12 = arith.constant 0 : index
    %c0_13 = arith.constant 0 : index
    %20 = vector.load %arg7[%c0_12, %c0_13] : memref<512x128xbf16, #tpu.memory_space<vmem>>, vector<512x128xbf16>
    tpu.vector_store %arg7[%c0_12, %c0_13], %19 {strides = array<i32>} : memref<512x128xbf16, #tpu.memory_space<vmem>>, vector<512x128xbf16>,
    %c0_14 = arith.constant 0 : index
    %c0_15 = arith.constant 0 : index
    %c0_16 = arith.constant 0 : index
    %21 = vector.load %arg8[%c0_14, %c0_15, %c0_16] : memref<1x1x128xf32, #tpu.memory_space<vmem>>, vector<1x1x128xf32>
    %22 = math.absf %18 : vector<512x128xf32>
    %23 = vector.shape_cast %22 : vector<512x128xf32> to vector<1x512x128xf32>
    %cst_17 = arith.constant dense<0xFF800000> : vector<1xf32>
    %24 = vector.multi_reduction <maximumf>, %23, %cst_17 [1, 2] : vector<1x512x128xf32> to vector<1xf32>
    %25 = vector.shape_cast %24 : vector<1xf32> to vector<1x1x1xf32>
    %26 = vector.extract %25[0, 0, 0] : f32 from vector<1x1x1xf32>
    %27 = vector.broadcast %26 : f32 to vector<1x1x128xf32>
    %28 = arith.maximumf %21, %27 : vector<1x1x128xf32>
    %c0_18 = arith.constant 0 : index
    %c0_19 = arith.constant 0 : index
    %c0_20 = arith.constant 0 : index
    %29 = vector.load %arg8[%c0_18, %c0_19, %c0_20] : memref<1x1x128xf32, #tpu.memory_space<vmem>>, vector<1x1x128xf32>
    tpu.vector_store %arg8[%c0_18, %c0_19, %c0_20], %28 {strides = array<i32>} : memref<1x1x128xf32, #tpu.memory_space<vmem>>, vector<1x1x128xf32>,
    return
  }
  func.func @transform_0(%arg0: i32, %arg1: i32) -> (i32, i32) {
    %c0_i32 = arith.constant 0 : i32
    %c0_i32_0 = arith.constant 0 : i32
    %c0_i32_1 = arith.constant 0 : i32
    return %c0_i32, %c0_i32_0 : i32, i32
  }
  func.func @transform_1(%arg0: i32, %arg1: i32) -> (i32, i32) {
    %c0_i32 = arith.constant 0 : i32
    %c0_i32_0 = arith.constant 0 : i32
    return %arg0, %c0_i32 : i32, i32
  }
  func.func @transform_2(%arg0: i32, %arg1: i32) -> (i32, i32) {
    %c0_i32 = arith.constant 0 : i32
    %c0_i32_0 = arith.constant 0 : i32
    return %c0_i32, %arg1 : i32, i32
  }
  func.func @transform_3(%arg0: i32, %arg1: i32) -> (i32, i32) {
    %c0_i32 = arith.constant 0 : i32
    %c0_i32_0 = arith.constant 0 : i32
    return %c0_i32, %arg1 : i32, i32
  }
  func.func @transform_4(%arg0: i32, %arg1: i32) -> (i32, i32) {
    %c0_i32 = arith.constant 0 : i32
    %c0_i32_0 = arith.constant 0 : i32
    return %c0_i32, %arg1 : i32, i32
  }
  func.func @transform_5(%arg0: i32, %arg1: i32) -> (i32, i32) {
    %c0_i32 = arith.constant 0 : i32
    return %arg0, %arg1 : i32, i32
  }
  func.func @transform_6(%arg0: i32, %arg1: i32) -> (i32, i32, i32) {
    %c0_i32 = arith.constant 0 : i32
    %c0_i32_0 = arith.constant 0 : i32
    %c0_i32_1 = arith.constant 0 : i32
    return %arg0, %c0_i32, %c0_i32_0 : i32, i32, i32
  }
}

module attributes {stable_mosaic.version = 11 : i64} {
  func.func @_amax_partial_kernel(%arg0: i32, %arg1: memref<512x4xf32, #tpu.memory_space<vmem>>, %arg2: memref<1x1x128xf32, #tpu.memory_space<vmem>>) attributes {dimension_semantics = [#tpu.dimension_semantics<parallel>], iteration_bounds = array<i64: 1>, scalar_prefetch = 0 : i64, scratch_operands = 0 : i64, tpu.core_type = #tpu.core_type<tc>, window_params = [{transform_indices = @transform_0, window_bounds = array<i64: 512, 4>}, {transform_indices = @transform_1, window_bounds = array<i64: 1, 1, 128>}]} {
    %c0 = arith.constant 0 : index
    %c0_0 = arith.constant 0 : index
    %0 = vector.load %arg1[%c0, %c0_0] : memref<512x4xf32, #tpu.memory_space<vmem>>, vector<512x4xf32>
    %1 = math.absf %0 : vector<512x4xf32>
    %2 = vector.shape_cast %1 : vector<512x4xf32> to vector<1x512x4xf32>
    %cst = arith.constant dense<0xFF800000> : vector<1xf32>
    %3 = vector.multi_reduction <maximumf>, %2, %cst [1, 2] : vector<1x512x4xf32> to vector<1xf32>
    %4 = vector.shape_cast %3 : vector<1xf32> to vector<1x1x1xf32>
    %5 = vector.extract %4[0, 0, 0] : f32 from vector<1x1x1xf32>
    %6 = vector.broadcast %5 : f32 to vector<1x1x128xf32>
    %c0_1 = arith.constant 0 : index
    %c0_2 = arith.constant 0 : index
    %c0_3 = arith.constant 0 : index
    %7 = vector.load %arg2[%c0_1, %c0_2, %c0_3] : memref<1x1x128xf32, #tpu.memory_space<vmem>>, vector<1x1x128xf32>
    tpu.vector_store %arg2[%c0_1, %c0_2, %c0_3], %6 {strides = array<i32>} : memref<1x1x128xf32, #tpu.memory_space<vmem>>, vector<1x1x128xf32>,
    return
  }
  func.func @transform_0(%arg0: i32) -> (i32, i32) {
    %c0_i32 = arith.constant 0 : i32
    %c0_i32_0 = arith.constant 0 : i32
    return %arg0, %c0_i32 : i32, i32
  }
  func.func @transform_1(%arg0: i32) -> (i32, i32, i32) {
    %c0_i32 = arith.constant 0 : i32
    %c0_i32_0 = arith.constant 0 : i32
    %c0_i32_1 = arith.constant 0 : i32
    return %arg0, %c0_i32, %c0_i32_0 : i32, i32, i32
  }
}

module attributes {stable_mosaic.version = 11 : i64} {
  func.func @_dw_fused_kernel(%arg0: i32, %arg1: i32, %arg2: i32, %arg3: memref<1x1xf32, #tpu.memory_space<smem>>, %arg4: memref<1x16x16x128xbf16, #tpu.memory_space<vmem>>, %arg5: memref<9x128xf32, #tpu.memory_space<vmem>>, %arg6: memref<1x128xf32, #tpu.memory_space<vmem>>, %arg7: memref<1x16x16x128xbf16, #tpu.memory_space<vmem>>, %arg8: memref<1x1x128xf32, #tpu.memory_space<vmem>>, %arg9: memref<18x18x128xf32, #tpu.memory_space<vmem>>) attributes {dimension_semantics = [#tpu.dimension_semantics<parallel>, #tpu.dimension_semantics<parallel>, #tpu.dimension_semantics<arbitrary>], iteration_bounds = array<i64: 2, 1, 1>, scalar_prefetch = 0 : i64, scratch_operands = 1 : i64, tpu.core_type = #tpu.core_type<tc>, window_params = [{transform_indices = @transform_0, window_bounds = array<i64: 1, 1>}, {transform_indices = @transform_1, window_bounds = array<i64: 1, 16, 16, 128>}, {transform_indices = @transform_2, window_bounds = array<i64: 9, 128>}, {transform_indices = @transform_3, window_bounds = array<i64: 1, 128>}, {transform_indices = @transform_4, window_bounds = array<i64: 1, 16, 16, 128>}, {transform_indices = @transform_5, window_bounds = array<i64: 1, 1, 128>}]} {
    %c0 = arith.constant 0 : index
    %c0_0 = arith.constant 0 : index
    %0 = memref.load %arg3[%c0, %c0_0] : memref<1x1xf32, #tpu.memory_space<smem>>
    %c0_i32 = arith.constant 0 : i32
    %1 = arith.cmpi eq, %arg2, %c0_i32 : i32
    %2 = arith.extui %1 : i1 to i32
    %c0_i32_1 = arith.constant 0 : i32
    %3 = arith.cmpi ne, %2, %c0_i32_1 : i32
    scf.if %3 {
      %cst_36 = arith.constant 1.000000e+00 : f32
      %105 = arith.divf %cst_36, %0 : f32
      %c0_37 = arith.constant 0 : index
      %c0_38 = arith.constant 0 : index
      %c0_39 = arith.constant 0 : index
      %c0_40 = arith.constant 0 : index
      %106 = vector.load %arg4[%c0_37, %c0_38, %c0_39, %c0_40] : memref<1x16x16x128xbf16, #tpu.memory_space<vmem>>, vector<1x16x16x128xbf16>
      %107 = vector.shape_cast %106 : vector<1x16x16x128xbf16> to vector<16x16x128xbf16>
      %108 = arith.extf %107 : vector<16x16x128xbf16> to vector<16x16x128xf32>
      %109 = vector.broadcast %105 : f32 to vector<16x16x128xf32>
      %110 = arith.mulf %108, %109 : vector<16x16x128xf32>
      %111 = math.roundeven %110 : vector<16x16x128xf32>
      %cst_41 = arith.constant -1.270000e+02 : f32
      %cst_42 = arith.constant 1.270000e+02 : f32
      %112 = vector.broadcast %cst_41 : f32 to vector<16x16x128xf32>
      %113 = arith.maximumf %112, %111 : vector<16x16x128xf32>
      %114 = vector.broadcast %cst_42 : f32 to vector<16x16x128xf32>
      %115 = arith.minimumf %114, %113 : vector<16x16x128xf32>
      %cst_43 = arith.constant 0.000000e+00 : f32
      %116 = vector.broadcast %cst_43 : f32 to vector<1x18x128xf32>
      %cst_44 = arith.constant 0.000000e+00 : f32
      %117 = vector.broadcast %cst_44 : f32 to vector<18x1x128xf32>
      %c0_45 = arith.constant 0 : index
      %c0_46 = arith.constant 0 : index
      %c0_47 = arith.constant 0 : index
      %118 = vector.load %arg9[%c0_45, %c0_46, %c0_47] : memref<18x18x128xf32, #tpu.memory_space<vmem>>, vector<1x18x128xf32>
      tpu.vector_store %arg9[%c0_45, %c0_46, %c0_47], %116 {strides = array<i32>} : memref<18x18x128xf32, #tpu.memory_space<vmem>>, vector<1x18x128xf32>,
      %c17 = arith.constant 17 : index
      %c0_48 = arith.constant 0 : index
      %c0_49 = arith.constant 0 : index
      %119 = vector.load %arg9[%c17, %c0_48, %c0_49] : memref<18x18x128xf32, #tpu.memory_space<vmem>>, vector<1x18x128xf32>
      tpu.vector_store %arg9[%c17, %c0_48, %c0_49], %116 {strides = array<i32>} : memref<18x18x128xf32, #tpu.memory_space<vmem>>, vector<1x18x128xf32>,
      %c0_50 = arith.constant 0 : index
      %c0_51 = arith.constant 0 : index
      %c0_52 = arith.constant 0 : index
      %120 = vector.load %arg9[%c0_50, %c0_51, %c0_52] : memref<18x18x128xf32, #tpu.memory_space<vmem>>, vector<18x1x128xf32>
      tpu.vector_store %arg9[%c0_50, %c0_51, %c0_52], %117 {strides = array<i32>} : memref<18x18x128xf32, #tpu.memory_space<vmem>>, vector<18x1x128xf32>,
      %c0_53 = arith.constant 0 : index
      %c17_54 = arith.constant 17 : index
      %c0_55 = arith.constant 0 : index
      %121 = vector.load %arg9[%c0_53, %c17_54, %c0_55] : memref<18x18x128xf32, #tpu.memory_space<vmem>>, vector<18x1x128xf32>
      tpu.vector_store %arg9[%c0_53, %c17_54, %c0_55], %117 {strides = array<i32>} : memref<18x18x128xf32, #tpu.memory_space<vmem>>, vector<18x1x128xf32>,
      %c1_56 = arith.constant 1 : index
      %c1_57 = arith.constant 1 : index
      %c0_58 = arith.constant 0 : index
      %122 = vector.load %arg9[%c1_56, %c1_57, %c0_58] : memref<18x18x128xf32, #tpu.memory_space<vmem>>, vector<16x16x128xf32>
      tpu.vector_store %arg9[%c1_56, %c1_57, %c0_58], %115 {strides = array<i32>} : memref<18x18x128xf32, #tpu.memory_space<vmem>>, vector<16x16x128xf32>,
      %cst_59 = arith.constant 0.000000e+00 : f32
      %123 = vector.broadcast %cst_59 : f32 to vector<1x1x128xf32>
      %c0_60 = arith.constant 0 : index
      %c0_61 = arith.constant 0 : index
      %c0_62 = arith.constant 0 : index
      %124 = vector.load %arg8[%c0_60, %c0_61, %c0_62] : memref<1x1x128xf32, #tpu.memory_space<vmem>>, vector<1x1x128xf32>
      tpu.vector_store %arg8[%c0_60, %c0_61, %c0_62], %123 {strides = array<i32>} : memref<1x1x128xf32, #tpu.memory_space<vmem>>, vector<1x1x128xf32>,
    } else {
    }
    %c16_i32 = arith.constant 16 : i32
    %4 = arith.muli %arg2, %c16_i32 : i32
    %5 = tpu.assume_multiple %4, 8 : i32
    %c0_2 = arith.constant 0 : index
    %c0_3 = arith.constant 0 : index
    %6 = vector.load %arg5[%c0_2, %c0_3] : memref<9x128xf32, #tpu.memory_space<vmem>>, vector<9x128xf32>
    %cst = arith.constant 0.000000e+00 : f32
    %7 = vector.broadcast %cst : f32 to vector<16x16x128xf32>
    %c0_i32_4 = arith.constant 0 : i32
    %8 = arith.addi %5, %c0_i32_4 : i32
    %9 = arith.index_cast %8 : i32 to index
    %c0_5 = arith.constant 0 : index
    %c0_6 = arith.constant 0 : index
    %10 = vector.load %arg9[%9, %c0_5, %c0_6] : memref<18x18x128xf32, #tpu.memory_space<vmem>>, vector<16x16x128xf32>
    %11 = vector.extract_strided_slice %6 {offsets = [0, 0], sizes = [1, 128], strides = [1, 1]} : vector<9x128xf32> to vector<1x128xf32>
    %12 = vector.shape_cast %11 : vector<1x128xf32> to vector<128xf32>
    %13 = vector.shape_cast %12 : vector<128xf32> to vector<1x1x128xf32>
    %14 = vector.broadcast %13 : vector<1x1x128xf32> to vector<16x16x128xf32>
    %15 = arith.mulf %10, %14 : vector<16x16x128xf32>
    %16 = arith.addf %7, %15 : vector<16x16x128xf32>
    %17 = arith.index_cast %8 : i32 to index
    %c1 = arith.constant 1 : index
    %c0_7 = arith.constant 0 : index
    %18 = vector.load %arg9[%17, %c1, %c0_7] : memref<18x18x128xf32, #tpu.memory_space<vmem>>, vector<16x16x128xf32>
    %19 = vector.extract_strided_slice %6 {offsets = [1, 0], sizes = [1, 128], strides = [1, 1]} : vector<9x128xf32> to vector<1x128xf32>
    %20 = vector.shape_cast %19 : vector<1x128xf32> to vector<128xf32>
    %21 = vector.shape_cast %20 : vector<128xf32> to vector<1x1x128xf32>
    %22 = vector.broadcast %21 : vector<1x1x128xf32> to vector<16x16x128xf32>
    %23 = arith.mulf %18, %22 : vector<16x16x128xf32>
    %24 = arith.addf %16, %23 : vector<16x16x128xf32>
    %25 = arith.index_cast %8 : i32 to index
    %c2 = arith.constant 2 : index
    %c0_8 = arith.constant 0 : index
    %26 = vector.load %arg9[%25, %c2, %c0_8] : memref<18x18x128xf32, #tpu.memory_space<vmem>>, vector<16x16x128xf32>
    %27 = vector.extract_strided_slice %6 {offsets = [2, 0], sizes = [1, 128], strides = [1, 1]} : vector<9x128xf32> to vector<1x128xf32>
    %28 = vector.shape_cast %27 : vector<1x128xf32> to vector<128xf32>
    %29 = vector.shape_cast %28 : vector<128xf32> to vector<1x1x128xf32>
    %30 = vector.broadcast %29 : vector<1x1x128xf32> to vector<16x16x128xf32>
    %31 = arith.mulf %26, %30 : vector<16x16x128xf32>
    %32 = arith.addf %24, %31 : vector<16x16x128xf32>
    %c1_i32 = arith.constant 1 : i32
    %33 = arith.addi %5, %c1_i32 : i32
    %34 = arith.index_cast %33 : i32 to index
    %c0_9 = arith.constant 0 : index
    %c0_10 = arith.constant 0 : index
    %35 = vector.load %arg9[%34, %c0_9, %c0_10] : memref<18x18x128xf32, #tpu.memory_space<vmem>>, vector<16x16x128xf32>
    %36 = vector.extract_strided_slice %6 {offsets = [3, 0], sizes = [1, 128], strides = [1, 1]} : vector<9x128xf32> to vector<1x128xf32>
    %37 = vector.shape_cast %36 : vector<1x128xf32> to vector<128xf32>
    %38 = vector.shape_cast %37 : vector<128xf32> to vector<1x1x128xf32>
    %39 = vector.broadcast %38 : vector<1x1x128xf32> to vector<16x16x128xf32>
    %40 = arith.mulf %35, %39 : vector<16x16x128xf32>
    %41 = arith.addf %32, %40 : vector<16x16x128xf32>
    %42 = arith.index_cast %33 : i32 to index
    %c1_11 = arith.constant 1 : index
    %c0_12 = arith.constant 0 : index
    %43 = vector.load %arg9[%42, %c1_11, %c0_12] : memref<18x18x128xf32, #tpu.memory_space<vmem>>, vector<16x16x128xf32>
    %44 = vector.extract_strided_slice %6 {offsets = [4, 0], sizes = [1, 128], strides = [1, 1]} : vector<9x128xf32> to vector<1x128xf32>
    %45 = vector.shape_cast %44 : vector<1x128xf32> to vector<128xf32>
    %46 = vector.shape_cast %45 : vector<128xf32> to vector<1x1x128xf32>
    %47 = vector.broadcast %46 : vector<1x1x128xf32> to vector<16x16x128xf32>
    %48 = arith.mulf %43, %47 : vector<16x16x128xf32>
    %49 = arith.addf %41, %48 : vector<16x16x128xf32>
    %50 = arith.index_cast %33 : i32 to index
    %c2_13 = arith.constant 2 : index
    %c0_14 = arith.constant 0 : index
    %51 = vector.load %arg9[%50, %c2_13, %c0_14] : memref<18x18x128xf32, #tpu.memory_space<vmem>>, vector<16x16x128xf32>
    %52 = vector.extract_strided_slice %6 {offsets = [5, 0], sizes = [1, 128], strides = [1, 1]} : vector<9x128xf32> to vector<1x128xf32>
    %53 = vector.shape_cast %52 : vector<1x128xf32> to vector<128xf32>
    %54 = vector.shape_cast %53 : vector<128xf32> to vector<1x1x128xf32>
    %55 = vector.broadcast %54 : vector<1x1x128xf32> to vector<16x16x128xf32>
    %56 = arith.mulf %51, %55 : vector<16x16x128xf32>
    %57 = arith.addf %49, %56 : vector<16x16x128xf32>
    %c2_i32 = arith.constant 2 : i32
    %58 = arith.addi %5, %c2_i32 : i32
    %59 = arith.index_cast %58 : i32 to index
    %c0_15 = arith.constant 0 : index
    %c0_16 = arith.constant 0 : index
    %60 = vector.load %arg9[%59, %c0_15, %c0_16] : memref<18x18x128xf32, #tpu.memory_space<vmem>>, vector<16x16x128xf32>
    %61 = vector.extract_strided_slice %6 {offsets = [6, 0], sizes = [1, 128], strides = [1, 1]} : vector<9x128xf32> to vector<1x128xf32>
    %62 = vector.shape_cast %61 : vector<1x128xf32> to vector<128xf32>
    %63 = vector.shape_cast %62 : vector<128xf32> to vector<1x1x128xf32>
    %64 = vector.broadcast %63 : vector<1x1x128xf32> to vector<16x16x128xf32>
    %65 = arith.mulf %60, %64 : vector<16x16x128xf32>
    %66 = arith.addf %57, %65 : vector<16x16x128xf32>
    %67 = arith.index_cast %58 : i32 to index
    %c1_17 = arith.constant 1 : index
    %c0_18 = arith.constant 0 : index
    %68 = vector.load %arg9[%67, %c1_17, %c0_18] : memref<18x18x128xf32, #tpu.memory_space<vmem>>, vector<16x16x128xf32>
    %69 = vector.extract_strided_slice %6 {offsets = [7, 0], sizes = [1, 128], strides = [1, 1]} : vector<9x128xf32> to vector<1x128xf32>
    %70 = vector.shape_cast %69 : vector<1x128xf32> to vector<128xf32>
    %71 = vector.shape_cast %70 : vector<128xf32> to vector<1x1x128xf32>
    %72 = vector.broadcast %71 : vector<1x1x128xf32> to vector<16x16x128xf32>
    %73 = arith.mulf %68, %72 : vector<16x16x128xf32>
    %74 = arith.addf %66, %73 : vector<16x16x128xf32>
    %75 = arith.index_cast %58 : i32 to index
    %c2_19 = arith.constant 2 : index
    %c0_20 = arith.constant 0 : index
    %76 = vector.load %arg9[%75, %c2_19, %c0_20] : memref<18x18x128xf32, #tpu.memory_space<vmem>>, vector<16x16x128xf32>
    %77 = vector.extract_strided_slice %6 {offsets = [8, 0], sizes = [1, 128], strides = [1, 1]} : vector<9x128xf32> to vector<1x128xf32>
    %78 = vector.shape_cast %77 : vector<1x128xf32> to vector<128xf32>
    %79 = vector.shape_cast %78 : vector<128xf32> to vector<1x1x128xf32>
    %80 = vector.broadcast %79 : vector<1x1x128xf32> to vector<16x16x128xf32>
    %81 = arith.mulf %76, %80 : vector<16x16x128xf32>
    %82 = arith.addf %74, %81 : vector<16x16x128xf32>
    %83 = vector.broadcast %0 : f32 to vector<16x16x128xf32>
    %84 = arith.mulf %82, %83 : vector<16x16x128xf32>
    %c0_21 = arith.constant 0 : index
    %c0_22 = arith.constant 0 : index
    %85 = vector.load %arg6[%c0_21, %c0_22] : memref<1x128xf32, #tpu.memory_space<vmem>>, vector<1x128xf32>
    %86 = vector.shape_cast %85 : vector<1x128xf32> to vector<1x1x128xf32>
    %87 = vector.broadcast %86 : vector<1x1x128xf32> to vector<16x16x128xf32>
    %88 = arith.addf %84, %87 : vector<16x16x128xf32>
    %cst_23 = arith.constant 0.000000e+00 : f32
    %cst_24 = arith.constant 6.000000e+00 : f32
    %89 = vector.broadcast %cst_23 : f32 to vector<16x16x128xf32>
    %90 = arith.maximumf %89, %88 : vector<16x16x128xf32>
    %91 = vector.broadcast %cst_24 : f32 to vector<16x16x128xf32>
    %92 = arith.minimumf %91, %90 : vector<16x16x128xf32>
    %93 = arith.truncf %92 : vector<16x16x128xf32> to vector<16x16x128xbf16>
    %c0_25 = arith.constant 0 : index
    %c0_26 = arith.constant 0 : index
    %c0_27 = arith.constant 0 : index
    %c0_28 = arith.constant 0 : index
    %94 = vector.load %arg7[%c0_25, %c0_26, %c0_27, %c0_28] : memref<1x16x16x128xbf16, #tpu.memory_space<vmem>>, vector<1x16x16x128xbf16>
    %95 = vector.shape_cast %94 : vector<1x16x16x128xbf16> to vector<16x16x128xbf16>
    %96 = vector.shape_cast %93 : vector<16x16x128xbf16> to vector<1x16x16x128xbf16>
    tpu.vector_store %arg7[%c0_25, %c0_26, %c0_27, %c0_28], %96 {strides = array<i32>} : memref<1x16x16x128xbf16, #tpu.memory_space<vmem>>, vector<1x16x16x128xbf16>,
    %c0_29 = arith.constant 0 : index
    %c0_30 = arith.constant 0 : index
    %c0_31 = arith.constant 0 : index
    %97 = vector.load %arg8[%c0_29, %c0_30, %c0_31] : memref<1x1x128xf32, #tpu.memory_space<vmem>>, vector<1x1x128xf32>
    %98 = vector.shape_cast %92 : vector<16x16x128xf32> to vector<1x16x16x128xf32>
    %cst_32 = arith.constant dense<0xFF800000> : vector<1xf32>
    %99 = vector.multi_reduction <maximumf>, %98, %cst_32 [1, 2, 3] : vector<1x16x16x128xf32> to vector<1xf32>
    %100 = vector.shape_cast %99 : vector<1xf32> to vector<1x1x1x1xf32>
    %101 = vector.extract %100[0, 0, 0, 0] : f32 from vector<1x1x1x1xf32>
    %102 = vector.broadcast %101 : f32 to vector<1x1x128xf32>
    %103 = arith.maximumf %97, %102 : vector<1x1x128xf32>
    %c0_33 = arith.constant 0 : index
    %c0_34 = arith.constant 0 : index
    %c0_35 = arith.constant 0 : index
    %104 = vector.load %arg8[%c0_33, %c0_34, %c0_35] : memref<1x1x128xf32, #tpu.memory_space<vmem>>, vector<1x1x128xf32>
    tpu.vector_store %arg8[%c0_33, %c0_34, %c0_35], %103 {strides = array<i32>} : memref<1x1x128xf32, #tpu.memory_space<vmem>>, vector<1x1x128xf32>,
    return
  }
  func.func @transform_0(%arg0: i32, %arg1: i32, %arg2: i32) -> (i32, i32) {
    %c0_i32 = arith.constant 0 : i32
    %c0_i32_0 = arith.constant 0 : i32
    %c0_i32_1 = arith.constant 0 : i32
    return %c0_i32, %c0_i32_0 : i32, i32
  }
  func.func @transform_1(%arg0: i32, %arg1: i32, %arg2: i32) -> (i32, i32, i32, i32) {
    %c0_i32 = arith.constant 0 : i32
    %c0_i32_0 = arith.constant 0 : i32
    %c0_i32_1 = arith.constant 0 : i32
    return %arg0, %c0_i32, %c0_i32_0, %arg1 : i32, i32, i32, i32
  }
  func.func @transform_2(%arg0: i32, %arg1: i32, %arg2: i32) -> (i32, i32) {
    %c0_i32 = arith.constant 0 : i32
    %c0_i32_0 = arith.constant 0 : i32
    return %c0_i32, %arg1 : i32, i32
  }
  func.func @transform_3(%arg0: i32, %arg1: i32, %arg2: i32) -> (i32, i32) {
    %c0_i32 = arith.constant 0 : i32
    %c0_i32_0 = arith.constant 0 : i32
    return %c0_i32, %arg1 : i32, i32
  }
  func.func @transform_4(%arg0: i32, %arg1: i32, %arg2: i32) -> (i32, i32, i32, i32) {
    %c0_i32 = arith.constant 0 : i32
    %c0_i32_0 = arith.constant 0 : i32
    return %arg0, %arg2, %c0_i32, %arg1 : i32, i32, i32, i32
  }
  func.func @transform_5(%arg0: i32, %arg1: i32, %arg2: i32) -> (i32, i32, i32) {
    %c1_i32 = arith.constant 1 : i32
    %0 = arith.muli %arg0, %c1_i32 : i32
    %1 = arith.addi %0, %arg1 : i32
    %c0_i32 = arith.constant 0 : i32
    %c0_i32_0 = arith.constant 0 : i32
    %c0_i32_1 = arith.constant 0 : i32
    return %1, %c0_i32, %c0_i32_0 : i32, i32, i32
  }
}

module attributes {stable_mosaic.version = 11 : i64} {
  func.func @_pw_fused_kernel(%arg0: i32, %arg1: i32, %arg2: memref<1x1xf32, #tpu.memory_space<smem>>, %arg3: memref<512x128xbf16, #tpu.memory_space<vmem>>, %arg4: memref<128x128xbf16, #tpu.memory_space<vmem>>, %arg5: memref<1x128xf32, #tpu.memory_space<vmem>>, %arg6: memref<1x128xf32, #tpu.memory_space<vmem>>, %arg7: memref<512x128xf32, #tpu.memory_space<vmem>>, %arg8: memref<512x128xf32, #tpu.memory_space<vmem>>, %arg9: memref<1x1x128xf32, #tpu.memory_space<vmem>>, %arg10: memref<512x128xbf16, #tpu.memory_space<vmem>>) attributes {dimension_semantics = [#tpu.dimension_semantics<parallel>, #tpu.dimension_semantics<arbitrary>], iteration_bounds = array<i64: 1, 1>, scalar_prefetch = 0 : i64, scratch_operands = 1 : i64, tpu.core_type = #tpu.core_type<tc>, window_params = [{transform_indices = @transform_0, window_bounds = array<i64: 1, 1>}, {transform_indices = @transform_1, window_bounds = array<i64: 512, 128>}, {transform_indices = @transform_2, window_bounds = array<i64: 128, 128>}, {transform_indices = @transform_3, window_bounds = array<i64: 1, 128>}, {transform_indices = @transform_4, window_bounds = array<i64: 1, 128>}, {transform_indices = @transform_5, window_bounds = array<i64: 512, 128>}, {transform_indices = @transform_6, window_bounds = array<i64: 512, 128>}, {transform_indices = @transform_7, window_bounds = array<i64: 1, 1, 128>}]} {
    %c0 = arith.constant 0 : index
    %c0_0 = arith.constant 0 : index
    %0 = memref.load %arg2[%c0, %c0_0] : memref<1x1xf32, #tpu.memory_space<smem>>
    %c0_i32 = arith.constant 0 : i32
    %1 = arith.cmpi eq, %arg1, %c0_i32 : i32
    %2 = arith.extui %1 : i1 to i32
    %c0_i32_1 = arith.constant 0 : i32
    %3 = arith.cmpi ne, %2, %c0_i32_1 : i32
    scf.if %3 {
      %cst_21 = arith.constant 1.000000e+00 : f32
      %27 = arith.divf %cst_21, %0 : f32
      %c0_22 = arith.constant 0 : index
      %c0_23 = arith.constant 0 : index
      %28 = vector.load %arg3[%c0_22, %c0_23] : memref<512x128xbf16, #tpu.memory_space<vmem>>, vector<512x128xbf16>
      %29 = arith.extf %28 : vector<512x128xbf16> to vector<512x128xf32>
      %30 = vector.broadcast %27 : f32 to vector<512x128xf32>
      %31 = arith.mulf %29, %30 : vector<512x128xf32>
      %32 = math.roundeven %31 : vector<512x128xf32>
      %cst_24 = arith.constant -1.270000e+02 : f32
      %cst_25 = arith.constant 1.270000e+02 : f32
      %33 = vector.broadcast %cst_24 : f32 to vector<512x128xf32>
      %34 = arith.maximumf %33, %32 : vector<512x128xf32>
      %35 = vector.broadcast %cst_25 : f32 to vector<512x128xf32>
      %36 = arith.minimumf %35, %34 : vector<512x128xf32>
      %37 = arith.truncf %36 : vector<512x128xf32> to vector<512x128xbf16>
      %c0_26 = arith.constant 0 : index
      %c0_27 = arith.constant 0 : index
      %38 = vector.load %arg10[%c0_26, %c0_27] : memref<512x128xbf16, #tpu.memory_space<vmem>>, vector<512x128xbf16>
      tpu.vector_store %arg10[%c0_26, %c0_27], %37 {strides = array<i32>} : memref<512x128xbf16, #tpu.memory_space<vmem>>, vector<512x128xbf16>,
      %cst_28 = arith.constant 0.000000e+00 : f32
      %39 = vector.broadcast %cst_28 : f32 to vector<1x1x128xf32>
      %c0_29 = arith.constant 0 : index
      %c0_30 = arith.constant 0 : index
      %c0_31 = arith.constant 0 : index
      %40 = vector.load %arg9[%c0_29, %c0_30, %c0_31] : memref<1x1x128xf32, #tpu.memory_space<vmem>>, vector<1x1x128xf32>
      tpu.vector_store %arg9[%c0_29, %c0_30, %c0_31], %39 {strides = array<i32>} : memref<1x1x128xf32, #tpu.memory_space<vmem>>, vector<1x1x128xf32>,
    } else {
    }
    %c0_2 = arith.constant 0 : index
    %c0_3 = arith.constant 0 : index
    %4 = vector.load %arg10[%c0_2, %c0_3] : memref<512x128xbf16, #tpu.memory_space<vmem>>, vector<512x128xbf16>
    %c0_4 = arith.constant 0 : index
    %c0_5 = arith.constant 0 : index
    %5 = vector.load %arg4[%c0_4, %c0_5] : memref<128x128xbf16, #tpu.memory_space<vmem>>, vector<128x128xbf16>
    %cst = arith.constant dense<0.000000e+00> : vector<512x128xf32>
    %6 = tpu.matmul %4, %5, %cst {dimension_numbers = #tpu.dot_dimension_numbers<[1], [0], [0], [1], [0, 0, 1, 1], [], []>} : vector<512x128xbf16>, vector<128x128xbf16>, vector<512x128xf32> -> vector<512x128xf32>
    %c0_6 = arith.constant 0 : index
    %c0_7 = arith.constant 0 : index
    %7 = vector.load %arg5[%c0_6, %c0_7] : memref<1x128xf32, #tpu.memory_space<vmem>>, vector<1x128xf32>
    %8 = vector.broadcast %0 : f32 to vector<1x128xf32>
    %9 = arith.mulf %7, %8 : vector<1x128xf32>
    %10 = vector.broadcast %9 : vector<1x128xf32> to vector<512x128xf32>
    %11 = arith.mulf %6, %10 : vector<512x128xf32>
    %c0_8 = arith.constant 0 : index
    %c0_9 = arith.constant 0 : index
    %12 = vector.load %arg6[%c0_8, %c0_9] : memref<1x128xf32, #tpu.memory_space<vmem>>, vector<1x128xf32>
    %13 = vector.broadcast %12 : vector<1x128xf32> to vector<512x128xf32>
    %14 = arith.addf %11, %13 : vector<512x128xf32>
    %c0_10 = arith.constant 0 : index
    %c0_11 = arith.constant 0 : index
    %15 = vector.load %arg7[%c0_10, %c0_11] : memref<512x128xf32, #tpu.memory_space<vmem>>, vector<512x128xf32>
    %16 = arith.addf %14, %15 : vector<512x128xf32>
    %c0_12 = arith.constant 0 : index
    %c0_13 = arith.constant 0 : index
    %17 = vector.load %arg8[%c0_12, %c0_13] : memref<512x128xf32, #tpu.memory_space<vmem>>, vector<512x128xf32>
    tpu.vector_store %arg8[%c0_12, %c0_13], %16 {strides = array<i32>} : memref<512x128xf32, #tpu.memory_space<vmem>>, vector<512x128xf32>,
    %c0_14 = arith.constant 0 : index
    %c0_15 = arith.constant 0 : index
    %c0_16 = arith.constant 0 : index
    %18 = vector.load %arg9[%c0_14, %c0_15, %c0_16] : memref<1x1x128xf32, #tpu.memory_space<vmem>>, vector<1x1x128xf32>
    %19 = math.absf %16 : vector<512x128xf32>
    %20 = vector.shape_cast %19 : vector<512x128xf32> to vector<1x512x128xf32>
    %cst_17 = arith.constant dense<0xFF800000> : vector<1xf32>
    %21 = vector.multi_reduction <maximumf>, %20, %cst_17 [1, 2] : vector<1x512x128xf32> to vector<1xf32>
    %22 = vector.shape_cast %21 : vector<1xf32> to vector<1x1x1xf32>
    %23 = vector.extract %22[0, 0, 0] : f32 from vector<1x1x1xf32>
    %24 = vector.broadcast %23 : f32 to vector<1x1x128xf32>
    %25 = arith.maximumf %18, %24 : vector<1x1x128xf32>
    %c0_18 = arith.constant 0 : index
    %c0_19 = arith.constant 0 : index
    %c0_20 = arith.constant 0 : index
    %26 = vector.load %arg9[%c0_18, %c0_19, %c0_20] : memref<1x1x128xf32, #tpu.memory_space<vmem>>, vector<1x1x128xf32>
    tpu.vector_store %arg9[%c0_18, %c0_19, %c0_20], %25 {strides = array<i32>} : memref<1x1x128xf32, #tpu.memory_space<vmem>>, vector<1x1x128xf32>,
    return
  }
  func.func @transform_0(%arg0: i32, %arg1: i32) -> (i32, i32) {
    %c0_i32 = arith.constant 0 : i32
    %c0_i32_0 = arith.constant 0 : i32
    %c0_i32_1 = arith.constant 0 : i32
    return %c0_i32, %c0_i32_0 : i32, i32
  }
  func.func @transform_1(%arg0: i32, %arg1: i32) -> (i32, i32) {
    %c0_i32 = arith.constant 0 : i32
    %c0_i32_0 = arith.constant 0 : i32
    return %arg0, %c0_i32 : i32, i32
  }
  func.func @transform_2(%arg0: i32, %arg1: i32) -> (i32, i32) {
    %c0_i32 = arith.constant 0 : i32
    %c0_i32_0 = arith.constant 0 : i32
    return %c0_i32, %arg1 : i32, i32
  }
  func.func @transform_3(%arg0: i32, %arg1: i32) -> (i32, i32) {
    %c0_i32 = arith.constant 0 : i32
    %c0_i32_0 = arith.constant 0 : i32
    return %c0_i32, %arg1 : i32, i32
  }
  func.func @transform_4(%arg0: i32, %arg1: i32) -> (i32, i32) {
    %c0_i32 = arith.constant 0 : i32
    %c0_i32_0 = arith.constant 0 : i32
    return %c0_i32, %arg1 : i32, i32
  }
  func.func @transform_5(%arg0: i32, %arg1: i32) -> (i32, i32) {
    %c0_i32 = arith.constant 0 : i32
    return %arg0, %arg1 : i32, i32
  }
  func.func @transform_6(%arg0: i32, %arg1: i32) -> (i32, i32) {
    %c0_i32 = arith.constant 0 : i32
    return %arg0, %arg1 : i32, i32
  }
  func.func @transform_7(%arg0: i32, %arg1: i32) -> (i32, i32, i32) {
    %c0_i32 = arith.constant 0 : i32
    %c0_i32_0 = arith.constant 0 : i32
    %c0_i32_1 = arith.constant 0 : i32
    return %arg0, %c0_i32, %c0_i32_0 : i32, i32, i32
  }
}

</mosaic_0001>

<llo_original>
// kernel: _unnamed_function_.4
$region0: #{_unnamed_function_.4}
  #allocation0 [shape = 'u32[]', space=smem, size = 0x4, offset = 0x4, fixed_abs, tag = 'smem constant byte address 0x4 - core index']
  #allocation1 [shape = 'u32[144,128]{1,0:T(1,128)}', space=vmem, size = 0x12000, scoped, tag = 'internal scratch']
  %s0 = inlined_call_operand.vmem [shape: f32[512,4], index: 0, kind: input, shape index: {}]
  %s1 = inlined_call_operand.vmem [shape: f32[1,1,128], index: 1, kind: output, shape index: {}]
  %s2 = sld [smem:[#allocation0]]
  $region14: #{_unnamed_function_.4} parent=0
    _
  %s4 = ssub.s32 1, %s2
  %s5 = scalar_select 0, %s4, %s2
  // Predicated region
  $region2: #{_unnamed_function_.4} parent=0 // pred_check
    _
  $region3: #{_unnamed_function_.4} parent=0 // pred_check_branch
    %7 = sbr.rel (0) target = $region5
  $region4: #{_unnamed_function_.4} parent=0 // pred_region
    _
  $region5: #{_unnamed_function_.4} parent=0 // pred_fallthru
    _
  %v8 = vld [vmem:[%s0] sm:$0xff]
  %v9 = vld [vmem:[%s0 + $0x8] sm:$0xff]
  %v10 = vld [vmem:[%s0 + $0x10] sm:$0xff]
  %v11 = vld [vmem:[%s0 + $0x18] sm:$0xff]
  %v12 = vld [vmem:[%s0 + $0x20] sm:$0xff]
  %v13 = vld [vmem:[%s0 + $0x28] sm:$0xff]
  %v14 = vld [vmem:[%s0 + $0x30] sm:$0xff]
  %v15 = vld [vmem:[%s0 + $0x38] sm:$0xff]
  %v16 = vld [vmem:[%s0 + $0x40] sm:$0xff]
  %v17 = vld [vmem:[%s0 + $0x48] sm:$0xff]
  %v18 = vld [vmem:[%s0 + $0x50] sm:$0xff]
  %v19 = vld [vmem:[%s0 + $0x58] sm:$0xff]
  %v20 = vld [vmem:[%s0 + $0x60] sm:$0xff]
  %v21 = vld [vmem:[%s0 + $0x68] sm:$0xff]
  %v22 = vld [vmem:[%s0 + $0x70] sm:$0xff]
  %v23 = vld [vmem:[%s0 + $0x78] sm:$0xff]
  %v24 = vld [vmem:[%s0 + $0x80] sm:$0xff]
  %v25 = vld [vmem:[%s0 + $0x88] sm:$0xff]
  %v26 = vld [vmem:[%s0 + $0x90] sm:$0xff]
  %v27 = vld [vmem:[%s0 + $0x98] sm:$0xff]
  %v28 = vld [vmem:[%s0 + $0xa0] sm:$0xff]
  %v29 = vld [vmem:[%s0 + $0xa8] sm:$0xff]
  %v30 = vld [vmem:[%s0 + $0xb0] sm:$0xff]
  %v31 = vld [vmem:[%s0 + $0xb8] sm:$0xff]
  %v32 = vld [vmem:[%s0 + $0xc0] sm:$0xff]
  %v33 = vld [vmem:[%s0 + $0xc8] sm:$0xff]
  %v34 = vld [vmem:[%s0 + $0xd0] sm:$0xff]
  %v35 = vld [vmem:[%s0 + $0xd8] sm:$0xff]
  %v36 = vld [vmem:[%s0 + $0xe0] sm:$0xff]
  %v37 = vld [vmem:[%s0 + $0xe8] sm:$0xff]
  %v38 = vld [vmem:[%s0 + $0xf0] sm:$0xff]
  %v39 = vld [vmem:[%s0 + $0xf8] sm:$0xff]
  %v40 = vld [vmem:[%s0 + $0x100] sm:$0xff]
  %v41 = vld [vmem:[%s0 + $0x108] sm:$0xff]
  %v42 = vld [vmem:[%s0 + $0x110] sm:$0xff]
  %v43 = vld [vmem:[%s0 + $0x118] sm:$0xff]
  %v44 = vld [vmem:[%s0 + $0x120] sm:$0xff]
  %v45 = vld [vmem:[%s0 + $0x128] sm:$0xff]
  %v46 = vld [vmem:[%s0 + $0x130] sm:$0xff]
  %v47 = vld [vmem:[%s0 + $0x138] sm:$0xff]
  %v48 = vld [vmem:[%s0 + $0x140] sm:$0xff]
  %v49 = vld [vmem:[%s0 + $0x148] sm:$0xff]
  %v50 = vld [vmem:[%s0 + $0x150] sm:$0xff]
  %v51 = vld [vmem:[%s0 + $0x158] sm:$0xff]
  %v52 = vld [vmem:[%s0 + $0x160] sm:$0xff]
  %v53 = vld [vmem:[%s0 + $0x168] sm:$0xff]
  %v54 = vld [vmem:[%s0 + $0x170] sm:$0xff]
  %v55 = vld [vmem:[%s0 + $0x178] sm:$0xff]
  %v56 = vld [vmem:[%s0 + $0x180] sm:$0xff]
  %v57 = vld [vmem:[%s0 + $0x188] sm:$0xff]
  %v58 = vld [vmem:[%s0 + $0x190] sm:$0xff]
  %v59 = vld [vmem:[%s0 + $0x198] sm:$0xff]
  %v60 = vld [vmem:[%s0 + $0x1a0] sm:$0xff]
  %v61 = vld [vmem:[%s0 + $0x1a8] sm:$0xff]
  %v62 = vld [vmem:[%s0 + $0x1b0] sm:$0xff]
  %v63 = vld [vmem:[%s0 + $0x1b8] sm:$0xff]
  %v64 = vld [vmem:[%s0 + $0x1c0] sm:$0xff]
  %v65 = vld [vmem:[%s0 + $0x1c8] sm:$0xff]
  %v66 = vld [vmem:[%s0 + $0x1d0] sm:$0xff]
  %v67 = vld [vmem:[%s0 + $0x1d8] sm:$0xff]
  %v68 = vld [vmem:[%s0 + $0x1e0] sm:$0xff]
  %v69 = vld [vmem:[%s0 + $0x1e8] sm:$0xff]
  %v70 = vld [vmem:[%s0 + $0x1f0] sm:$0xff]
  %v71 = vld [vmem:[%s0 + $0x1f8] sm:$0xff]
  %v72 = vand.u32 2147483647, %v8
  %v73 = vand.u32 2147483647, %v9
  %v74 = vand.u32 2147483647, %v10
  %v75 = vand.u32 2147483647, %v11
  %v76 = vand.u32 2147483647, %v12
  %v77 = vand.u32 2147483647, %v13
  %v78 = vand.u32 2147483647, %v14
  %v79 = vand.u32 2147483647, %v15
  %v80 = vand.u32 2147483647, %v16
  %v81 = vand.u32 2147483647, %v17
  %v82 = vand.u32 2147483647, %v18
  %v83 = vand.u32 2147483647, %v19
  %v84 = vand.u32 2147483647, %v20
  %v85 = vand.u32 2147483647, %v21
  %v86 = vand.u32 2147483647, %v22
  %v87 = vand.u32 2147483647, %v23
  %v88 = vand.u32 2147483647, %v24
  %v89 = vand.u32 2147483647, %v25
  %v90 = vand.u32 2147483647, %v26
  %v91 = vand.u32 2147483647, %v27
  %v92 = vand.u32 2147483647, %v28
  %v93 = vand.u32 2147483647, %v29
  %v94 = vand.u32 2147483647, %v30
  %v95 = vand.u32 2147483647, %v31
  %v96 = vand.u32 2147483647, %v32
  %v97 = vand.u32 2147483647, %v33
  %v98 = vand.u32 2147483647, %v34
  %v99 = vand.u32 2147483647, %v35
  %v100 = vand.u32 2147483647, %v36
  %v101 = vand.u32 2147483647, %v37
  %v102 = vand.u32 2147483647, %v38
  %v103 = vand.u32 2147483647, %v39
  %v104 = vand.u32 2147483647, %v40
  %v105 = vand.u32 2147483647, %v41
  %v106 = vand.u32 2147483647, %v42
  %v107 = vand.u32 2147483647, %v43
  %v108 = vand.u32 2147483647, %v44
  %v109 = vand.u32 2147483647, %v45
  %v110 = vand.u32 2147483647, %v46
  %v111 = vand.u32 2147483647, %v47
  %v112 = vand.u32 2147483647, %v48
  %v113 = vand.u32 2147483647, %v49
  %v114 = vand.u32 2147483647, %v50
  %v115 = vand.u32 2147483647, %v51
  %v116 = vand.u32 2147483647, %v52
  %v117 = vand.u32 2147483647, %v53
  %v118 = vand.u32 2147483647, %v54
  %v119 = vand.u32 2147483647, %v55
  %v120 = vand.u32 2147483647, %v56
  %v121 = vand.u32 2147483647, %v57
  %v122 = vand.u32 2147483647, %v58
  %v123 = vand.u32 2147483647, %v59
  %v124 = vand.u32 2147483647, %v60
  %v125 = vand.u32 2147483647, %v61
  %v126 = vand.u32 2147483647, %v62
  %v127 = vand.u32 2147483647, %v63
  %v128 = vand.u32 2147483647, %v64
  %v129 = vand.u32 2147483647, %v65
  %v130 = vand.u32 2147483647, %v66
  %v131 = vand.u32 2147483647, %v67
  %v132 = vand.u32 2147483647, %v68
  %v133 = vand.u32 2147483647, %v69
  %v134 = vand.u32 2147483647, %v70
  %v135 = vand.u32 2147483647, %v71
  %vm136 = vcmask 31744
  %v137 = vsel %vm136, %v72, -inf
  %v138 = vsel %vm136, %v73, -inf
  %v139 = vsel %vm136, %v74, -inf
  %v140 = vsel %vm136, %v75, -inf
  %v141 = vsel %vm136, %v76, -inf
  %v142 = vmax.f32 %v137, %v141
  %v143 = vsel %vm136, %v77, -inf
  %v144 = vmax.f32 %v138, %v143
  %v145 = vsel %vm136, %v78, -inf
  %v146 = vmax.f32 %v139, %v145
  %v147 = vsel %vm136, %v79, -inf
  %v148 = vmax.f32 %v140, %v147
  %v149 = vsel %vm136, %v80, -inf
  %v150 = vmax.f32 %v142, %v149
  %v151 = vsel %vm136, %v81, -inf
  %v152 = vmax.f32 %v144, %v151
  %v153 = vsel %vm136, %v82, -inf
  %v154 = vmax.f32 %v146, %v153
  %v155 = vsel %vm136, %v83, -inf
  %v156 = vmax.f32 %v148, %v155
  %v157 = vsel %vm136, %v84, -inf
  %v158 = vmax.f32 %v150, %v157
  %v159 = vsel %vm136, %v85, -inf
  %v160 = vmax.f32 %v152, %v159
  %v161 = vsel %vm136, %v86, -inf
  %v162 = vmax.f32 %v154, %v161
  %v163 = vsel %vm136, %v87, -inf
  %v164 = vmax.f32 %v156, %v163
  %v165 = vsel %vm136, %v88, -inf
  %v166 = vmax.f32 %v158, %v165
  %v167 = vsel %vm136, %v89, -inf
  %v168 = vmax.f32 %v160, %v167
  %v169 = vsel %vm136, %v90, -inf
  %v170 = vmax.f32 %v162, %v169
  %v171 = vsel %vm136, %v91, -inf
  %v172 = vmax.f32 %v164, %v171
  %v173 = vsel %vm136, %v92, -inf
  %v174 = vmax.f32 %v166, %v173
  %v175 = vsel %vm136, %v93, -inf
  %v176 = vmax.f32 %v168, %v175
  %v177 = vsel %vm136, %v94, -inf
  %v178 = vmax.f32 %v170, %v177
  %v179 = vsel %vm136, %v95, -inf
  %v180 = vmax.f32 %v172, %v179
  %v181 = vsel %vm136, %v96, -inf
  %v182 = vmax.f32 %v174, %v181
  %v183 = vsel %vm136, %v97, -inf
  %v184 = vmax.f32 %v176, %v183
  %v185 = vsel %vm136, %v98, -inf
  %v186 = vmax.f32 %v178, %v185
  %v187 = vsel %vm136, %v99, -inf
  %v188 = vmax.f32 %v180, %v187
  %v189 = vsel %vm136, %v100, -inf
  %v190 = vmax.f32 %v182, %v189
  %v191 = vsel %vm136, %v101, -inf
  %v192 = vmax.f32 %v184, %v191
  %v193 = vsel %vm136, %v102, -inf
  %v194 = vmax.f32 %v186, %v193
  %v195 = vsel %vm136, %v103, -inf
  %v196 = vmax.f32 %v188, %v195
  %v197 = vsel %vm136, %v104, -inf
  %v198 = vmax.f32 %v190, %v197
  %v199 = vsel %vm136, %v105, -inf
  %v200 = vmax.f32 %v192, %v199
  %v201 = vsel %vm136, %v106, -inf
  %v202 = vmax.f32 %v194, %v201
  %v203 = vsel %vm136, %v107, -inf
  %v204 = vmax.f32 %v196, %v203
  %v205 = vsel %vm136, %v108, -inf
  %v206 = vmax.f32 %v198, %v205
  %v207 = vsel %vm136, %v109, -inf
  %v208 = vmax.f32 %v200, %v207
  %v209 = vsel %vm136, %v110, -inf
  %v210 = vmax.f32 %v202, %v209
  %v211 = vsel %vm136, %v111, -inf
  %v212 = vmax.f32 %v204, %v211
  %v213 = vsel %vm136, %v112, -inf
  %v214 = vmax.f32 %v206, %v213
  %v215 = vsel %vm136, %v113, -inf
  %v216 = vmax.f32 %v208, %v215
  %v217 = vsel %vm136, %v114, -inf
  %v218 = vmax.f32 %v210, %v217
  %v219 = vsel %vm136, %v115, -inf
  %v220 = vmax.f32 %v212, %v219
  %v221 = vsel %vm136, %v116, -inf
  %v222 = vmax.f32 %v214, %v221
  %v223 = vsel %vm136, %v117, -inf
  %v224 = vmax.f32 %v216, %v223
  %v225 = vsel %vm136, %v118, -inf
  %v226 = vmax.f32 %v218, %v225
  %v227 = vsel %vm136, %v119, -inf
  %v228 = vmax.f32 %v220, %v227
  %v229 = vsel %vm136, %v120, -inf
  %v230 = vmax.f32 %v222, %v229
  %v231 = vsel %vm136, %v121, -inf
  %v232 = vmax.f32 %v224, %v231
  %v233 = vsel %vm136, %v122, -inf
  %v234 = vmax.f32 %v226, %v233
  %v235 = vsel %vm136, %v123, -inf
  %v236 = vmax.f32 %v228, %v235
  %v237 = vsel %vm136, %v124, -inf
  %v238 = vmax.f32 %v230, %v237
  %v239 = vsel %vm136, %v125, -inf
  %v240 = vmax.f32 %v232, %v239
  %v241 = vsel %vm136, %v126, -inf
  %v242 = vmax.f32 %v234, %v241
  %v243 = vsel %vm136, %v127, -inf
  %v244 = vmax.f32 %v236, %v243
  %v245 = vsel %vm136, %v128, -inf
  %v246 = vmax.f32 %v238, %v245
  %v247 = vsel %vm136, %v129, -inf
  %v248 = vmax.f32 %v240, %v247
  %v249 = vsel %vm136, %v130, -inf
  %v250 = vmax.f32 %v242, %v249
  %v251 = vsel %vm136, %v131, -inf
  %v252 = vmax.f32 %v244, %v251
  %v253 = vsel %vm136, %v132, -inf
  %v254 = vmax.f32 %v246, %v253
  %v255 = vsel %vm136, %v133, -inf
  %v256 = vmax.f32 %v248, %v255
  %v257 = vsel %vm136, %v134, -inf
  %v258 = vmax.f32 %v250, %v257
  %v259 = vsel %vm136, %v135, -inf
  %v260 = vmax.f32 %v252, %v259
  %v261 = vmax.f32 %v254, %v256
  %v262 = vmax.f32 %v258, %v260
  %v263 = vmax.f32 %v261, %v262
  %264 = vmax.xlane.f32.xlu0 %v263
  %v265 = vpop.xlane.xlu0 %264
  %v266 = vrot.slane %v265, 4
  %v267 = vmax.f32 %v265, %v266
  %v268 = vrot.slane %v267, 2
  %v269 = vmax.f32 %v267, %v268
  %v270 = vrot.slane %v269, 1
  %v271 = vmax.f32 %v269, %v270
  %s272 = vtos %v271
  %v273 = vstv %s272
  %274 = vst [vmem:[%s1] sm:$0x1] %v273
  // Predicated region
  $region6: #{_unnamed_function_.4} parent=0 // pred_check
    _
  $region7: #{_unnamed_function_.4} parent=0 // pred_check_branch
    %276 = sbr.rel (0) target = $region9
  $region8: #{_unnamed_function_.4} parent=0 // pred_region
    _
  $region9: #{_unnamed_function_.4} parent=0 // pred_fallthru
    _
  // Predicated region
  $region10: #{_unnamed_function_.4} parent=0 // pred_check
    _
  $region11: #{_unnamed_function_.4} parent=0 // pred_check_branch
    %278 = sbr.rel (0) target = $region13
  $region12: #{_unnamed_function_.4} parent=0 // pred_region
    _
  $region13: #{_unnamed_function_.4} parent=0 // pred_fallthru
    _

// kernel: _unnamed_function_.5
$region0: #{_unnamed_function_.5}
  #allocation0 [shape = 'u32[]', space=smem, size = 0x4, offset = 0x4, fixed_abs, tag = 'smem constant byte address 0x4 - core index']
  #allocation1 [shape = 'u32[144,128]{1,0:T(1,128)}', space=vmem, size = 0x12000, scoped, tag = 'internal scratch']
  #allocation2 [shape = 'bf16[512,4]{1,0:T(16,128)(2,1)}', space=vmem, size = 0x20000, scoped, tag = 'scratch operand']
  #allocation3 [shape = 'f32[1,1]{1,0:T(1,128)S(6)}', space=smem, size = 0x200, scoped, tag = 'scoped memory for _unnamed_function_.5']
  %s0 = inlined_call_operand.<no memory space> [shape: f32[1,1], index: 0, kind: input, shape index: {}]
  %s1 = inlined_call_operand.vmem [shape: f32[512,4], index: 1, kind: input, shape index: {}]
  %s2 = inlined_call_operand.vmem [shape: bf16[4,128], index: 2, kind: input, shape index: {}]
  %s3 = inlined_call_operand.vmem [shape: f32[1,128], index: 3, kind: input, shape index: {}]
  %s4 = inlined_call_operand.vmem [shape: f32[1,128], index: 4, kind: input, shape index: {}]
  %s5 = inlined_call_operand.vmem [shape: bf16[512,128], index: 5, kind: output, shape index: {0}]
  %s6 = inlined_call_operand.vmem [shape: f32[1,1,128], index: 6, kind: output, shape index: {1}]
  %7 = xla_tuple %s5, %s6
  %s8 = sld [smem:[#allocation0]]
  $region42: #{_unnamed_function_.5} parent=0
    _
  %s10 = ssub.s32 1, %s8
  %s11 = scalar_select 0, %s10, %s8
  %12 = sst [smem:[#allocation3]] %s0
  // Predicated region
  $region2: #{_unnamed_function_.5} parent=0 // pred_check
    _
  $region3: #{_unnamed_function_.5} parent=0 // pred_check_branch
    %14 = sbr.rel (0) target = $region5
  $region4: #{_unnamed_function_.5} parent=0 // pred_region
    _
  $region5: #{_unnamed_function_.5} parent=0 // pred_fallthru
    _
  // Predicated region
  $region6: #{_unnamed_function_.5} parent=0 // pred_check
    _
  $region7: #{_unnamed_function_.5} parent=0 // pred_check_branch
    %16 = sbr.rel (0) target = $region9
  $region8: #{_unnamed_function_.5} parent=0 // pred_region
    _
  $region9: #{_unnamed_function_.5} parent=0 // pred_fallthru
    _
  // Predicated region
  $region10: #{_unnamed_function_.5} parent=0 // pred_check
    _
  $region11: #{_unnamed_function_.5} parent=0 // pred_check_branch
    %18 = sbr.rel (0) target = $region13
  $region12: #{_unnamed_function_.5} parent=0 // pred_region
    _
  $region13: #{_unnamed_function_.5} parent=0 // pred_fallthru
    _
  // Predicated region
  $region14: #{_unnamed_function_.5} parent=0 // pred_check
    _
  $region15: #{_unnamed_function_.5} parent=0 // pred_check_branch
    %20 = sbr.rel (0) target = $region17
  $region16: #{_unnamed_function_.5} parent=0 // pred_region
    _
  $region17: #{_unnamed_function_.5} parent=0 // pred_fallthru
    _
  // Predicated region
  $region18: #{_unnamed_function_.5} parent=0 // pred_check
    _
  $region19: #{_unnamed_function_.5} parent=0 // pred_check_branch
    %22 = sbr.rel (0) target = $region21
  $region20: #{_unnamed_function_.5} parent=0 // pred_region
    _
  $region21: #{_unnamed_function_.5} parent=0 // pred_fallthru
    _
  %s24 = sld [smem:[#allocation3]]
  %p25 = scmp.eq.s32.totalorder 0, 0
  // Predicated region
  $region22: #{_unnamed_function_.5} parent=0 // pred_check
    %p26 = pneg %p25
  $region23: #{_unnamed_function_.5} parent=0 // pred_check_branch
    %28 = sbr.rel (%p26) target = $region25
  $region24: #{_unnamed_function_.5} parent=0 // pred_region
    %v29 = vstv %s24
    %v30 = vrcp.pop %v29
    %s31 = vtos %v30
    %v32 = vld [vmem:[%s1] sm:$0xff]
    %v33 = vld [vmem:[%s1 + $0x8] sm:$0xff]
    %v34 = vld [vmem:[%s1 + $0x10] sm:$0xff]
    %v35 = vld [vmem:[%s1 + $0x18] sm:$0xff]
    %v36 = vld [vmem:[%s1 + $0x20] sm:$0xff]
    %v37 = vld [vmem:[%s1 + $0x28] sm:$0xff]
    %v38 = vld [vmem:[%s1 + $0x30] sm:$0xff]
    %v39 = vld [vmem:[%s1 + $0x38] sm:$0xff]
    %v40 = vld [vmem:[%s1 + $0x40] sm:$0xff]
    %v41 = vld [vmem:[%s1 + $0x48] sm:$0xff]
    %v42 = vld [vmem:[%s1 + $0x50] sm:$0xff]
    %v43 = vld [vmem:[%s1 + $0x58] sm:$0xff]
    %v44 = vld [vmem:[%s1 + $0x60] sm:$0xff]
    %v45 = vld [vmem:[%s1 + $0x68] sm:$0xff]
    %v46 = vld [vmem:[%s1 + $0x70] sm:$0xff]
    %v47 = vld [vmem:[%s1 + $0x78] sm:$0xff]
    %v48 = vld [vmem:[%s1 + $0x80] sm:$0xff]
    %v49 = vld [vmem:[%s1 + $0x88] sm:$0xff]
    %v50 = vld [vmem:[%s1 + $0x90] sm:$0xff]
    %v51 = vld [vmem:[%s1 + $0x98] sm:$0xff]
    %v52 = vld [vmem:[%s1 + $0xa0] sm:$0xff]
    %v53 = vld [vmem:[%s1 + $0xa8] sm:$0xff]
    %v54 = vld [vmem:[%s1 + $0xb0] sm:$0xff]
    %v55 = vld [vmem:[%s1 + $0xb8] sm:$0xff]
    %v56 = vld [vmem:[%s1 + $0xc0] sm:$0xff]
    %v57 = vld [vmem:[%s1 + $0xc8] sm:$0xff]
    %v58 = vld [vmem:[%s1 + $0xd0] sm:$0xff]
    %v59 = vld [vmem:[%s1 + $0xd8] sm:$0xff]
    %v60 = vld [vmem:[%s1 + $0xe0] sm:$0xff]
    %v61 = vld [vmem:[%s1 + $0xe8] sm:$0xff]
    %v62 = vld [vmem:[%s1 + $0xf0] sm:$0xff]
    %v63 = vld [vmem:[%s1 + $0xf8] sm:$0xff]
    %v64 = vld [vmem:[%s1 + $0x100] sm:$0xff]
    %v65 = vld [vmem:[%s1 + $0x108] sm:$0xff]
    %v66 = vld [vmem:[%s1 + $0x110] sm:$0xff]
    %v67 = vld [vmem:[%s1 + $0x118] sm:$0xff]
    %v68 = vld [vmem:[%s1 + $0x120] sm:$0xff]
    %v69 = vld [vmem:[%s1 + $0x128] sm:$0xff]
    %v70 = vld [vmem:[%s1 + $0x130] sm:$0xff]
    %v71 = vld [vmem:[%s1 + $0x138] sm:$0xff]
    %v72 = vld [vmem:[%s1 + $0x140] sm:$0xff]
    %v73 = vld [vmem:[%s1 + $0x148] sm:$0xff]
    %v74 = vld [vmem:[%s1 + $0x150] sm:$0xff]
    %v75 = vld [vmem:[%s1 + $0x158] sm:$0xff]
    %v76 = vld [vmem:[%s1 + $0x160] sm:$0xff]
    %v77 = vld [vmem:[%s1 + $0x168] sm:$0xff]
    %v78 = vld [vmem:[%s1 + $0x170] sm:$0xff]
    %v79 = vld [vmem:[%s1 + $0x178] sm:$0xff]
    %v80 = vld [vmem:[%s1 + $0x180] sm:$0xff]
    %v81 = vld [vmem:[%s1 + $0x188] sm:$0xff]
    %v82 = vld [vmem:[%s1 + $0x190] sm:$0xff]
    %v83 = vld [vmem:[%s1 + $0x198] sm:$0xff]
    %v84 = vld [vmem:[%s1 + $0x1a0] sm:$0xff]
    %v85 = vld [vmem:[%s1 + $0x1a8] sm:$0xff]
    %v86 = vld [vmem:[%s1 + $0x1b0] sm:$0xff]
    %v87 = vld [vmem:[%s1 + $0x1b8] sm:$0xff]
    %v88 = vld [vmem:[%s1 + $0x1c0] sm:$0xff]
    %v89 = vld [vmem:[%s1 + $0x1c8] sm:$0xff]
    %v90 = vld [vmem:[%s1 + $0x1d0] sm:$0xff]
    %v91 = vld [vmem:[%s1 + $0x1d8] sm:$0xff]
    %v92 = vld [vmem:[%s1 + $0x1e0] sm:$0xff]
    %v93 = vld [vmem:[%s1 + $0x1e8] sm:$0xff]
    %v94 = vld [vmem:[%s1 + $0x1f0] sm:$0xff]
    %v95 = vld [vmem:[%s1 + $0x1f8] sm:$0xff]
    %v96 = vstv %s31
    %v97 = vmul.f32 %v32, %v96
    %v98 = vmul.f32 %v33, %v96
    %v99 = vmul.f32 %v34, %v96
    %v100 = vmul.f32 %v35, %v96
    %v101 = vmul.f32 %v36, %v96
    %v102 = vmul.f32 %v37, %v96
    %v103 = vmul.f32 %v38, %v96
    %v104 = vmul.f32 %v39, %v96
    %v105 = vmul.f32 %v40, %v96
    %v106 = vmul.f32 %v41, %v96
    %v107 = vmul.f32 %v42, %v96
    %v108 = vmul.f32 %v43, %v96
    %v109 = vmul.f32 %v44, %v96
    %v110 = vmul.f32 %v45, %v96
    %v111 = vmul.f32 %v46, %v96
    %v112 = vmul.f32 %v47, %v96
    %v113 = vmul.f32 %v48, %v96
    %v114 = vmul.f32 %v49, %v96
    %v115 = vmul.f32 %v50, %v96
    %v116 = vmul.f32 %v51, %v96
    %v117 = vmul.f32 %v52, %v96
    %v118 = vmul.f32 %v53, %v96
    %v119 = vmul.f32 %v54, %v96
    %v120 = vmul.f32 %v55, %v96
    %v121 = vmul.f32 %v56, %v96
    %v122 = vmul.f32 %v57, %v96
    %v123 = vmul.f32 %v58, %v96
    %v124 = vmul.f32 %v59, %v96
    %v125 = vmul.f32 %v60, %v96
    %v126 = vmul.f32 %v61, %v96
    %v127 = vmul.f32 %v62, %v96
    %v128 = vmul.f32 %v63, %v96
    %v129 = vmul.f32 %v64, %v96
    %v130 = vmul.f32 %v65, %v96
    %v131 = vmul.f32 %v66, %v96
    %v132 = vmul.f32 %v67, %v96
    %v133 = vmul.f32 %v68, %v96
    %v134 = vmul.f32 %v69, %v96
    %v135 = vmul.f32 %v70, %v96
    %v136 = vmul.f32 %v71, %v96
    %v137 = vmul.f32 %v72, %v96
    %v138 = vmul.f32 %v73, %v96
    %v139 = vmul.f32 %v74, %v96
    %v140 = vmul.f32 %v75, %v96
    %v141 = vmul.f32 %v76, %v96
    %v142 = vmul.f32 %v77, %v96
    %v143 = vmul.f32 %v78, %v96
    %v144 = vmul.f32 %v79, %v96
    %v145 = vmul.f32 %v80, %v96
    %v146 = vmul.f32 %v81, %v96
    %v147 = vmul.f32 %v82, %v96
    %v148 = vmul.f32 %v83, %v96
    %v149 = vmul.f32 %v84, %v96
    %v150 = vmul.f32 %v85, %v96
    %v151 = vmul.f32 %v86, %v96
    %v152 = vmul.f32 %v87, %v96
    %v153 = vmul.f32 %v88, %v96
    %v154 = vmul.f32 %v89, %v96
    %v155 = vmul.f32 %v90, %v96
    %v156 = vmul.f32 %v91, %v96
    %v157 = vmul.f32 %v92, %v96
    %v158 = vmul.f32 %v93, %v96
    %v159 = vmul.f32 %v94, %v96
    %v160 = vmul.f32 %v95, %v96
    %v161 = vround.ne.pseudo %v97
    %v162 = vround.ne.pseudo %v98
    %v163 = vround.ne.pseudo %v99
    %v164 = vround.ne.pseudo %v100
    %v165 = vround.ne.pseudo %v101
    %v166 = vround.ne.pseudo %v102
    %v167 = vround.ne.pseudo %v103
    %v168 = vround.ne.pseudo %v104
    %v169 = vround.ne.pseudo %v105
    %v170 = vround.ne.pseudo %v106
    %v171 = vround.ne.pseudo %v107
    %v172 = vround.ne.pseudo %v108
    %v173 = vround.ne.pseudo %v109
    %v174 = vround.ne.pseudo %v110
    %v175 = vround.ne.pseudo %v111
    %v176 = vround.ne.pseudo %v112
    %v177 = vround.ne.pseudo %v113
    %v178 = vround.ne.pseudo %v114
    %v179 = vround.ne.pseudo %v115
    %v180 = vround.ne.pseudo %v116
    %v181 = vround.ne.pseudo %v117
    %v182 = vround.ne.pseudo %v118
    %v183 = vround.ne.pseudo %v119
    %v184 = vround.ne.pseudo %v120
    %v185 = vround.ne.pseudo %v121
    %v186 = vround.ne.pseudo %v122
    %v187 = vround.ne.pseudo %v123
    %v188 = vround.ne.pseudo %v124
    %v189 = vround.ne.pseudo %v125
    %v190 = vround.ne.pseudo %v126
    %v191 = vround.ne.pseudo %v127
    %v192 = vround.ne.pseudo %v128
    %v193 = vround.ne.pseudo %v129
    %v194 = vround.ne.pseudo %v130
    %v195 = vround.ne.pseudo %v131
    %v196 = vround.ne.pseudo %v132
    %v197 = vround.ne.pseudo %v133
    %v198 = vround.ne.pseudo %v134
    %v199 = vround.ne.pseudo %v135
    %v200 = vround.ne.pseudo %v136
    %v201 = vround.ne.pseudo %v137
    %v202 = vround.ne.pseudo %v138
    %v203 = vround.ne.pseudo %v139
    %v204 = vround.ne.pseudo %v140
    %v205 = vround.ne.pseudo %v141
    %v206 = vround.ne.pseudo %v142
    %v207 = vround.ne.pseudo %v143
    %v208 = vround.ne.pseudo %v144
    %v209 = vround.ne.pseudo %v145
    %v210 = vround.ne.pseudo %v146
    %v211 = vround.ne.pseudo %v147
    %v212 = vround.ne.pseudo %v148
    %v213 = vround.ne.pseudo %v149
    %v214 = vround.ne.pseudo %v150
    %v215 = vround.ne.pseudo %v151
    %v216 = vround.ne.pseudo %v152
    %v217 = vround.ne.pseudo %v153
    %v218 = vround.ne.pseudo %v154
    %v219 = vround.ne.pseudo %v155
    %v220 = vround.ne.pseudo %v156
    %v221 = vround.ne.pseudo %v157
    %v222 = vround.ne.pseudo %v158
    %v223 = vround.ne.pseudo %v159
    %v224 = vround.ne.pseudo %v160
    %v225 = vmax.f32 %v161, -127.0
    %v226 = vmax.f32 %v162, -127.0
    %v227 = vmax.f32 %v163, -127.0
    %v228 = vmax.f32 %v164, -127.0
    %v229 = vmax.f32 %v165, -127.0
    %v230 = vmax.f32 %v166, -127.0
    %v231 = vmax.f32 %v167, -127.0
    %v232 = vmax.f32 %v168, -127.0
    %v233 = vmax.f32 %v169, -127.0
    %v234 = vmax.f32 %v170, -127.0
    %v235 = vmax.f32 %v171, -127.0
    %v236 = vmax.f32 %v172, -127.0
    %v237 = vmax.f32 %v173, -127.0
    %v238 = vmax.f32 %v174, -127.0
    %v239 = vmax.f32 %v175, -127.0
    %v240 = vmax.f32 %v176, -127.0
    %v241 = vmax.f32 %v177, -127.0
    %v242 = vmax.f32 %v178, -127.0
    %v243 = vmax.f32 %v179, -127.0
    %v244 = vmax.f32 %v180, -127.0
    %v245 = vmax.f32 %v181, -127.0
    %v246 = vmax.f32 %v182, -127.0
    %v247 = vmax.f32 %v183, -127.0
    %v248 = vmax.f32 %v184, -127.0
    %v249 = vmax.f32 %v185, -127.0
    %v250 = vmax.f32 %v186, -127.0
    %v251 = vmax.f32 %v187, -127.0
    %v252 = vmax.f32 %v188, -127.0
    %v253 = vmax.f32 %v189, -127.0
    %v254 = vmax.f32 %v190, -127.0
    %v255 = vmax.f32 %v191, -127.0
    %v256 = vmax.f32 %v192, -127.0
    %v257 = vmax.f32 %v193, -127.0
    %v258 = vmax.f32 %v194, -127.0
    %v259 = vmax.f32 %v195, -127.0
    %v260 = vmax.f32 %v196, -127.0
    %v261 = vmax.f32 %v197, -127.0
    %v262 = vmax.f32 %v198, -127.0
    %v263 = vmax.f32 %v199, -127.0
    %v264 = vmax.f32 %v200, -127.0
    %v265 = vmax.f32 %v201, -127.0
    %v266 = vmax.f32 %v202, -127.0
    %v267 = vmax.f32 %v203, -127.0
    %v268 = vmax.f32 %v204, -127.0
    %v269 = vmax.f32 %v205, -127.0
    %v270 = vmax.f32 %v206, -127.0
    %v271 = vmax.f32 %v207, -127.0
    %v272 = vmax.f32 %v208, -127.0
    %v273 = vmax.f32 %v209, -127.0
    %v274 = vmax.f32 %v210, -127.0
    %v275 = vmax.f32 %v211, -127.0
    %v276 = vmax.f32 %v212, -127.0
    %v277 = vmax.f32 %v213, -127.0
    %v278 = vmax.f32 %v214, -127.0
    %v279 = vmax.f32 %v215, -127.0
    %v280 = vmax.f32 %v216, -127.0
    %v281 = vmax.f32 %v217, -127.0
    %v282 = vmax.f32 %v218, -127.0
    %v283 = vmax.f32 %v219, -127.0
    %v284 = vmax.f32 %v220, -127.0
    %v285 = vmax.f32 %v221, -127.0
    %v286 = vmax.f32 %v222, -127.0
    %v287 = vmax.f32 %v223, -127.0
    %v288 = vmax.f32 %v224, -127.0
    %v289 = vmin.f32 %v225, 127.0
    %v290 = vmin.f32 %v226, 127.0
    %v291 = vmin.f32 %v227, 127.0
    %v292 = vmin.f32 %v228, 127.0
    %v293 = vmin.f32 %v229, 127.0
    %v294 = vmin.f32 %v230, 127.0
    %v295 = vmin.f32 %v231, 127.0
    %v296 = vmin.f32 %v232, 127.0
    %v297 = vmin.f32 %v233, 127.0
    %v298 = vmin.f32 %v234, 127.0
    %v299 = vmin.f32 %v235, 127.0
    %v300 = vmin.f32 %v236, 127.0
    %v301 = vmin.f32 %v237, 127.0
    %v302 = vmin.f32 %v238, 127.0
    %v303 = vmin.f32 %v239, 127.0
    %v304 = vmin.f32 %v240, 127.0
    %v305 = vmin.f32 %v241, 127.0
    %v306 = vmin.f32 %v242, 127.0
    %v307 = vmin.f32 %v243, 127.0
    %v308 = vmin.f32 %v244, 127.0
    %v309 = vmin.f32 %v245, 127.0
    %v310 = vmin.f32 %v246, 127.0
    %v311 = vmin.f32 %v247, 127.0
    %v312 = vmin.f32 %v248, 127.0
    %v313 = vmin.f32 %v249, 127.0
    %v314 = vmin.f32 %v250, 127.0
    %v315 = vmin.f32 %v251, 127.0
    %v316 = vmin.f32 %v252, 127.0
    %v317 = vmin.f32 %v253, 127.0
    %v318 = vmin.f32 %v254, 127.0
    %v319 = vmin.f32 %v255, 127.0
    %v320 = vmin.f32 %v256, 127.0
    %v321 = vmin.f32 %v257, 127.0
    %v322 = vmin.f32 %v258, 127.0
    %v323 = vmin.f32 %v259, 127.0
    %v324 = vmin.f32 %v260, 127.0
    %v325 = vmin.f32 %v261, 127.0
    %v326 = vmin.f32 %v262, 127.0
    %v327 = vmin.f32 %v263, 127.0
    %v328 = vmin.f32 %v264, 127.0
    %v329 = vmin.f32 %v265, 127.0
    %v330 = vmin.f32 %v266, 127.0
    %v331 = vmin.f32 %v267, 127.0
    %v332 = vmin.f32 %v268, 127.0
    %v333 = vmin.f32 %v269, 127.0
    %v334 = vmin.f32 %v270, 127.0
    %v335 = vmin.f32 %v271, 127.0
    %v336 = vmin.f32 %v272, 127.0
    %v337 = vmin.f32 %v273, 127.0
    %v338 = vmin.f32 %v274, 127.0
    %v339 = vmin.f32 %v275, 127.0
    %v340 = vmin.f32 %v276, 127.0
    %v341 = vmin.f32 %v277, 127.0
    %v342 = vmin.f32 %v278, 127.0
    %v343 = vmin.f32 %v279, 127.0
    %v344 = vmin.f32 %v280, 127.0
    %v345 = vmin.f32 %v281, 127.0
    %v346 = vmin.f32 %v282, 127.0
    %v347 = vmin.f32 %v283, 127.0
    %v348 = vmin.f32 %v284, 127.0
    %v349 = vmin.f32 %v285, 127.0
    %v350 = vmin.f32 %v286, 127.0
    %v351 = vmin.f32 %v287, 127.0
    %v352 = vmin.f32 %v288, 127.0
    %v353 = vpack.c.bf16 %v290, %v289
    %v354 = vpack.c.bf16 %v292, %v291
    %v355 = vpack.c.bf16 %v294, %v293
    %v356 = vpack.c.bf16 %v296, %v295
    %v357 = vpack.c.bf16 %v298, %v297
    %v358 = vpack.c.bf16 %v300, %v299
    %v359 = vpack.c.bf16 %v302, %v301
    %v360 = vpack.c.bf16 %v304, %v303
    %v361 = vpack.c.bf16 %v306, %v305
    %v362 = vpack.c.bf16 %v308, %v307
    %v363 = vpack.c.bf16 %v310, %v309
    %v364 = vpack.c.bf16 %v312, %v311
    %v365 = vpack.c.bf16 %v314, %v313
    %v366 = vpack.c.bf16 %v316, %v315
    %v367 = vpack.c.bf16 %v318, %v317
    %v368 = vpack.c.bf16 %v320, %v319
    %v369 = vpack.c.bf16 %v322, %v321
    %v370 = vpack.c.bf16 %v324, %v323
    %v371 = vpack.c.bf16 %v326, %v325
    %v372 = vpack.c.bf16 %v328, %v327
    %v373 = vpack.c.bf16 %v330, %v329
    %v374 = vpack.c.bf16 %v332, %v331
    %v375 = vpack.c.bf16 %v334, %v333
    %v376 = vpack.c.bf16 %v336, %v335
    %v377 = vpack.c.bf16 %v338, %v337
    %v378 = vpack.c.bf16 %v340, %v339
    %v379 = vpack.c.bf16 %v342, %v341
    %v380 = vpack.c.bf16 %v344, %v343
    %v381 = vpack.c.bf16 %v346, %v345
    %v382 = vpack.c.bf16 %v348, %v347
    %v383 = vpack.c.bf16 %v350, %v349
    %v384 = vpack.c.bf16 %v352, %v351
    %vm385 = vcmask 31744
    %386 = vst.msk [vmem:[#allocation2] sm:$0xff] %vm385, %v353
    %387 = vst.msk [vmem:[#allocation2 + $0x8] sm:$0xff] %vm385, %v354
    %388 = vst.msk [vmem:[#allocation2 + $0x10] sm:$0xff] %vm385, %v355
    %389 = vst.msk [vmem:[#allocation2 + $0x18] sm:$0xff] %vm385, %v356
    %390 = vst.msk [vmem:[#allocation2 + $0x20] sm:$0xff] %vm385, %v357
    %391 = vst.msk [vmem:[#allocation2 + $0x28] sm:$0xff] %vm385, %v358
    %392 = vst.msk [vmem:[#allocation2 + $0x30] sm:$0xff] %vm385, %v359
    %393 = vst.msk [vmem:[#allocation2 + $0x38] sm:$0xff] %vm385, %v360
    %394 = vst.msk [vmem:[#allocation2 + $0x40] sm:$0xff] %vm385, %v361
    %395 = vst.msk [vmem:[#allocation2 + $0x48] sm:$0xff] %vm385, %v362
    %396 = vst.msk [vmem:[#allocation2 + $0x50] sm:$0xff] %vm385, %v363
    %397 = vst.msk [vmem:[#allocation2 + $0x58] sm:$0xff] %vm385, %v364
    %398 = vst.msk [vmem:[#allocation2 + $0x60] sm:$0xff] %vm385, %v365
    %399 = vst.msk [vmem:[#allocation2 + $0x68] sm:$0xff] %vm385, %v366
    %400 = vst.msk [vmem:[#allocation2 + $0x70] sm:$0xff] %vm385, %v367
    %401 = vst.msk [vmem:[#allocation2 + $0x78] sm:$0xff] %vm385, %v368
    %402 = vst.msk [vmem:[#allocation2 + $0x80] sm:$0xff] %vm385, %v369
    %403 = vst.msk [vmem:[#allocation2 + $0x88] sm:$0xff] %vm385, %v370
    %404 = vst.msk [vmem:[#allocation2 + $0x90] sm:$0xff] %vm385, %v371
    %405 = vst.msk [vmem:[#allocation2 + $0x98] sm:$0xff] %vm385, %v372
    %406 = vst.msk [vmem:[#allocation2 + $0xa0] sm:$0xff] %vm385, %v373
    %407 = vst.msk [vmem:[#allocation2 + $0xa8] sm:$0xff] %vm385, %v374
    %408 = vst.msk [vmem:[#allocation2 + $0xb0] sm:$0xff] %vm385, %v375
    %409 = vst.msk [vmem:[#allocation2 + $0xb8] sm:$0xff] %vm385, %v376
    %410 = vst.msk [vmem:[#allocation2 + $0xc0] sm:$0xff] %vm385, %v377
    %411 = vst.msk [vmem:[#allocation2 + $0xc8] sm:$0xff] %vm385, %v378
    %412 = vst.msk [vmem:[#allocation2 + $0xd0] sm:$0xff] %vm385, %v379
    %413 = vst.msk [vmem:[#allocation2 + $0xd8] sm:$0xff] %vm385, %v380
    %414 = vst.msk [vmem:[#allocation2 + $0xe0] sm:$0xff] %vm385, %v381
    %415 = vst.msk [vmem:[#allocation2 + $0xe8] sm:$0xff] %vm385, %v382
    %416 = vst.msk [vmem:[#allocation2 + $0xf0] sm:$0xff] %vm385, %v383
    %417 = vst.msk [vmem:[#allocation2 + $0xf8] sm:$0xff] %vm385, %v384
    %418 = vst [vmem:[%s6] sm:$0x1] 0.0
  $region25: #{_unnamed_function_.5} parent=0 // pred_fallthru
    _
  %v419 = vld [vmem:[#allocation2] sm:$0xff]
  %v420 = vld [vmem:[#allocation2 + $0x8] sm:$0xff]
  %v421 = vld [vmem:[#allocation2 + $0x10] sm:$0xff]
  %v422 = vld [vmem:[#allocation2 + $0x18] sm:$0xff]
  %v423 = vld [vmem:[#allocation2 + $0x20] sm:$0xff]
  %v424 = vld [vmem:[#allocation2 + $0x28] sm:$0xff]
  %v425 = vld [vmem:[#allocation2 + $0x30] sm:$0xff]
  %v426 = vld [vmem:[#allocation2 + $0x38] sm:$0xff]
  %v427 = vld [vmem:[#allocation2 + $0x40] sm:$0xff]
  %v428 = vld [vmem:[#allocation2 + $0x48] sm:$0xff]
  %v429 = vld [vmem:[#allocation2 + $0x50] sm:$0xff]
  %v430 = vld [vmem:[#allocation2 + $0x58] sm:$0xff]
  %v431 = vld [vmem:[#allocation2 + $0x60] sm:$0xff]
  %v432 = vld [vmem:[#allocation2 + $0x68] sm:$0xff]
  %v433 = vld [vmem:[#allocation2 + $0x70] sm:$0xff]
  %v434 = vld [vmem:[#allocation2 + $0x78] sm:$0xff]
  %v435 = vld [vmem:[#allocation2 + $0x80] sm:$0xff]
  %v436 = vld [vmem:[#allocation2 + $0x88] sm:$0xff]
  %v437 = vld [vmem:[#allocation2 + $0x90] sm:$0xff]
  %v438 = vld [vmem:[#allocation2 + $0x98] sm:$0xff]
  %v439 = vld [vmem:[#allocation2 + $0xa0] sm:$0xff]
  %v440 = vld [vmem:[#allocation2 + $0xa8] sm:$0xff]
  %v441 = vld [vmem:[#allocation2 + $0xb0] sm:$0xff]
  %v442 = vld [vmem:[#allocation2 + $0xb8] sm:$0xff]
  %v443 = vld [vmem:[#allocation2 + $0xc0] sm:$0xff]
  %v444 = vld [vmem:[#allocation2 + $0xc8] sm:$0xff]
  %v445 = vld [vmem:[#allocation2 + $0xd0] sm:$0xff]
  %v446 = vld [vmem:[#allocation2 + $0xd8] sm:$0xff]
  %v447 = vld [vmem:[#allocation2 + $0xe0] sm:$0xff]
  %v448 = vld [vmem:[#allocation2 + $0xe8] sm:$0xff]
  %v449 = vld [vmem:[#allocation2 + $0xf0] sm:$0xff]
  %v450 = vld [vmem:[#allocation2 + $0xf8] sm:$0xff]
  %v451 = vld [vmem:[%s2] sm:$0x3]
  %vm452 = vcmask 31744
  %v454 = vsel %vm452, %v419, 0
  %v457 = vsel %vm452, %v420, 0
  %v460 = vsel %vm452, %v421, 0
  %v463 = vsel %vm452, %v422, 0
  %v466 = vsel %vm452, %v423, 0
  %v469 = vsel %vm452, %v424, 0
  %v472 = vsel %vm452, %v425, 0
  %v475 = vsel %vm452, %v426, 0
  %v478 = vsel %vm452, %v427, 0
  %v481 = vsel %vm452, %v428, 0
  %v484 = vsel %vm452, %v429, 0
  %v487 = vsel %vm452, %v430, 0
  %v490 = vsel %vm452, %v431, 0
  %v493 = vsel %vm452, %v432, 0
  %v496 = vsel %vm452, %v433, 0
  %v499 = vsel %vm452, %v434, 0
  %v502 = vsel %vm452, %v435, 0
  %v505 = vsel %vm452, %v436, 0
  %v508 = vsel %vm452, %v437, 0
  %v511 = vsel %vm452, %v438, 0
  %v514 = vsel %vm452, %v439, 0
  %v517 = vsel %vm452, %v440, 0
  %v520 = vsel %vm452, %v441, 0
  %v523 = vsel %vm452, %v442, 0
  %v526 = vsel %vm452, %v443, 0
  %v529 = vsel %vm452, %v444, 0
  %v532 = vsel %vm452, %v445, 0
  %v535 = vsel %vm452, %v446, 0
  %v538 = vsel %vm452, %v447, 0
  %v541 = vsel %vm452, %v448, 0
  %v544 = vsel %vm452, %v449, 0
  %v547 = vsel %vm452, %v450, 0
  %vm549 = vcmask 1041408
  %v551 = vsel %vm549, %v451, 0
  %553 = vmatprep.subr.bf16.mxu0 0
  %554 = vmatpush1.bf16.msra.mxu0 %v551
  %555 = vmatprep.subr.bf16.mxu0 0
  %556 = vmatpush1.bf16.msra.mxu0 0
  %557 = vmatprep.subr.bf16.mxu0 0
  %558 = vmatpush1.bf16.msra.mxu0 0
  %559 = vmatprep.subr.bf16.mxu0 0
  %560 = vmatpush1.bf16.msra.mxu0 0
  %561 = vmatprep.subr.bf16.mxu0 0
  %562 = vmatpush1.bf16.msra.mxu0 0
  %563 = vmatprep.subr.bf16.mxu0 0
  %564 = vmatpush1.bf16.msra.mxu0 0
  %565 = vmatprep.subr.bf16.mxu0 0
  %566 = vmatpush1.bf16.msra.mxu0 0
  %567 = vmatprep.subr.bf16.mxu0 0
  %568 = vmatpush1.bf16.msra.mxu0 0
  %569 = vmatprep.subr.bf16.mxu0 0
  %570 = vmatpush1.bf16.msra.mxu0 0
  %571 = vmatprep.subr.bf16.mxu0 0
  %572 = vmatpush1.bf16.msra.mxu0 0
  %573 = vmatprep.subr.bf16.mxu0 0
  %574 = vmatpush1.bf16.msra.mxu0 0
  %575 = vmatprep.subr.bf16.mxu0 0
  %576 = vmatpush1.bf16.msra.mxu0 0
  %577 = vmatprep.subr.bf16.mxu0 0
  %578 = vmatpush1.bf16.msra.mxu0 0
  %579 = vmatprep.subr.bf16.mxu0 0
  %580 = vmatpush1.bf16.msra.mxu0 0
  %581 = vmatprep.subr.bf16.mxu0 0
  %582 = vmatpush1.bf16.msra.mxu0 0
  %583 = vmatprep.subr.bf16.mxu0 0
  %584 = vmatpush1.bf16.msra.mxu0 0
  %585 = vmatprep.mubr.bf16.mxu0 0
  %586 = vmatmul.mubr.bf16.gmra.mrb[0].mxu0 %v454
  %v587 = vpop.f32.mrb[0].mxu0
  %v588 = vadd.f32 0.0, %v587
  %v589 = vpop.f32.mrb[0].mxu0
  %v590 = vpop.f32.mrb[0].mxu0
  %v591 = vadd.f32 0.0, %v590
  %v592 = vpop.f32.mrb[0].mxu0
  %593 = vmatprep.mubr.bf16.mxu0 0
  %594 = vmatmul.mubr.bf16.gmra.mrb[0].mxu0 %v457
  %v595 = vpop.f32.mrb[0].mxu0
  %v596 = vadd.f32 0.0, %v595
  %v597 = vpop.f32.mrb[0].mxu0
  %v598 = vpop.f32.mrb[0].mxu0
  %v599 = vadd.f32 0.0, %v598
  %v600 = vpop.f32.mrb[0].mxu0
  %601 = vmatprep.mubr.bf16.mxu0 0
  %602 = vmatmul.mubr.bf16.gmra.mrb[0].mxu0 %v460
  %v603 = vpop.f32.mrb[0].mxu0
  %v604 = vadd.f32 0.0, %v603
  %v605 = vpop.f32.mrb[0].mxu0
  %v606 = vpop.f32.mrb[0].mxu0
  %v607 = vadd.f32 0.0, %v606
  %v608 = vpop.f32.mrb[0].mxu0
  %609 = vmatprep.mubr.bf16.mxu0 0
  %610 = vmatmul.mubr.bf16.gmra.mrb[0].mxu0 %v463
  %v611 = vpop.f32.mrb[0].mxu0
  %v612 = vadd.f32 0.0, %v611
  %v613 = vpop.f32.mrb[0].mxu0
  %v614 = vpop.f32.mrb[0].mxu0
  %v615 = vadd.f32 0.0, %v614
  %v616 = vpop.f32.mrb[0].mxu0
  %617 = vmatprep.mubr.bf16.mxu0 0
  %618 = vmatmul.mubr.bf16.gmra.mrb[0].mxu0 %v466
  %v619 = vpop.f32.mrb[0].mxu0
  %v620 = vadd.f32 0.0, %v619
  %v621 = vpop.f32.mrb[0].mxu0
  %v622 = vpop.f32.mrb[0].mxu0
  %v623 = vadd.f32 0.0, %v622
  %v624 = vpop.f32.mrb[0].mxu0
  %625 = vmatprep.mubr.bf16.mxu0 0
  %626 = vmatmul.mubr.bf16.gmra.mrb[0].mxu0 %v469
  %v627 = vpop.f32.mrb[0].mxu0
  %v628 = vadd.f32 0.0, %v627
  %v629 = vpop.f32.mrb[0].mxu0
  %v630 = vpop.f32.mrb[0].mxu0
  %v631 = vadd.f32 0.0, %v630
  %v632 = vpop.f32.mrb[0].mxu0
  %633 = vmatprep.mubr.bf16.mxu0 0
  %634 = vmatmul.mubr.bf16.gmra.mrb[0].mxu0 %v472
  %v635 = vpop.f32.mrb[0].mxu0
  %v636 = vadd.f32 0.0, %v635
  %v637 = vpop.f32.mrb[0].mxu0
  %v638 = vpop.f32.mrb[0].mxu0
  %v639 = vadd.f32 0.0, %v638
  %v640 = vpop.f32.mrb[0].mxu0
  %641 = vmatprep.mubr.bf16.mxu0 0
  %642 = vmatmul.mubr.bf16.gmra.mrb[0].mxu0 %v475
  %v643 = vpop.f32.mrb[0].mxu0
  %v644 = vadd.f32 0.0, %v643
  %v645 = vpop.f32.mrb[0].mxu0
  %v646 = vpop.f32.mrb[0].mxu0
  %v647 = vadd.f32 0.0, %v646
  %v648 = vpop.f32.mrb[0].mxu0
  %649 = vmatprep.mubr.bf16.mxu0 0
  %650 = vmatmul.mubr.bf16.gmra.mrb[0].mxu0 %v478
  %v651 = vpop.f32.mrb[0].mxu0
  %v652 = vadd.f32 0.0, %v651
  %v653 = vpop.f32.mrb[0].mxu0
  %v654 = vpop.f32.mrb[0].mxu0
  %v655 = vadd.f32 0.0, %v654
  %v656 = vpop.f32.mrb[0].mxu0
  %657 = vmatprep.mubr.bf16.mxu0 0
  %658 = vmatmul.mubr.bf16.gmra.mrb[0].mxu0 %v481
  %v659 = vpop.f32.mrb[0].mxu0
  %v660 = vadd.f32 0.0, %v659
  %v661 = vpop.f32.mrb[0].mxu0
  %v662 = vpop.f32.mrb[0].mxu0
  %v663 = vadd.f32 0.0, %v662
  %v664 = vpop.f32.mrb[0].mxu0
  %665 = vmatprep.mubr.bf16.mxu0 0
  %666 = vmatmul.mubr.bf16.gmra.mrb[0].mxu0 %v484
  %v667 = vpop.f32.mrb[0].mxu0
  %v668 = vadd.f32 0.0, %v667
  %v669 = vpop.f32.mrb[0].mxu0
  %v670 = vpop.f32.mrb[0].mxu0
  %v671 = vadd.f32 0.0, %v670
  %v672 = vpop.f32.mrb[0].mxu0
  %673 = vmatprep.mubr.bf16.mxu0 0
  %674 = vmatmul.mubr.bf16.gmra.mrb[0].mxu0 %v487
  %v675 = vpop.f32.mrb[0].mxu0
  %v676 = vadd.f32 0.0, %v675
  %v677 = vpop.f32.mrb[0].mxu0
  %v678 = vpop.f32.mrb[0].mxu0
  %v679 = vadd.f32 0.0, %v678
  %v680 = vpop.f32.mrb[0].mxu0
  %681 = vmatprep.mubr.bf16.mxu0 0
  %682 = vmatmul.mubr.bf16.gmra.mrb[0].mxu0 %v490
  %v683 = vpop.f32.mrb[0].mxu0
  %v684 = vadd.f32 0.0, %v683
  %v685 = vpop.f32.mrb[0].mxu0
  %v686 = vpop.f32.mrb[0].mxu0
  %v687 = vadd.f32 0.0, %v686
  %v688 = vpop.f32.mrb[0].mxu0
  %689 = vmatprep.mubr.bf16.mxu0 0
  %690 = vmatmul.mubr.bf16.gmra.mrb[0].mxu0 %v493
  %v691 = vpop.f32.mrb[0].mxu0
  %v692 = vadd.f32 0.0, %v691
  %v693 = vpop.f32.mrb[0].mxu0
  %v694 = vpop.f32.mrb[0].mxu0
  %v695 = vadd.f32 0.0, %v694
  %v696 = vpop.f32.mrb[0].mxu0
  %697 = vmatprep.mubr.bf16.mxu0 0
  %698 = vmatmul.mubr.bf16.gmra.mrb[0].mxu0 %v496
  %v699 = vpop.f32.mrb[0].mxu0
  %v700 = vadd.f32 0.0, %v699
  %v701 = vpop.f32.mrb[0].mxu0
  %v702 = vpop.f32.mrb[0].mxu0
  %v703 = vadd.f32 0.0, %v702
  %v704 = vpop.f32.mrb[0].mxu0
  %705 = vmatprep.mubr.bf16.mxu0 0
  %706 = vmatmul.mubr.bf16.gmra.mrb[0].mxu0 %v499
  %v707 = vpop.f32.mrb[0].mxu0
  %v708 = vadd.f32 0.0, %v707
  %v709 = vpop.f32.mrb[0].mxu0
  %v710 = vpop.f32.mrb[0].mxu0
  %v711 = vadd.f32 0.0, %v710
  %v712 = vpop.f32.mrb[0].mxu0
  %713 = vmatprep.mubr.bf16.mxu0 0
  %714 = vmatmul.mubr.bf16.gmra.mrb[0].mxu0 %v502
  %v715 = vpop.f32.mrb[0].mxu0
  %v716 = vadd.f32 0.0, %v715
  %v717 = vpop.f32.mrb[0].mxu0
  %v718 = vpop.f32.mrb[0].mxu0
  %v719 = vadd.f32 0.0, %v718
  %v720 = vpop.f32.mrb[0].mxu0
  %721 = vmatprep.mubr.bf16.mxu0 0
  %722 = vmatmul.mubr.bf16.gmra.mrb[0].mxu0 %v505
  %v723 = vpop.f32.mrb[0].mxu0
  %v724 = vadd.f32 0.0, %v723
  %v725 = vpop.f32.mrb[0].mxu0
  %v726 = vpop.f32.mrb[0].mxu0
  %v727 = vadd.f32 0.0, %v726
  %v728 = vpop.f32.mrb[0].mxu0
  %729 = vmatprep.mubr.bf16.mxu0 0
  %730 = vmatmul.mubr.bf16.gmra.mrb[0].mxu0 %v508
  %v731 = vpop.f32.mrb[0].mxu0
  %v732 = vadd.f32 0.0, %v731
  %v733 = vpop.f32.mrb[0].mxu0
  %v734 = vpop.f32.mrb[0].mxu0
  %v735 = vadd.f32 0.0, %v734
  %v736 = vpop.f32.mrb[0].mxu0
  %737 = vmatprep.mubr.bf16.mxu0 0
  %738 = vmatmul.mubr.bf16.gmra.mrb[0].mxu0 %v511
  %v739 = vpop.f32.mrb[0].mxu0
  %v740 = vadd.f32 0.0, %v739
  %v741 = vpop.f32.mrb[0].mxu0
  %v742 = vpop.f32.mrb[0].mxu0
  %v743 = vadd.f32 0.0, %v742
  %v744 = vpop.f32.mrb[0].mxu0
  %745 = vmatprep.mubr.bf16.mxu0 0
  %746 = vmatmul.mubr.bf16.gmra.mrb[0].mxu0 %v514
  %v747 = vpop.f32.mrb[0].mxu0
  %v748 = vadd.f32 0.0, %v747
  %v749 = vpop.f32.mrb[0].mxu0
  %v750 = vpop.f32.mrb[0].mxu0
  %v751 = vadd.f32 0.0, %v750
  %v752 = vpop.f32.mrb[0].mxu0
  %753 = vmatprep.mubr.bf16.mxu0 0
  %754 = vmatmul.mubr.bf16.gmra.mrb[0].mxu0 %v517
  %v755 = vpop.f32.mrb[0].mxu0
  %v756 = vadd.f32 0.0, %v755
  %v757 = vpop.f32.mrb[0].mxu0
  %v758 = vpop.f32.mrb[0].mxu0
  %v759 = vadd.f32 0.0, %v758
  %v760 = vpop.f32.mrb[0].mxu0
  %761 = vmatprep.mubr.bf16.mxu0 0
  %762 = vmatmul.mubr.bf16.gmra.mrb[0].mxu0 %v520
  %v763 = vpop.f32.mrb[0].mxu0
  %v764 = vadd.f32 0.0, %v763
  %v765 = vpop.f32.mrb[0].mxu0
  %v766 = vpop.f32.mrb[0].mxu0
  %v767 = vadd.f32 0.0, %v766
  %v768 = vpop.f32.mrb[0].mxu0
  %769 = vmatprep.mubr.bf16.mxu0 0
  %770 = vmatmul.mubr.bf16.gmra.mrb[0].mxu0 %v523
  %v771 = vpop.f32.mrb[0].mxu0
  %v772 = vadd.f32 0.0, %v771
  %v773 = vpop.f32.mrb[0].mxu0
  %v774 = vpop.f32.mrb[0].mxu0
  %v775 = vadd.f32 0.0, %v774
  %v776 = vpop.f32.mrb[0].mxu0
  %777 = vmatprep.mubr.bf16.mxu0 0
  %778 = vmatmul.mubr.bf16.gmra.mrb[0].mxu0 %v526
  %v779 = vpop.f32.mrb[0].mxu0
  %v780 = vadd.f32 0.0, %v779
  %v781 = vpop.f32.mrb[0].mxu0
  %v782 = vpop.f32.mrb[0].mxu0
  %v783 = vadd.f32 0.0, %v782
  %v784 = vpop.f32.mrb[0].mxu0
  %785 = vmatprep.mubr.bf16.mxu0 0
  %786 = vmatmul.mubr.bf16.gmra.mrb[0].mxu0 %v529
  %v787 = vpop.f32.mrb[0].mxu0
  %v788 = vadd.f32 0.0, %v787
  %v789 = vpop.f32.mrb[0].mxu0
  %v790 = vpop.f32.mrb[0].mxu0
  %v791 = vadd.f32 0.0, %v790
  %v792 = vpop.f32.mrb[0].mxu0
  %793 = vmatprep.mubr.bf16.mxu0 0
  %794 = vmatmul.mubr.bf16.gmra.mrb[0].mxu0 %v532
  %v795 = vpop.f32.mrb[0].mxu0
  %v796 = vadd.f32 0.0, %v795
  %v797 = vpop.f32.mrb[0].mxu0
  %v798 = vpop.f32.mrb[0].mxu0
  %v799 = vadd.f32 0.0, %v798
  %v800 = vpop.f32.mrb[0].mxu0
  %801 = vmatprep.mubr.bf16.mxu0 0
  %802 = vmatmul.mubr.bf16.gmra.mrb[0].mxu0 %v535
  %v803 = vpop.f32.mrb[0].mxu0
  %v804 = vadd.f32 0.0, %v803
  %v805 = vpop.f32.mrb[0].mxu0
  %v806 = vpop.f32.mrb[0].mxu0
  %v807 = vadd.f32 0.0, %v806
  %v808 = vpop.f32.mrb[0].mxu0
  %809 = vmatprep.mubr.bf16.mxu0 0
  %810 = vmatmul.mubr.bf16.gmra.mrb[0].mxu0 %v538
  %v811 = vpop.f32.mrb[0].mxu0
  %v812 = vadd.f32 0.0, %v811
  %v813 = vpop.f32.mrb[0].mxu0
  %v814 = vpop.f32.mrb[0].mxu0
  %v815 = vadd.f32 0.0, %v814
  %v816 = vpop.f32.mrb[0].mxu0
  %817 = vmatprep.mubr.bf16.mxu0 0
  %818 = vmatmul.mubr.bf16.gmra.mrb[0].mxu0 %v541
  %v819 = vpop.f32.mrb[0].mxu0
  %v820 = vadd.f32 0.0, %v819
  %v821 = vpop.f32.mrb[0].mxu0
  %v822 = vpop.f32.mrb[0].mxu0
  %v823 = vadd.f32 0.0, %v822
  %v824 = vpop.f32.mrb[0].mxu0
  %825 = vmatprep.mubr.bf16.mxu0 0
  %826 = vmatmul.mubr.bf16.gmra.mrb[0].mxu0 %v544
  %v827 = vpop.f32.mrb[0].mxu0
  %v828 = vadd.f32 0.0, %v827
  %v829 = vpop.f32.mrb[0].mxu0
  %v830 = vpop.f32.mrb[0].mxu0
  %v831 = vadd.f32 0.0, %v830
  %v832 = vpop.f32.mrb[0].mxu0
  %833 = vmatprep.mubr.bf16.mxu0 0
  %834 = vmatmul.mubr.bf16.gmra.mrb[0].mxu0 %v547
  %v835 = vpop.f32.mrb[0].mxu0
  %v836 = vadd.f32 0.0, %v835
  %v837 = vpop.f32.mrb[0].mxu0
  %v838 = vpop.f32.mrb[0].mxu0
  %v839 = vadd.f32 0.0, %v838
  %v840 = vpop.f32.mrb[0].mxu0
  %841 = vdwg.mxu0
  %v842 = vld [vmem:[%s3] sm:$0x1]
  %v843 = vstv %s24
  %v844 = vmul.f32 %v842, %v843
  %v846 = vlaneseq
  %v847 = vshrl.u32 %v846, 7
  %v848 = vsub.s32 0, %v847
  %v849 = vrot.slane %v844, %v848
  %v851 = vmul.f32 %v588, %v849
  %v852 = vmul.f32 %v591, %v849
  %v853 = vmul.f32 %v596, %v849
  %v854 = vmul.f32 %v599, %v849
  %v855 = vmul.f32 %v604, %v849
  %v856 = vmul.f32 %v607, %v849
  %v857 = vmul.f32 %v612, %v849
  %v858 = vmul.f32 %v615, %v849
  %v859 = vmul.f32 %v620, %v849
  %v860 = vmul.f32 %v623, %v849
  %v861 = vmul.f32 %v628, %v849
  %v862 = vmul.f32 %v631, %v849
  %v863 = vmul.f32 %v636, %v849
  %v864 = vmul.f32 %v639, %v849
  %v865 = vmul.f32 %v644, %v849
  %v866 = vmul.f32 %v647, %v849
  %v867 = vmul.f32 %v652, %v849
  %v868 = vmul.f32 %v655, %v849
  %v869 = vmul.f32 %v660, %v849
  %v870 = vmul.f32 %v663, %v849
  %v871 = vmul.f32 %v668, %v849
  %v872 = vmul.f32 %v671, %v849
  %v873 = vmul.f32 %v676, %v849
  %v874 = vmul.f32 %v679, %v849
  %v875 = vmul.f32 %v684, %v849
  %v876 = vmul.f32 %v687, %v849
  %v877 = vmul.f32 %v692, %v849
  %v878 = vmul.f32 %v695, %v849
  %v879 = vmul.f32 %v700, %v849
  %v880 = vmul.f32 %v703, %v849
  %v881 = vmul.f32 %v708, %v849
  %v882 = vmul.f32 %v711, %v849
  %v883 = vmul.f32 %v716, %v849
  %v884 = vmul.f32 %v719, %v849
  %v885 = vmul.f32 %v724, %v849
  %v886 = vmul.f32 %v727, %v849
  %v887 = vmul.f32 %v732, %v849
  %v888 = vmul.f32 %v735, %v849
  %v889 = vmul.f32 %v740, %v849
  %v890 = vmul.f32 %v743, %v849
  %v891 = vmul.f32 %v748, %v849
  %v892 = vmul.f32 %v751, %v849
  %v893 = vmul.f32 %v756, %v849
  %v894 = vmul.f32 %v759, %v849
  %v895 = vmul.f32 %v764, %v849
  %v896 = vmul.f32 %v767, %v849
  %v897 = vmul.f32 %v772, %v849
  %v898 = vmul.f32 %v775, %v849
  %v899 = vmul.f32 %v780, %v849
  %v900 = vmul.f32 %v783, %v849
  %v901 = vmul.f32 %v788, %v849
  %v902 = vmul.f32 %v791, %v849
  %v903 = vmul.f32 %v796, %v849
  %v904 = vmul.f32 %v799, %v849
  %v905 = vmul.f32 %v804, %v849
  %v906 = vmul.f32 %v807, %v849
  %v907 = vmul.f32 %v812, %v849
  %v908 = vmul.f32 %v815, %v849
  %v909 = vmul.f32 %v820, %v849
  %v910 = vmul.f32 %v823, %v849
  %v911 = vmul.f32 %v828, %v849
  %v912 = vmul.f32 %v831, %v849
  %v913 = vmul.f32 %v836, %v849
  %v914 = vmul.f32 %v839, %v849
  %v915 = vld [vmem:[%s4] sm:$0x1]
  %v917 = vlaneseq
  %v918 = vshrl.u32 %v917, 7
  %v919 = vsub.s32 0, %v918
  %v920 = vrot.slane %v915, %v919
  %v922 = vadd.f32 %v851, %v920
  %v923 = vadd.f32 %v852, %v920
  %v924 = vadd.f32 %v853, %v920
  %v925 = vadd.f32 %v854, %v920
  %v926 = vadd.f32 %v855, %v920
  %v927 = vadd.f32 %v856, %v920
  %v928 = vadd.f32 %v857, %v920
  %v929 = vadd.f32 %v858, %v920
  %v930 = vadd.f32 %v859, %v920
  %v931 = vadd.f32 %v860, %v920
  %v932 = vadd.f32 %v861, %v920
  %v933 = vadd.f32 %v862, %v920
  %v934 = vadd.f32 %v863, %v920
  %v935 = vadd.f32 %v864, %v920
  %v936 = vadd.f32 %v865, %v920
  %v937 = vadd.f32 %v866, %v920
  %v938 = vadd.f32 %v867, %v920
  %v939 = vadd.f32 %v868, %v920
  %v940 = vadd.f32 %v869, %v920
  %v941 = vadd.f32 %v870, %v920
  %v942 = vadd.f32 %v871, %v920
  %v943 = vadd.f32 %v872, %v920
  %v944 = vadd.f32 %v873, %v920
  %v945 = vadd.f32 %v874, %v920
  %v946 = vadd.f32 %v875, %v920
  %v947 = vadd.f32 %v876, %v920
  %v948 = vadd.f32 %v877, %v920
  %v949 = vadd.f32 %v878, %v920
  %v950 = vadd.f32 %v879, %v920
  %v951 = vadd.f32 %v880, %v920
  %v952 = vadd.f32 %v881, %v920
  %v953 = vadd.f32 %v882, %v920
  %v954 = vadd.f32 %v883, %v920
  %v955 = vadd.f32 %v884, %v920
  %v956 = vadd.f32 %v885, %v920
  %v957 = vadd.f32 %v886, %v920
  %v958 = vadd.f32 %v887, %v920
  %v959 = vadd.f32 %v888, %v920
  %v960 = vadd.f32 %v889, %v920
  %v961 = vadd.f32 %v890, %v920
  %v962 = vadd.f32 %v891, %v920
  %v963 = vadd.f32 %v892, %v920
  %v964 = vadd.f32 %v893, %v920
  %v965 = vadd.f32 %v894, %v920
  %v966 = vadd.f32 %v895, %v920
  %v967 = vadd.f32 %v896, %v920
  %v968 = vadd.f32 %v897, %v920
  %v969 = vadd.f32 %v898, %v920
  %v970 = vadd.f32 %v899, %v920
  %v971 = vadd.f32 %v900, %v920
  %v972 = vadd.f32 %v901, %v920
  %v973 = vadd.f32 %v902, %v920
  %v974 = vadd.f32 %v903, %v920
  %v975 = vadd.f32 %v904, %v920
  %v976 = vadd.f32 %v905, %v920
  %v977 = vadd.f32 %v906, %v920
  %v978 = vadd.f32 %v907, %v920
  %v979 = vadd.f32 %v908, %v920
  %v980 = vadd.f32 %v909, %v920
  %v981 = vadd.f32 %v910, %v920
  %v982 = vadd.f32 %v911, %v920
  %v983 = vadd.f32 %v912, %v920
  %v984 = vadd.f32 %v913, %v920
  %v985 = vadd.f32 %v914, %v920
  %v986 = vmax.f32 %v922, 0.0
  %v987 = vmax.f32 %v923, 0.0
  %v988 = vmax.f32 %v924, 0.0
  %v989 = vmax.f32 %v925, 0.0
  %v990 = vmax.f32 %v926, 0.0
  %v991 = vmax.f32 %v927, 0.0
  %v992 = vmax.f32 %v928, 0.0
  %v993 = vmax.f32 %v929, 0.0
  %v994 = vmax.f32 %v930, 0.0
  %v995 = vmax.f32 %v931, 0.0
  %v996 = vmax.f32 %v932, 0.0
  %v997 = vmax.f32 %v933, 0.0
  %v998 = vmax.f32 %v934, 0.0
  %v999 = vmax.f32 %v935, 0.0
  %v1000 = vmax.f32 %v936, 0.0
  %v1001 = vmax.f32 %v937, 0.0
  %v1002 = vmax.f32 %v938, 0.0
  %v1003 = vmax.f32 %v939, 0.0
  %v1004 = vmax.f32 %v940, 0.0
  %v1005 = vmax.f32 %v941, 0.0
  %v1006 = vmax.f32 %v942, 0.0
  %v1007 = vmax.f32 %v943, 0.0
  %v1008 = vmax.f32 %v944, 0.0
  %v1009 = vmax.f32 %v945, 0.0
  %v1010 = vmax.f32 %v946, 0.0
  %v1011 = vmax.f32 %v947, 0.0
  %v1012 = vmax.f32 %v948, 0.0
  %v1013 = vmax.f32 %v949, 0.0
  %v1014 = vmax.f32 %v950, 0.0
  %v1015 = vmax.f32 %v951, 0.0
  %v1016 = vmax.f32 %v952, 0.0
  %v1017 = vmax.f32 %v953, 0.0
  %v1018 = vmax.f32 %v954, 0.0
  %v1019 = vmax.f32 %v955, 0.0
  %v1020 = vmax.f32 %v956, 0.0
  %v1021 = vmax.f32 %v957, 0.0
  %v1022 = vmax.f32 %v958, 0.0
  %v1023 = vmax.f32 %v959, 0.0
  %v1024 = vmax.f32 %v960, 0.0
  %v1025 = vmax.f32 %v961, 0.0
  %v1026 = vmax.f32 %v962, 0.0
  %v1027 = vmax.f32 %v963, 0.0
  %v1028 = vmax.f32 %v964, 0.0
  %v1029 = vmax.f32 %v965, 0.0
  %v1030 = vmax.f32 %v966, 0.0
  %v1031 = vmax.f32 %v967, 0.0
  %v1032 = vmax.f32 %v968, 0.0
  %v1033 = vmax.f32 %v969, 0.0
  %v1034 = vmax.f32 %v970, 0.0
  %v1035 = vmax.f32 %v971, 0.0
  %v1036 = vmax.f32 %v972, 0.0
  %v1037 = vmax.f32 %v973, 0.0
  %v1038 = vmax.f32 %v974, 0.0
  %v1039 = vmax.f32 %v975, 0.0
  %v1040 = vmax.f32 %v976, 0.0
  %v1041 = vmax.f32 %v977, 0.0
  %v1042 = vmax.f32 %v978, 0.0
  %v1043 = vmax.f32 %v979, 0.0
  %v1044 = vmax.f32 %v980, 0.0
  %v1045 = vmax.f32 %v981, 0.0
  %v1046 = vmax.f32 %v982, 0.0
  %v1047 = vmax.f32 %v983, 0.0
  %v1048 = vmax.f32 %v984, 0.0
  %v1049 = vmax.f32 %v985, 0.0
  %v1050 = vmin.f32 %v986, 6.0
  %v1051 = vmin.f32 %v987, 6.0
  %v1052 = vmin.f32 %v988, 6.0
  %v1053 = vmin.f32 %v989, 6.0
  %v1054 = vmin.f32 %v990, 6.0
  %v1055 = vmin.f32 %v991, 6.0
  %v1056 = vmin.f32 %v992, 6.0
  %v1057 = vmin.f32 %v993, 6.0
  %v1058 = vmin.f32 %v994, 6.0
  %v1059 = vmin.f32 %v995, 6.0
  %v1060 = vmin.f32 %v996, 6.0
  %v1061 = vmin.f32 %v997, 6.0
  %v1062 = vmin.f32 %v998, 6.0
  %v1063 = vmin.f32 %v999, 6.0
  %v1064 = vmin.f32 %v1000, 6.0
  %v1065 = vmin.f32 %v1001, 6.0
  %v1066 = vmin.f32 %v1002, 6.0
  %v1067 = vmin.f32 %v1003, 6.0
  %v1068 = vmin.f32 %v1004, 6.0
  %v1069 = vmin.f32 %v1005, 6.0
  %v1070 = vmin.f32 %v1006, 6.0
  %v1071 = vmin.f32 %v1007, 6.0
  %v1072 = vmin.f32 %v1008, 6.0
  %v1073 = vmin.f32 %v1009, 6.0
  %v1074 = vmin.f32 %v1010, 6.0
  %v1075 = vmin.f32 %v1011, 6.0
  %v1076 = vmin.f32 %v1012, 6.0
  %v1077 = vmin.f32 %v1013, 6.0
  %v1078 = vmin.f32 %v1014, 6.0
  %v1079 = vmin.f32 %v1015, 6.0
  %v1080 = vmin.f32 %v1016, 6.0
  %v1081 = vmin.f32 %v1017, 6.0
  %v1082 = vmin.f32 %v1018, 6.0
  %v1083 = vmin.f32 %v1019, 6.0
  %v1084 = vmin.f32 %v1020, 6.0
  %v1085 = vmin.f32 %v1021, 6.0
  %v1086 = vmin.f32 %v1022, 6.0
  %v1087 = vmin.f32 %v1023, 6.0
  %v1088 = vmin.f32 %v1024, 6.0
  %v1089 = vmin.f32 %v1025, 6.0
  %v1090 = vmin.f32 %v1026, 6.0
  %v1091 = vmin.f32 %v1027, 6.0
  %v1092 = vmin.f32 %v1028, 6.0
  %v1093 = vmin.f32 %v1029, 6.0
  %v1094 = vmin.f32 %v1030, 6.0
  %v1095 = vmin.f32 %v1031, 6.0
  %v1096 = vmin.f32 %v1032, 6.0
  %v1097 = vmin.f32 %v1033, 6.0
  %v1098 = vmin.f32 %v1034, 6.0
  %v1099 = vmin.f32 %v1035, 6.0
  %v1100 = vmin.f32 %v1036, 6.0
  %v1101 = vmin.f32 %v1037, 6.0
  %v1102 = vmin.f32 %v1038, 6.0
  %v1103 = vmin.f32 %v1039, 6.0
  %v1104 = vmin.f32 %v1040, 6.0
  %v1105 = vmin.f32 %v1041, 6.0
  %v1106 = vmin.f32 %v1042, 6.0
  %v1107 = vmin.f32 %v1043, 6.0
  %v1108 = vmin.f32 %v1044, 6.0
  %v1109 = vmin.f32 %v1045, 6.0
  %v1110 = vmin.f32 %v1046, 6.0
  %v1111 = vmin.f32 %v1047, 6.0
  %v1112 = vmin.f32 %v1048, 6.0
  %v1113 = vmin.f32 %v1049, 6.0
  %v1114 = vpack.c.bf16 %v1051, %v1050
  %v1115 = vpack.c.bf16 %v1053, %v1052
  %v1116 = vpack.c.bf16 %v1055, %v1054
  %v1117 = vpack.c.bf16 %v1057, %v1056
  %v1118 = vpack.c.bf16 %v1059, %v1058
  %v1119 = vpack.c.bf16 %v1061, %v1060
  %v1120 = vpack.c.bf16 %v1063, %v1062
  %v1121 = vpack.c.bf16 %v1065, %v1064
  %v1122 = vpack.c.bf16 %v1067, %v1066
  %v1123 = vpack.c.bf16 %v1069, %v1068
  %v1124 = vpack.c.bf16 %v1071, %v1070
  %v1125 = vpack.c.bf16 %v1073, %v1072
  %v1126 = vpack.c.bf16 %v1075, %v1074
  %v1127 = vpack.c.bf16 %v1077, %v1076
  %v1128 = vpack.c.bf16 %v1079, %v1078
  %v1129 = vpack.c.bf16 %v1081, %v1080
  %v1130 = vpack.c.bf16 %v1083, %v1082
  %v1131 = vpack.c.bf16 %v1085, %v1084
  %v1132 = vpack.c.bf16 %v1087, %v1086
  %v1133 = vpack.c.bf16 %v1089, %v1088
  %v1134 = vpack.c.bf16 %v1091, %v1090
  %v1135 = vpack.c.bf16 %v1093, %v1092
  %v1136 = vpack.c.bf16 %v1095, %v1094
  %v1137 = vpack.c.bf16 %v1097, %v1096
  %v1138 = vpack.c.bf16 %v1099, %v1098
  %v1139 = vpack.c.bf16 %v1101, %v1100
  %v1140 = vpack.c.bf16 %v1103, %v1102
  %v1141 = vpack.c.bf16 %v1105, %v1104
  %v1142 = vpack.c.bf16 %v1107, %v1106
  %v1143 = vpack.c.bf16 %v1109, %v1108
  %v1144 = vpack.c.bf16 %v1111, %v1110
  %v1145 = vpack.c.bf16 %v1113, %v1112
  %v1178 = vunpack.c.l.b16 %v1114
  %v1179 = vunpack.c.h.b16 %v1114
  %v1180 = vunpack.c.l.b16 %v1115
  %v1181 = vunpack.c.h.b16 %v1115
  %v1182 = vunpack.c.l.b16 %v1116
  %v1183 = vunpack.c.h.b16 %v1116
  %v1184 = vunpack.c.l.b16 %v1117
  %v1185 = vunpack.c.h.b16 %v1117
  %v1186 = vunpack.c.l.b16 %v1118
  %v1187 = vunpack.c.h.b16 %v1118
  %v1188 = vunpack.c.l.b16 %v1119
  %v1189 = vunpack.c.h.b16 %v1119
  %v1190 = vunpack.c.l.b16 %v1120
  %v1191 = vunpack.c.h.b16 %v1120
  %v1192 = vunpack.c.l.b16 %v1121
  %v1193 = vunpack.c.h.b16 %v1121
  %v1194 = vunpack.c.l.b16 %v1122
  %v1195 = vunpack.c.h.b16 %v1122
  %v1196 = vunpack.c.l.b16 %v1123
  %v1197 = vunpack.c.h.b16 %v1123
  %v1198 = vunpack.c.l.b16 %v1124
  %v1199 = vunpack.c.h.b16 %v1124
  %v1200 = vunpack.c.l.b16 %v1125
  %v1201 = vunpack.c.h.b16 %v1125
  %v1202 = vunpack.c.l.b16 %v1126
  %v1203 = vunpack.c.h.b16 %v1126
  %v1204 = vunpack.c.l.b16 %v1127
  %v1205 = vunpack.c.h.b16 %v1127
  %v1206 = vunpack.c.l.b16 %v1128
  %v1207 = vunpack.c.h.b16 %v1128
  %v1208 = vunpack.c.l.b16 %v1129
  %v1209 = vunpack.c.h.b16 %v1129
  %v1210 = vunpack.c.l.b16 %v1130
  %v1211 = vunpack.c.h.b16 %v1130
  %v1212 = vunpack.c.l.b16 %v1131
  %v1213 = vunpack.c.h.b16 %v1131
  %v1214 = vunpack.c.l.b16 %v1132
  %v1215 = vunpack.c.h.b16 %v1132
  %v1216 = vunpack.c.l.b16 %v1133
  %v1217 = vunpack.c.h.b16 %v1133
  %v1218 = vunpack.c.l.b16 %v1134
  %v1219 = vunpack.c.h.b16 %v1134
  %v1220 = vunpack.c.l.b16 %v1135
  %v1221 = vunpack.c.h.b16 %v1135
  %v1222 = vunpack.c.l.b16 %v1136
  %v1223 = vunpack.c.h.b16 %v1136
  %v1224 = vunpack.c.l.b16 %v1137
  %v1225 = vunpack.c.h.b16 %v1137
  %v1226 = vunpack.c.l.b16 %v1138
  %v1227 = vunpack.c.h.b16 %v1138
  %v1228 = vunpack.c.l.b16 %v1139
  %v1229 = vunpack.c.h.b16 %v1139
  %v1230 = vunpack.c.l.b16 %v1140
  %v1231 = vunpack.c.h.b16 %v1140
  %v1232 = vunpack.c.l.b16 %v1141
  %v1233 = vunpack.c.h.b16 %v1141
  %v1234 = vunpack.c.l.b16 %v1142
  %v1235 = vunpack.c.h.b16 %v1142
  %v1236 = vunpack.c.l.b16 %v1143
  %v1237 = vunpack.c.h.b16 %v1143
  %v1238 = vunpack.c.l.b16 %v1144
  %v1239 = vunpack.c.h.b16 %v1144
  %v1240 = vunpack.c.l.b16 %v1145
  %v1241 = vunpack.c.h.b16 %v1145
  %v1242 = vpack.c.b16 %v1178, %v1178
  %v1243 = vpack.c.b16 %v1179, %v1179
  %v1244 = vpack.c.b16 %v1180, %v1180
  %v1245 = vpack.c.b16 %v1181, %v1181
  %v1246 = vpack.c.b16 %v1182, %v1182
  %v1247 = vpack.c.b16 %v1183, %v1183
  %v1248 = vpack.c.b16 %v1184, %v1184
  %v1249 = vpack.c.b16 %v1185, %v1185
  %v1250 = vpack.c.b16 %v1186, %v1186
  %v1251 = vpack.c.b16 %v1187, %v1187
  %v1252 = vpack.c.b16 %v1188, %v1188
  %v1253 = vpack.c.b16 %v1189, %v1189
  %v1254 = vpack.c.b16 %v1190, %v1190
  %v1255 = vpack.c.b16 %v1191, %v1191
  %v1256 = vpack.c.b16 %v1192, %v1192
  %v1257 = vpack.c.b16 %v1193, %v1193
  %v1258 = vpack.c.b16 %v1194, %v1194
  %v1259 = vpack.c.b16 %v1195, %v1195
  %v1260 = vpack.c.b16 %v1196, %v1196
  %v1261 = vpack.c.b16 %v1197, %v1197
  %v1262 = vpack.c.b16 %v1198, %v1198
  %v1263 = vpack.c.b16 %v1199, %v1199
  %v1264 = vpack.c.b16 %v1200, %v1200
  %v1265 = vpack.c.b16 %v1201, %v1201
  %v1266 = vpack.c.b16 %v1202, %v1202
  %v1267 = vpack.c.b16 %v1203, %v1203
  %v1268 = vpack.c.b16 %v1204, %v1204
  %v1269 = vpack.c.b16 %v1205, %v1205
  %v1270 = vpack.c.b16 %v1206, %v1206
  %v1271 = vpack.c.b16 %v1207, %v1207
  %v1272 = vpack.c.b16 %v1208, %v1208
  %v1273 = vpack.c.b16 %v1209, %v1209
  %v1274 = vpack.c.b16 %v1210, %v1210
  %v1275 = vpack.c.b16 %v1211, %v1211
  %v1276 = vpack.c.b16 %v1212, %v1212
  %v1277 = vpack.c.b16 %v1213, %v1213
  %v1278 = vpack.c.b16 %v1214, %v1214
  %v1279 = vpack.c.b16 %v1215, %v1215
  %v1280 = vpack.c.b16 %v1216, %v1216
  %v1281 = vpack.c.b16 %v1217, %v1217
  %v1282 = vpack.c.b16 %v1218, %v1218
  %v1283 = vpack.c.b16 %v1219, %v1219
  %v1284 = vpack.c.b16 %v1220, %v1220
  %v1285 = vpack.c.b16 %v1221, %v1221
  %v1286 = vpack.c.b16 %v1222, %v1222
  %v1287 = vpack.c.b16 %v1223, %v1223
  %v1288 = vpack.c.b16 %v1224, %v1224
  %v1289 = vpack.c.b16 %v1225, %v1225
  %v1290 = vpack.c.b16 %v1226, %v1226
  %v1291 = vpack.c.b16 %v1227, %v1227
  %v1292 = vpack.c.b16 %v1228, %v1228
  %v1293 = vpack.c.b16 %v1229, %v1229
  %v1294 = vpack.c.b16 %v1230, %v1230
  %v1295 = vpack.c.b16 %v1231, %v1231
  %v1296 = vpack.c.b16 %v1232, %v1232
  %v1297 = vpack.c.b16 %v1233, %v1233
  %v1298 = vpack.c.b16 %v1234, %v1234
  %v1299 = vpack.c.b16 %v1235, %v1235
  %v1300 = vpack.c.b16 %v1236, %v1236
  %v1301 = vpack.c.b16 %v1237, %v1237
  %v1302 = vpack.c.b16 %v1238, %v1238
  %v1303 = vpack.c.b16 %v1239, %v1239
  %v1304 = vpack.c.b16 %v1240, %v1240
  %v1305 = vpack.c.b16 %v1241, %v1241
  %1370 = vst [vmem:[%s5] sm:$0xf] %v1242
  %1371 = vst [vmem:[%s5 + $0x4] sm:$0xf] %v1243
  %1372 = vst [vmem:[%s5 + $0x8] sm:$0xf] %v1244
  %1373 = vst [vmem:[%s5 + $0xc] sm:$0xf] %v1245
  %1374 = vst [vmem:[%s5 + $0x10] sm:$0xf] %v1246
  %1375 = vst [vmem:[%s5 + $0x14] sm:$0xf] %v1247
  %1376 = vst [vmem:[%s5 + $0x18] sm:$0xf] %v1248
  %1377 = vst [vmem:[%s5 + $0x1c] sm:$0xf] %v1249
  %1378 = vst [vmem:[%s5 + $0x20] sm:$0xf] %v1250
  %1379 = vst [vmem:[%s5 + $0x24] sm:$0xf] %v1251
  %1380 = vst [vmem:[%s5 + $0x28] sm:$0xf] %v1252
  %1381 = vst [vmem:[%s5 + $0x2c] sm:$0xf] %v1253
  %1382 = vst [vmem:[%s5 + $0x30] sm:$0xf] %v1254
  %1383 = vst [vmem:[%s5 + $0x34] sm:$0xf] %v1255
  %1384 = vst [vmem:[%s5 + $0x38] sm:$0xf] %v1256
  %1385 = vst [vmem:[%s5 + $0x3c] sm:$0xf] %v1257
  %1386 = vst [vmem:[%s5 + $0x40] sm:$0xf] %v1258
  %1387 = vst [vmem:[%s5 + $0x44] sm:$0xf] %v1259
  %1388 = vst [vmem:[%s5 + $0x48] sm:$0xf] %v1260
  %1389 = vst [vmem:[%s5 + $0x4c] sm:$0xf] %v1261
  %1390 = vst [vmem:[%s5 + $0x50] sm:$0xf] %v1262
  %1391 = vst [vmem:[%s5 + $0x54] sm:$0xf] %v1263
  %1392 = vst [vmem:[%s5 + $0x58] sm:$0xf] %v1264
  %1393 = vst [vmem:[%s5 + $0x5c] sm:$0xf] %v1265
  %1394 = vst [vmem:[%s5 + $0x60] sm:$0xf] %v1266
  %1395 = vst [vmem:[%s5 + $0x64] sm:$0xf] %v1267
  %1396 = vst [vmem:[%s5 + $0x68] sm:$0xf] %v1268
  %1397 = vst [vmem:[%s5 + $0x6c] sm:$0xf] %v1269
  %1398 = vst [vmem:[%s5 + $0x70] sm:$0xf] %v1270
  %1399 = vst [vmem:[%s5 + $0x74] sm:$0xf] %v1271
  %1400 = vst [vmem:[%s5 + $0x78] sm:$0xf] %v1272
  %1401 = vst [vmem:[%s5 + $0x7c] sm:$0xf] %v1273
  %1402 = vst [vmem:[%s5 + $0x80] sm:$0xf] %v1274
  %1403 = vst [vmem:[%s5 + $0x84] sm:$0xf] %v1275
  %1404 = vst [vmem:[%s5 + $0x88] sm:$0xf] %v1276
  %1405 = vst [vmem:[%s5 + $0x8c] sm:$0xf] %v1277
  %1406 = vst [vmem:[%s5 + $0x90] sm:$0xf] %v1278
  %1407 = vst [vmem:[%s5 + $0x94] sm:$0xf] %v1279
  %1408 = vst [vmem:[%s5 + $0x98] sm:$0xf] %v1280
  %1409 = vst [vmem:[%s5 + $0x9c] sm:$0xf] %v1281
  %1410 = vst [vmem:[%s5 + $0xa0] sm:$0xf] %v1282
  %1411 = vst [vmem:[%s5 + $0xa4] sm:$0xf] %v1283
  %1412 = vst [vmem:[%s5 + $0xa8] sm:$0xf] %v1284
  %1413 = vst [vmem:[%s5 + $0xac] sm:$0xf] %v1285
  %1414 = vst [vmem:[%s5 + $0xb0] sm:$0xf] %v1286
  %1415 = vst [vmem:[%s5 + $0xb4] sm:$0xf] %v1287
  %1416 = vst [vmem:[%s5 + $0xb8] sm:$0xf] %v1288
  %1417 = vst [vmem:[%s5 + $0xbc] sm:$0xf] %v1289
  %1418 = vst [vmem:[%s5 + $0xc0] sm:$0xf] %v1290
  %1419 = vst [vmem:[%s5 + $0xc4] sm:$0xf] %v1291
  %1420 = vst [vmem:[%s5 + $0xc8] sm:$0xf] %v1292
  %1421 = vst [vmem:[%s5 + $0xcc] sm:$0xf] %v1293
  %1422 = vst [vmem:[%s5 + $0xd0] sm:$0xf] %v1294
  %1423 = vst [vmem:[%s5 + $0xd4] sm:$0xf] %v1295
  %1424 = vst [vmem:[%s5 + $0xd8] sm:$0xf] %v1296
  %1425 = vst [vmem:[%s5 + $0xdc] sm:$0xf] %v1297
  %1426 = vst [vmem:[%s5 + $0xe0] sm:$0xf] %v1298
  %1427 = vst [vmem:[%s5 + $0xe4] sm:$0xf] %v1299
  %1428 = vst [vmem:[%s5 + $0xe8] sm:$0xf] %v1300
  %1429 = vst [vmem:[%s5 + $0xec] sm:$0xf] %v1301
  %1430 = vst [vmem:[%s5 + $0xf0] sm:$0xf] %v1302
  %1431 = vst [vmem:[%s5 + $0xf4] sm:$0xf] %v1303
  %1432 = vst [vmem:[%s5 + $0xf8] sm:$0xf] %v1304
  %1433 = vst [vmem:[%s5 + $0xfc] sm:$0xf] %v1305
  %v1434 = vld [vmem:[%s6] sm:$0x1]
  %v1435 = vand.u32 2147483647, %v1050
  %v1436 = vand.u32 2147483647, %v1051
  %v1437 = vand.u32 2147483647, %v1052
  %v1438 = vand.u32 2147483647, %v1053
  %v1439 = vand.u32 2147483647, %v1054
  %v1440 = vand.u32 2147483647, %v1055
  %v1441 = vand.u32 2147483647, %v1056
  %v1442 = vand.u32 2147483647, %v1057
  %v1443 = vand.u32 2147483647, %v1058
  %v1444 = vand.u32 2147483647, %v1059
  %v1445 = vand.u32 2147483647, %v1060
  %v1446 = vand.u32 2147483647, %v1061
  %v1447 = vand.u32 2147483647, %v1062
  %v1448 = vand.u32 2147483647, %v1063
  %v1449 = vand.u32 2147483647, %v1064
  %v1450 = vand.u32 2147483647, %v1065
  %v1451 = vand.u32 2147483647, %v1066
  %v1452 = vand.u32 2147483647, %v1067
  %v1453 = vand.u32 2147483647, %v1068
  %v1454 = vand.u32 2147483647, %v1069
  %v1455 = vand.u32 2147483647, %v1070
  %v1456 = vand.u32 2147483647, %v1071
  %v1457 = vand.u32 2147483647, %v1072
  %v1458 = vand.u32 2147483647, %v1073
  %v1459 = vand.u32 2147483647, %v1074
  %v1460 = vand.u32 2147483647, %v1075
  %v1461 = vand.u32 2147483647, %v1076
  %v1462 = vand.u32 2147483647, %v1077
  %v1463 = vand.u32 2147483647, %v1078
  %v1464 = vand.u32 2147483647, %v1079
  %v1465 = vand.u32 2147483647, %v1080
  %v1466 = vand.u32 2147483647, %v1081
  %v1467 = vand.u32 2147483647, %v1082
  %v1468 = vand.u32 2147483647, %v1083
  %v1469 = vand.u32 2147483647, %v1084
  %v1470 = vand.u32 2147483647, %v1085
  %v1471 = vand.u32 2147483647, %v1086
  %v1472 = vand.u32 2147483647, %v1087
  %v1473 = vand.u32 2147483647, %v1088
  %v1474 = vand.u32 2147483647, %v1089
  %v1475 = vand.u32 2147483647, %v1090
  %v1476 = vand.u32 2147483647, %v1091
  %v1477 = vand.u32 2147483647, %v1092
  %v1478 = vand.u32 2147483647, %v1093
  %v1479 = vand.u32 2147483647, %v1094
  %v1480 = vand.u32 2147483647, %v1095
  %v1481 = vand.u32 2147483647, %v1096
  %v1482 = vand.u32 2147483647, %v1097
  %v1483 = vand.u32 2147483647, %v1098
  %v1484 = vand.u32 2147483647, %v1099
  %v1485 = vand.u32 2147483647, %v1100
  %v1486 = vand.u32 2147483647, %v1101
  %v1487 = vand.u32 2147483647, %v1102
  %v1488 = vand.u32 2147483647, %v1103
  %v1489 = vand.u32 2147483647, %v1104
  %v1490 = vand.u32 2147483647, %v1105
  %v1491 = vand.u32 2147483647, %v1106
  %v1492 = vand.u32 2147483647, %v1107
  %v1493 = vand.u32 2147483647, %v1108
  %v1494 = vand.u32 2147483647, %v1109
  %v1495 = vand.u32 2147483647, %v1110
  %v1496 = vand.u32 2147483647, %v1111
  %v1497 = vand.u32 2147483647, %v1112
  %v1498 = vand.u32 2147483647, %v1113
  %v1499 = vmax.f32 %v1435, %v1439
  %v1500 = vmax.f32 %v1436, %v1440
  %v1501 = vmax.f32 %v1437, %v1441
  %v1502 = vmax.f32 %v1438, %v1442
  %v1503 = vmax.f32 %v1499, %v1443
  %v1504 = vmax.f32 %v1500, %v1444
  %v1505 = vmax.f32 %v1501, %v1445
  %v1506 = vmax.f32 %v1502, %v1446
  %v1507 = vmax.f32 %v1503, %v1447
  %v1508 = vmax.f32 %v1504, %v1448
  %v1509 = vmax.f32 %v1505, %v1449
  %v1510 = vmax.f32 %v1506, %v1450
  %v1511 = vmax.f32 %v1507, %v1451
  %v1512 = vmax.f32 %v1508, %v1452
  %v1513 = vmax.f32 %v1509, %v1453
  %v1514 = vmax.f32 %v1510, %v1454
  %v1515 = vmax.f32 %v1511, %v1455
  %v1516 = vmax.f32 %v1512, %v1456
  %v1517 = vmax.f32 %v1513, %v1457
  %v1518 = vmax.f32 %v1514, %v1458
  %v1519 = vmax.f32 %v1515, %v1459
  %v1520 = vmax.f32 %v1516, %v1460
  %v1521 = vmax.f32 %v1517, %v1461
  %v1522 = vmax.f32 %v1518, %v1462
  %v1523 = vmax.f32 %v1519, %v1463
  %v1524 = vmax.f32 %v1520, %v1464
  %v1525 = vmax.f32 %v1521, %v1465
  %v1526 = vmax.f32 %v1522, %v1466
  %v1527 = vmax.f32 %v1523, %v1467
  %v1528 = vmax.f32 %v1524, %v1468
  %v1529 = vmax.f32 %v1525, %v1469
  %v1530 = vmax.f32 %v1526, %v1470
  %v1531 = vmax.f32 %v1527, %v1471
  %v1532 = vmax.f32 %v1528, %v1472
  %v1533 = vmax.f32 %v1529, %v1473
  %v1534 = vmax.f32 %v1530, %v1474
  %v1535 = vmax.f32 %v1531, %v1475
  %v1536 = vmax.f32 %v1532, %v1476
  %v1537 = vmax.f32 %v1533, %v1477
  %v1538 = vmax.f32 %v1534, %v1478
  %v1539 = vmax.f32 %v1535, %v1479
  %v1540 = vmax.f32 %v1536, %v1480
  %v1541 = vmax.f32 %v1537, %v1481
  %v1542 = vmax.f32 %v1538, %v1482
  %v1543 = vmax.f32 %v1539, %v1483
  %v1544 = vmax.f32 %v1540, %v1484
  %v1545 = vmax.f32 %v1541, %v1485
  %v1546 = vmax.f32 %v1542, %v1486
  %v1547 = vmax.f32 %v1543, %v1487
  %v1548 = vmax.f32 %v1544, %v1488
  %v1549 = vmax.f32 %v1545, %v1489
  %v1550 = vmax.f32 %v1546, %v1490
  %v1551 = vmax.f32 %v1547, %v1491
  %v1552 = vmax.f32 %v1548, %v1492
  %v1553 = vmax.f32 %v1549, %v1493
  %v1554 = vmax.f32 %v1550, %v1494
  %v1555 = vmax.f32 %v1551, %v1495
  %v1556 = vmax.f32 %v1552, %v1496
  %v1557 = vmax.f32 %v1553, %v1497
  %v1558 = vmax.f32 %v1554, %v1498
  %v1559 = vmax.f32 %v1555, %v1556
  %v1560 = vmax.f32 %v1557, %v1558
  %v1561 = vmax.f32 %v1559, %v1560
  %1562 = vmax.xlane.f32.xlu0 %v1561
  %v1563 = vpop.xlane.xlu0 %1562
  %v1564 = vrot.slane %v1563, 4
  %v1565 = vmax.f32 %v1563, %v1564
  %v1566 = vrot.slane %v1565, 2
  %v1567 = vmax.f32 %v1565, %v1566
  %v1568 = vrot.slane %v1567, 1
  %v1569 = vmax.f32 %v1567, %v1568
  %s1570 = vtos %v1569
  %v1571 = vstv %s1570
  %v1572 = vmax.f32 %v1434, %v1571
  %1573 = vst [vmem:[%s6] sm:$0x1] %v1572
  // Predicated region
  $region26: #{_unnamed_function_.5} parent=0 // pred_check
    _
  $region27: #{_unnamed_function_.5} parent=0 // pred_check_branch
    %1575 = sbr.rel (0) target = $region29
  $region28: #{_unnamed_function_.5} parent=0 // pred_region
    _
  $region29: #{_unnamed_function_.5} parent=0 // pred_fallthru
    _
  // Predicated region
  $region30: #{_unnamed_function_.5} parent=0 // pred_check
    _
  $region31: #{_unnamed_function_.5} parent=0 // pred_check_branch
    %1577 = sbr.rel (0) target = $region33
  $region32: #{_unnamed_function_.5} parent=0 // pred_region
    _
  $region33: #{_unnamed_function_.5} parent=0 // pred_fallthru
    _
  // Predicated region
  $region34: #{_unnamed_function_.5} parent=0 // pred_check
    _
  $region35: #{_unnamed_function_.5} parent=0 // pred_check_branch
    %1579 = sbr.rel (0) target = $region37
  $region36: #{_unnamed_function_.5} parent=0 // pred_region
    _
  $region37: #{_unnamed_function_.5} parent=0 // pred_fallthru
    _
  // Predicated region
  $region38: #{_unnamed_function_.5} parent=0 // pred_check
    _
  $region39: #{_unnamed_function_.5} parent=0 // pred_check_branch
    %1581 = sbr.rel (0) target = $region41
  $region40: #{_unnamed_function_.5} parent=0 // pred_region
    _
  $region41: #{_unnamed_function_.5} parent=0 // pred_fallthru
    _

// kernel: _unnamed_function_.7
$region0: #{_unnamed_function_.7}
  #allocation0 [shape = 'u32[]', space=smem, size = 0x4, offset = 0x4, fixed_abs, tag = 'smem constant byte address 0x4 - core index']
  #allocation1 [shape = 'u32[144,128]{1,0:T(1,128)}', space=vmem, size = 0x12000, scoped, tag = 'internal scratch']
  #allocation2 [shape = 'bf16[512,128]{1,0:T(16,128)(2,1)}', space=vmem, size = 0x20000, scoped, tag = 'scratch operand']
  #allocation3 [shape = 'f32[1,1]{1,0:T(1,128)S(6)}', space=smem, size = 0x200, scoped, tag = 'scoped memory for _unnamed_function_.7']
  %s0 = inlined_call_operand.<no memory space> [shape: f32[1,1], index: 0, kind: input, shape index: {}]
  %s1 = inlined_call_operand.vmem [shape: bf16[512,128], index: 1, kind: input, shape index: {}]
  %s2 = inlined_call_operand.vmem [shape: bf16[128,128], index: 2, kind: input, shape index: {}]
  %s3 = inlined_call_operand.vmem [shape: f32[1,128], index: 3, kind: input, shape index: {}]
  %s4 = inlined_call_operand.vmem [shape: f32[1,128], index: 4, kind: input, shape index: {}]
  %s5 = inlined_call_operand.vmem [shape: f32[512,128], index: 5, kind: input, shape index: {}]
  %s6 = inlined_call_operand.vmem [shape: f32[512,128], index: 6, kind: output, shape index: {0}]
  %s7 = inlined_call_operand.vmem [shape: f32[1,1,128], index: 7, kind: output, shape index: {1}]
  %8 = xla_tuple %s6, %s7
  %s9 = sld [smem:[#allocation0]]
  $region46: #{_unnamed_function_.7} parent=0
    _
  %s11 = ssub.s32 1, %s9
  %s12 = scalar_select 0, %s11, %s9
  %13 = sst [smem:[#allocation3]] %s0
  // Predicated region
  $region2: #{_unnamed_function_.7} parent=0 // pred_check
    _
  $region3: #{_unnamed_function_.7} parent=0 // pred_check_branch
    %15 = sbr.rel (0) target = $region5
  $region4: #{_unnamed_function_.7} parent=0 // pred_region
    _
  $region5: #{_unnamed_function_.7} parent=0 // pred_fallthru
    _
  // Predicated region
  $region6: #{_unnamed_function_.7} parent=0 // pred_check
    _
  $region7: #{_unnamed_function_.7} parent=0 // pred_check_branch
    %17 = sbr.rel (0) target = $region9
  $region8: #{_unnamed_function_.7} parent=0 // pred_region
    _
  $region9: #{_unnamed_function_.7} parent=0 // pred_fallthru
    _
  // Predicated region
  $region10: #{_unnamed_function_.7} parent=0 // pred_check
    _
  $region11: #{_unnamed_function_.7} parent=0 // pred_check_branch
    %19 = sbr.rel (0) target = $region13
  $region12: #{_unnamed_function_.7} parent=0 // pred_region
    _
  $region13: #{_unnamed_function_.7} parent=0 // pred_fallthru
    _
  // Predicated region
  $region14: #{_unnamed_function_.7} parent=0 // pred_check
    _
  $region15: #{_unnamed_function_.7} parent=0 // pred_check_branch
    %21 = sbr.rel (0) target = $region17
  $region16: #{_unnamed_function_.7} parent=0 // pred_region
    _
  $region17: #{_unnamed_function_.7} parent=0 // pred_fallthru
    _
  // Predicated region
  $region18: #{_unnamed_function_.7} parent=0 // pred_check
    _
  $region19: #{_unnamed_function_.7} parent=0 // pred_check_branch
    %23 = sbr.rel (0) target = $region21
  $region20: #{_unnamed_function_.7} parent=0 // pred_region
    _
  $region21: #{_unnamed_function_.7} parent=0 // pred_fallthru
    _
  // Predicated region
  $region22: #{_unnamed_function_.7} parent=0 // pred_check
    _
  $region23: #{_unnamed_function_.7} parent=0 // pred_check_branch
    %25 = sbr.rel (0) target = $region25
  $region24: #{_unnamed_function_.7} parent=0 // pred_region
    _
  $region25: #{_unnamed_function_.7} parent=0 // pred_fallthru
    _
  %s27 = sld [smem:[#allocation3]]
  %p28 = scmp.eq.s32.totalorder 0, 0
  // Predicated region
  $region26: #{_unnamed_function_.7} parent=0 // pred_check
    %p29 = pneg %p28
  $region27: #{_unnamed_function_.7} parent=0 // pred_check_branch
    %31 = sbr.rel (%p29) target = $region29
  $region28: #{_unnamed_function_.7} parent=0 // pred_region
    %v32 = vstv %s27
    %v33 = vrcp.pop %v32
    %s34 = vtos %v33
    %v35 = vld [vmem:[%s1] sm:$0xf]
    %v36 = vld [vmem:[%s1 + $0x4] sm:$0xf]
    %v37 = vld [vmem:[%s1 + $0x8] sm:$0xf]
    %v38 = vld [vmem:[%s1 + $0xc] sm:$0xf]
    %v39 = vld [vmem:[%s1 + $0x10] sm:$0xf]
    %v40 = vld [vmem:[%s1 + $0x14] sm:$0xf]
    %v41 = vld [vmem:[%s1 + $0x18] sm:$0xf]
    %v42 = vld [vmem:[%s1 + $0x1c] sm:$0xf]
    %v43 = vld [vmem:[%s1 + $0x20] sm:$0xf]
    %v44 = vld [vmem:[%s1 + $0x24] sm:$0xf]
    %v45 = vld [vmem:[%s1 + $0x28] sm:$0xf]
    %v46 = vld [vmem:[%s1 + $0x2c] sm:$0xf]
    %v47 = vld [vmem:[%s1 + $0x30] sm:$0xf]
    %v48 = vld [vmem:[%s1 + $0x34] sm:$0xf]
    %v49 = vld [vmem:[%s1 + $0x38] sm:$0xf]
    %v50 = vld [vmem:[%s1 + $0x3c] sm:$0xf]
    %v51 = vld [vmem:[%s1 + $0x40] sm:$0xf]
    %v52 = vld [vmem:[%s1 + $0x44] sm:$0xf]
    %v53 = vld [vmem:[%s1 + $0x48] sm:$0xf]
    %v54 = vld [vmem:[%s1 + $0x4c] sm:$0xf]
    %v55 = vld [vmem:[%s1 + $0x50] sm:$0xf]
    %v56 = vld [vmem:[%s1 + $0x54] sm:$0xf]
    %v57 = vld [vmem:[%s1 + $0x58] sm:$0xf]
    %v58 = vld [vmem:[%s1 + $0x5c] sm:$0xf]
    %v59 = vld [vmem:[%s1 + $0x60] sm:$0xf]
    %v60 = vld [vmem:[%s1 + $0x64] sm:$0xf]
    %v61 = vld [vmem:[%s1 + $0x68] sm:$0xf]
    %v62 = vld [vmem:[%s1 + $0x6c] sm:$0xf]
    %v63 = vld [vmem:[%s1 + $0x70] sm:$0xf]
    %v64 = vld [vmem:[%s1 + $0x74] sm:$0xf]
    %v65 = vld [vmem:[%s1 + $0x78] sm:$0xf]
    %v66 = vld [vmem:[%s1 + $0x7c] sm:$0xf]
    %v67 = vld [vmem:[%s1 + $0x80] sm:$0xf]
    %v68 = vld [vmem:[%s1 + $0x84] sm:$0xf]
    %v69 = vld [vmem:[%s1 + $0x88] sm:$0xf]
    %v70 = vld [vmem:[%s1 + $0x8c] sm:$0xf]
    %v71 = vld [vmem:[%s1 + $0x90] sm:$0xf]
    %v72 = vld [vmem:[%s1 + $0x94] sm:$0xf]
    %v73 = vld [vmem:[%s1 + $0x98] sm:$0xf]
    %v74 = vld [vmem:[%s1 + $0x9c] sm:$0xf]
    %v75 = vld [vmem:[%s1 + $0xa0] sm:$0xf]
    %v76 = vld [vmem:[%s1 + $0xa4] sm:$0xf]
    %v77 = vld [vmem:[%s1 + $0xa8] sm:$0xf]
    %v78 = vld [vmem:[%s1 + $0xac] sm:$0xf]
    %v79 = vld [vmem:[%s1 + $0xb0] sm:$0xf]
    %v80 = vld [vmem:[%s1 + $0xb4] sm:$0xf]
    %v81 = vld [vmem:[%s1 + $0xb8] sm:$0xf]
    %v82 = vld [vmem:[%s1 + $0xbc] sm:$0xf]
    %v83 = vld [vmem:[%s1 + $0xc0] sm:$0xf]
    %v84 = vld [vmem:[%s1 + $0xc4] sm:$0xf]
    %v85 = vld [vmem:[%s1 + $0xc8] sm:$0xf]
    %v86 = vld [vmem:[%s1 + $0xcc] sm:$0xf]
    %v87 = vld [vmem:[%s1 + $0xd0] sm:$0xf]
    %v88 = vld [vmem:[%s1 + $0xd4] sm:$0xf]
    %v89 = vld [vmem:[%s1 + $0xd8] sm:$0xf]
    %v90 = vld [vmem:[%s1 + $0xdc] sm:$0xf]
    %v91 = vld [vmem:[%s1 + $0xe0] sm:$0xf]
    %v92 = vld [vmem:[%s1 + $0xe4] sm:$0xf]
    %v93 = vld [vmem:[%s1 + $0xe8] sm:$0xf]
    %v94 = vld [vmem:[%s1 + $0xec] sm:$0xf]
    %v95 = vld [vmem:[%s1 + $0xf0] sm:$0xf]
    %v96 = vld [vmem:[%s1 + $0xf4] sm:$0xf]
    %v97 = vld [vmem:[%s1 + $0xf8] sm:$0xf]
    %v98 = vld [vmem:[%s1 + $0xfc] sm:$0xf]
    %v99 = vunpack.c.l.bf16 %v35
    %v100 = vunpack.c.l.bf16 %v36
    %v101 = vunpack.c.l.bf16 %v37
    %v102 = vunpack.c.l.bf16 %v38
    %v103 = vunpack.c.l.bf16 %v39
    %v104 = vunpack.c.l.bf16 %v40
    %v105 = vunpack.c.l.bf16 %v41
    %v106 = vunpack.c.l.bf16 %v42
    %v107 = vunpack.c.l.bf16 %v43
    %v108 = vunpack.c.l.bf16 %v44
    %v109 = vunpack.c.l.bf16 %v45
    %v110 = vunpack.c.l.bf16 %v46
    %v111 = vunpack.c.l.bf16 %v47
    %v112 = vunpack.c.l.bf16 %v48
    %v113 = vunpack.c.l.bf16 %v49
    %v114 = vunpack.c.l.bf16 %v50
    %v115 = vunpack.c.l.bf16 %v51
    %v116 = vunpack.c.l.bf16 %v52
    %v117 = vunpack.c.l.bf16 %v53
    %v118 = vunpack.c.l.bf16 %v54
    %v119 = vunpack.c.l.bf16 %v55
    %v120 = vunpack.c.l.bf16 %v56
    %v121 = vunpack.c.l.bf16 %v57
    %v122 = vunpack.c.l.bf16 %v58
    %v123 = vunpack.c.l.bf16 %v59
    %v124 = vunpack.c.l.bf16 %v60
    %v125 = vunpack.c.l.bf16 %v61
    %v126 = vunpack.c.l.bf16 %v62
    %v127 = vunpack.c.l.bf16 %v63
    %v128 = vunpack.c.l.bf16 %v64
    %v129 = vunpack.c.l.bf16 %v65
    %v130 = vunpack.c.l.bf16 %v66
    %v131 = vunpack.c.l.bf16 %v67
    %v132 = vunpack.c.l.bf16 %v68
    %v133 = vunpack.c.l.bf16 %v69
    %v134 = vunpack.c.l.bf16 %v70
    %v135 = vunpack.c.l.bf16 %v71
    %v136 = vunpack.c.l.bf16 %v72
    %v137 = vunpack.c.l.bf16 %v73
    %v138 = vunpack.c.l.bf16 %v74
    %v139 = vunpack.c.l.bf16 %v75
    %v140 = vunpack.c.l.bf16 %v76
    %v141 = vunpack.c.l.bf16 %v77
    %v142 = vunpack.c.l.bf16 %v78
    %v143 = vunpack.c.l.bf16 %v79
    %v144 = vunpack.c.l.bf16 %v80
    %v145 = vunpack.c.l.bf16 %v81
    %v146 = vunpack.c.l.bf16 %v82
    %v147 = vunpack.c.l.bf16 %v83
    %v148 = vunpack.c.l.bf16 %v84
    %v149 = vunpack.c.l.bf16 %v85
    %v150 = vunpack.c.l.bf16 %v86
    %v151 = vunpack.c.l.bf16 %v87
    %v152 = vunpack.c.l.bf16 %v88
    %v153 = vunpack.c.l.bf16 %v89
    %v154 = vunpack.c.l.bf16 %v90
    %v155 = vunpack.c.l.bf16 %v91
    %v156 = vunpack.c.l.bf16 %v92
    %v157 = vunpack.c.l.bf16 %v93
    %v158 = vunpack.c.l.bf16 %v94
    %v159 = vunpack.c.l.bf16 %v95
    %v160 = vunpack.c.l.bf16 %v96
    %v161 = vunpack.c.l.bf16 %v97
    %v162 = vunpack.c.l.bf16 %v98
    %v163 = vstv %s34
    %v164 = vmul.f32 %v99, %v163
    %v165 = vmul.f32 %v100, %v163
    %v166 = vmul.f32 %v101, %v163
    %v167 = vmul.f32 %v102, %v163
    %v168 = vmul.f32 %v103, %v163
    %v169 = vmul.f32 %v104, %v163
    %v170 = vmul.f32 %v105, %v163
    %v171 = vmul.f32 %v106, %v163
    %v172 = vmul.f32 %v107, %v163
    %v173 = vmul.f32 %v108, %v163
    %v174 = vmul.f32 %v109, %v163
    %v175 = vmul.f32 %v110, %v163
    %v176 = vmul.f32 %v111, %v163
    %v177 = vmul.f32 %v112, %v163
    %v178 = vmul.f32 %v113, %v163
    %v179 = vmul.f32 %v114, %v163
    %v180 = vmul.f32 %v115, %v163
    %v181 = vmul.f32 %v116, %v163
    %v182 = vmul.f32 %v117, %v163
    %v183 = vmul.f32 %v118, %v163
    %v184 = vmul.f32 %v119, %v163
    %v185 = vmul.f32 %v120, %v163
    %v186 = vmul.f32 %v121, %v163
    %v187 = vmul.f32 %v122, %v163
    %v188 = vmul.f32 %v123, %v163
    %v189 = vmul.f32 %v124, %v163
    %v190 = vmul.f32 %v125, %v163
    %v191 = vmul.f32 %v126, %v163
    %v192 = vmul.f32 %v127, %v163
    %v193 = vmul.f32 %v128, %v163
    %v194 = vmul.f32 %v129, %v163
    %v195 = vmul.f32 %v130, %v163
    %v196 = vmul.f32 %v131, %v163
    %v197 = vmul.f32 %v132, %v163
    %v198 = vmul.f32 %v133, %v163
    %v199 = vmul.f32 %v134, %v163
    %v200 = vmul.f32 %v135, %v163
    %v201 = vmul.f32 %v136, %v163
    %v202 = vmul.f32 %v137, %v163
    %v203 = vmul.f32 %v138, %v163
    %v204 = vmul.f32 %v139, %v163
    %v205 = vmul.f32 %v140, %v163
    %v206 = vmul.f32 %v141, %v163
    %v207 = vmul.f32 %v142, %v163
    %v208 = vmul.f32 %v143, %v163
    %v209 = vmul.f32 %v144, %v163
    %v210 = vmul.f32 %v145, %v163
    %v211 = vmul.f32 %v146, %v163
    %v212 = vmul.f32 %v147, %v163
    %v213 = vmul.f32 %v148, %v163
    %v214 = vmul.f32 %v149, %v163
    %v215 = vmul.f32 %v150, %v163
    %v216 = vmul.f32 %v151, %v163
    %v217 = vmul.f32 %v152, %v163
    %v218 = vmul.f32 %v153, %v163
    %v219 = vmul.f32 %v154, %v163
    %v220 = vmul.f32 %v155, %v163
    %v221 = vmul.f32 %v156, %v163
    %v222 = vmul.f32 %v157, %v163
    %v223 = vmul.f32 %v158, %v163
    %v224 = vmul.f32 %v159, %v163
    %v225 = vmul.f32 %v160, %v163
    %v226 = vmul.f32 %v161, %v163
    %v227 = vmul.f32 %v162, %v163
    %v228 = vround.ne.pseudo %v164
    %v229 = vround.ne.pseudo %v165
    %v230 = vround.ne.pseudo %v166
    %v231 = vround.ne.pseudo %v167
    %v232 = vround.ne.pseudo %v168
    %v233 = vround.ne.pseudo %v169
    %v234 = vround.ne.pseudo %v170
    %v235 = vround.ne.pseudo %v171
    %v236 = vround.ne.pseudo %v172
    %v237 = vround.ne.pseudo %v173
    %v238 = vround.ne.pseudo %v174
    %v239 = vround.ne.pseudo %v175
    %v240 = vround.ne.pseudo %v176
    %v241 = vround.ne.pseudo %v177
    %v242 = vround.ne.pseudo %v178
    %v243 = vround.ne.pseudo %v179
    %v244 = vround.ne.pseudo %v180
    %v245 = vround.ne.pseudo %v181
    %v246 = vround.ne.pseudo %v182
    %v247 = vround.ne.pseudo %v183
    %v248 = vround.ne.pseudo %v184
    %v249 = vround.ne.pseudo %v185
    %v250 = vround.ne.pseudo %v186
    %v251 = vround.ne.pseudo %v187
    %v252 = vround.ne.pseudo %v188
    %v253 = vround.ne.pseudo %v189
    %v254 = vround.ne.pseudo %v190
    %v255 = vround.ne.pseudo %v191
    %v256 = vround.ne.pseudo %v192
    %v257 = vround.ne.pseudo %v193
    %v258 = vround.ne.pseudo %v194
    %v259 = vround.ne.pseudo %v195
    %v260 = vround.ne.pseudo %v196
    %v261 = vround.ne.pseudo %v197
    %v262 = vround.ne.pseudo %v198
    %v263 = vround.ne.pseudo %v199
    %v264 = vround.ne.pseudo %v200
    %v265 = vround.ne.pseudo %v201
    %v266 = vround.ne.pseudo %v202
    %v267 = vround.ne.pseudo %v203
    %v268 = vround.ne.pseudo %v204
    %v269 = vround.ne.pseudo %v205
    %v270 = vround.ne.pseudo %v206
    %v271 = vround.ne.pseudo %v207
    %v272 = vround.ne.pseudo %v208
    %v273 = vround.ne.pseudo %v209
    %v274 = vround.ne.pseudo %v210
    %v275 = vround.ne.pseudo %v211
    %v276 = vround.ne.pseudo %v212
    %v277 = vround.ne.pseudo %v213
    %v278 = vround.ne.pseudo %v214
    %v279 = vround.ne.pseudo %v215
    %v280 = vround.ne.pseudo %v216
    %v281 = vround.ne.pseudo %v217
    %v282 = vround.ne.pseudo %v218
    %v283 = vround.ne.pseudo %v219
    %v284 = vround.ne.pseudo %v220
    %v285 = vround.ne.pseudo %v221
    %v286 = vround.ne.pseudo %v222
    %v287 = vround.ne.pseudo %v223
    %v288 = vround.ne.pseudo %v224
    %v289 = vround.ne.pseudo %v225
    %v290 = vround.ne.pseudo %v226
    %v291 = vround.ne.pseudo %v227
    %v292 = vmax.f32 %v228, -127.0
    %v293 = vmax.f32 %v229, -127.0
    %v294 = vmax.f32 %v230, -127.0
    %v295 = vmax.f32 %v231, -127.0
    %v296 = vmax.f32 %v232, -127.0
    %v297 = vmax.f32 %v233, -127.0
    %v298 = vmax.f32 %v234, -127.0
    %v299 = vmax.f32 %v235, -127.0
    %v300 = vmax.f32 %v236, -127.0
    %v301 = vmax.f32 %v237, -127.0
    %v302 = vmax.f32 %v238, -127.0
    %v303 = vmax.f32 %v239, -127.0
    %v304 = vmax.f32 %v240, -127.0
    %v305 = vmax.f32 %v241, -127.0
    %v306 = vmax.f32 %v242, -127.0
    %v307 = vmax.f32 %v243, -127.0
    %v308 = vmax.f32 %v244, -127.0
    %v309 = vmax.f32 %v245, -127.0
    %v310 = vmax.f32 %v246, -127.0
    %v311 = vmax.f32 %v247, -127.0
    %v312 = vmax.f32 %v248, -127.0
    %v313 = vmax.f32 %v249, -127.0
    %v314 = vmax.f32 %v250, -127.0
    %v315 = vmax.f32 %v251, -127.0
    %v316 = vmax.f32 %v252, -127.0
    %v317 = vmax.f32 %v253, -127.0
    %v318 = vmax.f32 %v254, -127.0
    %v319 = vmax.f32 %v255, -127.0
    %v320 = vmax.f32 %v256, -127.0
    %v321 = vmax.f32 %v257, -127.0
    %v322 = vmax.f32 %v258, -127.0
    %v323 = vmax.f32 %v259, -127.0
    %v324 = vmax.f32 %v260, -127.0
    %v325 = vmax.f32 %v261, -127.0
    %v326 = vmax.f32 %v262, -127.0
    %v327 = vmax.f32 %v263, -127.0
    %v328 = vmax.f32 %v264, -127.0
    %v329 = vmax.f32 %v265, -127.0
    %v330 = vmax.f32 %v266, -127.0
    %v331 = vmax.f32 %v267, -127.0
    %v332 = vmax.f32 %v268, -127.0
    %v333 = vmax.f32 %v269, -127.0
    %v334 = vmax.f32 %v270, -127.0
    %v335 = vmax.f32 %v271, -127.0
    %v336 = vmax.f32 %v272, -127.0
    %v337 = vmax.f32 %v273, -127.0
    %v338 = vmax.f32 %v274, -127.0
    %v339 = vmax.f32 %v275, -127.0
    %v340 = vmax.f32 %v276, -127.0
    %v341 = vmax.f32 %v277, -127.0
    %v342 = vmax.f32 %v278, -127.0
    %v343 = vmax.f32 %v279, -127.0
    %v344 = vmax.f32 %v280, -127.0
    %v345 = vmax.f32 %v281, -127.0
    %v346 = vmax.f32 %v282, -127.0
    %v347 = vmax.f32 %v283, -127.0
    %v348 = vmax.f32 %v284, -127.0
    %v349 = vmax.f32 %v285, -127.0
    %v350 = vmax.f32 %v286, -127.0
    %v351 = vmax.f32 %v287, -127.0
    %v352 = vmax.f32 %v288, -127.0
    %v353 = vmax.f32 %v289, -127.0
    %v354 = vmax.f32 %v290, -127.0
    %v355 = vmax.f32 %v291, -127.0
    %v356 = vmin.f32 %v292, 127.0
    %v357 = vmin.f32 %v293, 127.0
    %v358 = vmin.f32 %v294, 127.0
    %v359 = vmin.f32 %v295, 127.0
    %v360 = vmin.f32 %v296, 127.0
    %v361 = vmin.f32 %v297, 127.0
    %v362 = vmin.f32 %v298, 127.0
    %v363 = vmin.f32 %v299, 127.0
    %v364 = vmin.f32 %v300, 127.0
    %v365 = vmin.f32 %v301, 127.0
    %v366 = vmin.f32 %v302, 127.0
    %v367 = vmin.f32 %v303, 127.0
    %v368 = vmin.f32 %v304, 127.0
    %v369 = vmin.f32 %v305, 127.0
    %v370 = vmin.f32 %v306, 127.0
    %v371 = vmin.f32 %v307, 127.0
    %v372 = vmin.f32 %v308, 127.0
    %v373 = vmin.f32 %v309, 127.0
    %v374 = vmin.f32 %v310, 127.0
    %v375 = vmin.f32 %v311, 127.0
    %v376 = vmin.f32 %v312, 127.0
    %v377 = vmin.f32 %v313, 127.0
    %v378 = vmin.f32 %v314, 127.0
    %v379 = vmin.f32 %v315, 127.0
    %v380 = vmin.f32 %v316, 127.0
    %v381 = vmin.f32 %v317, 127.0
    %v382 = vmin.f32 %v318, 127.0
    %v383 = vmin.f32 %v319, 127.0
    %v384 = vmin.f32 %v320, 127.0
    %v385 = vmin.f32 %v321, 127.0
    %v386 = vmin.f32 %v322, 127.0
    %v387 = vmin.f32 %v323, 127.0
    %v388 = vmin.f32 %v324, 127.0
    %v389 = vmin.f32 %v325, 127.0
    %v390 = vmin.f32 %v326, 127.0
    %v391 = vmin.f32 %v327, 127.0
    %v392 = vmin.f32 %v328, 127.0
    %v393 = vmin.f32 %v329, 127.0
    %v394 = vmin.f32 %v330, 127.0
    %v395 = vmin.f32 %v331, 127.0
    %v396 = vmin.f32 %v332, 127.0
    %v397 = vmin.f32 %v333, 127.0
    %v398 = vmin.f32 %v334, 127.0
    %v399 = vmin.f32 %v335, 127.0
    %v400 = vmin.f32 %v336, 127.0
    %v401 = vmin.f32 %v337, 127.0
    %v402 = vmin.f32 %v338, 127.0
    %v403 = vmin.f32 %v339, 127.0
    %v404 = vmin.f32 %v340, 127.0
    %v405 = vmin.f32 %v341, 127.0
    %v406 = vmin.f32 %v342, 127.0
    %v407 = vmin.f32 %v343, 127.0
    %v408 = vmin.f32 %v344, 127.0
    %v409 = vmin.f32 %v345, 127.0
    %v410 = vmin.f32 %v346, 127.0
    %v411 = vmin.f32 %v347, 127.0
    %v412 = vmin.f32 %v348, 127.0
    %v413 = vmin.f32 %v349, 127.0
    %v414 = vmin.f32 %v350, 127.0
    %v415 = vmin.f32 %v351, 127.0
    %v416 = vmin.f32 %v352, 127.0
    %v417 = vmin.f32 %v353, 127.0
    %v418 = vmin.f32 %v354, 127.0
    %v419 = vmin.f32 %v355, 127.0
    %v420 = vpack.c.bf16 %v357, %v356
    %v421 = vpack.c.bf16 %v359, %v358
    %v422 = vpack.c.bf16 %v361, %v360
    %v423 = vpack.c.bf16 %v363, %v362
    %v424 = vpack.c.bf16 %v365, %v364
    %v425 = vpack.c.bf16 %v367, %v366
    %v426 = vpack.c.bf16 %v369, %v368
    %v427 = vpack.c.bf16 %v371, %v370
    %v428 = vpack.c.bf16 %v373, %v372
    %v429 = vpack.c.bf16 %v375, %v374
    %v430 = vpack.c.bf16 %v377, %v376
    %v431 = vpack.c.bf16 %v379, %v378
    %v432 = vpack.c.bf16 %v381, %v380
    %v433 = vpack.c.bf16 %v383, %v382
    %v434 = vpack.c.bf16 %v385, %v384
    %v435 = vpack.c.bf16 %v387, %v386
    %v436 = vpack.c.bf16 %v389, %v388
    %v437 = vpack.c.bf16 %v391, %v390
    %v438 = vpack.c.bf16 %v393, %v392
    %v439 = vpack.c.bf16 %v395, %v394
    %v440 = vpack.c.bf16 %v397, %v396
    %v441 = vpack.c.bf16 %v399, %v398
    %v442 = vpack.c.bf16 %v401, %v400
    %v443 = vpack.c.bf16 %v403, %v402
    %v444 = vpack.c.bf16 %v405, %v404
    %v445 = vpack.c.bf16 %v407, %v406
    %v446 = vpack.c.bf16 %v409, %v408
    %v447 = vpack.c.bf16 %v411, %v410
    %v448 = vpack.c.bf16 %v413, %v412
    %v449 = vpack.c.bf16 %v415, %v414
    %v450 = vpack.c.bf16 %v417, %v416
    %v451 = vpack.c.bf16 %v419, %v418
    %452 = vst [vmem:[#allocation2] sm:$0xff] %v420
    %453 = vst [vmem:[#allocation2 + $0x8] sm:$0xff] %v421
    %454 = vst [vmem:[#allocation2 + $0x10] sm:$0xff] %v422
    %455 = vst [vmem:[#allocation2 + $0x18] sm:$0xff] %v423
    %456 = vst [vmem:[#allocation2 + $0x20] sm:$0xff] %v424
    %457 = vst [vmem:[#allocation2 + $0x28] sm:$0xff] %v425
    %458 = vst [vmem:[#allocation2 + $0x30] sm:$0xff] %v426
    %459 = vst [vmem:[#allocation2 + $0x38] sm:$0xff] %v427
    %460 = vst [vmem:[#allocation2 + $0x40] sm:$0xff] %v428
    %461 = vst [vmem:[#allocation2 + $0x48] sm:$0xff] %v429
    %462 = vst [vmem:[#allocation2 + $0x50] sm:$0xff] %v430
    %463 = vst [vmem:[#allocation2 + $0x58] sm:$0xff] %v431
    %464 = vst [vmem:[#allocation2 + $0x60] sm:$0xff] %v432
    %465 = vst [vmem:[#allocation2 + $0x68] sm:$0xff] %v433
    %466 = vst [vmem:[#allocation2 + $0x70] sm:$0xff] %v434
    %467 = vst [vmem:[#allocation2 + $0x78] sm:$0xff] %v435
    %468 = vst [vmem:[#allocation2 + $0x80] sm:$0xff] %v436
    %469 = vst [vmem:[#allocation2 + $0x88] sm:$0xff] %v437
    %470 = vst [vmem:[#allocation2 + $0x90] sm:$0xff] %v438
    %471 = vst [vmem:[#allocation2 + $0x98] sm:$0xff] %v439
    %472 = vst [vmem:[#allocation2 + $0xa0] sm:$0xff] %v440
    %473 = vst [vmem:[#allocation2 + $0xa8] sm:$0xff] %v441
    %474 = vst [vmem:[#allocation2 + $0xb0] sm:$0xff] %v442
    %475 = vst [vmem:[#allocation2 + $0xb8] sm:$0xff] %v443
    %476 = vst [vmem:[#allocation2 + $0xc0] sm:$0xff] %v444
    %477 = vst [vmem:[#allocation2 + $0xc8] sm:$0xff] %v445
    %478 = vst [vmem:[#allocation2 + $0xd0] sm:$0xff] %v446
    %479 = vst [vmem:[#allocation2 + $0xd8] sm:$0xff] %v447
    %480 = vst [vmem:[#allocation2 + $0xe0] sm:$0xff] %v448
    %481 = vst [vmem:[#allocation2 + $0xe8] sm:$0xff] %v449
    %482 = vst [vmem:[#allocation2 + $0xf0] sm:$0xff] %v450
    %483 = vst [vmem:[#allocation2 + $0xf8] sm:$0xff] %v451
    %484 = vst [vmem:[%s7] sm:$0x1] 0.0
  $region29: #{_unnamed_function_.7} parent=0 // pred_fallthru
    _
  %v485 = vld [vmem:[#allocation2] sm:$0xff]
  %v486 = vld [vmem:[#allocation2 + $0x8] sm:$0xff]
  %v487 = vld [vmem:[#allocation2 + $0x10] sm:$0xff]
  %v488 = vld [vmem:[#allocation2 + $0x18] sm:$0xff]
  %v489 = vld [vmem:[#allocation2 + $0x20] sm:$0xff]
  %v490 = vld [vmem:[#allocation2 + $0x28] sm:$0xff]
  %v491 = vld [vmem:[#allocation2 + $0x30] sm:$0xff]
  %v492 = vld [vmem:[#allocation2 + $0x38] sm:$0xff]
  %v493 = vld [vmem:[#allocation2 + $0x40] sm:$0xff]
  %v494 = vld [vmem:[#allocation2 + $0x48] sm:$0xff]
  %v495 = vld [vmem:[#allocation2 + $0x50] sm:$0xff]
  %v496 = vld [vmem:[#allocation2 + $0x58] sm:$0xff]
  %v497 = vld [vmem:[#allocation2 + $0x60] sm:$0xff]
  %v498 = vld [vmem:[#allocation2 + $0x68] sm:$0xff]
  %v499 = vld [vmem:[#allocation2 + $0x70] sm:$0xff]
  %v500 = vld [vmem:[#allocation2 + $0x78] sm:$0xff]
  %v501 = vld [vmem:[#allocation2 + $0x80] sm:$0xff]
  %v502 = vld [vmem:[#allocation2 + $0x88] sm:$0xff]
  %v503 = vld [vmem:[#allocation2 + $0x90] sm:$0xff]
  %v504 = vld [vmem:[#allocation2 + $0x98] sm:$0xff]
  %v505 = vld [vmem:[#allocation2 + $0xa0] sm:$0xff]
  %v506 = vld [vmem:[#allocation2 + $0xa8] sm:$0xff]
  %v507 = vld [vmem:[#allocation2 + $0xb0] sm:$0xff]
  %v508 = vld [vmem:[#allocation2 + $0xb8] sm:$0xff]
  %v509 = vld [vmem:[#allocation2 + $0xc0] sm:$0xff]
  %v510 = vld [vmem:[#allocation2 + $0xc8] sm:$0xff]
  %v511 = vld [vmem:[#allocation2 + $0xd0] sm:$0xff]
  %v512 = vld [vmem:[#allocation2 + $0xd8] sm:$0xff]
  %v513 = vld [vmem:[#allocation2 + $0xe0] sm:$0xff]
  %v514 = vld [vmem:[#allocation2 + $0xe8] sm:$0xff]
  %v515 = vld [vmem:[#allocation2 + $0xf0] sm:$0xff]
  %v516 = vld [vmem:[#allocation2 + $0xf8] sm:$0xff]
  %v517 = vld [vmem:[%s2] sm:$0xf]
  %v518 = vld [vmem:[%s2 + $0x4] sm:$0xf]
  %v519 = vld [vmem:[%s2 + $0x8] sm:$0xf]
  %v520 = vld [vmem:[%s2 + $0xc] sm:$0xf]
  %v521 = vld [vmem:[%s2 + $0x10] sm:$0xf]
  %v522 = vld [vmem:[%s2 + $0x14] sm:$0xf]
  %v523 = vld [vmem:[%s2 + $0x18] sm:$0xf]
  %v524 = vld [vmem:[%s2 + $0x1c] sm:$0xf]
  %v525 = vld [vmem:[%s2 + $0x20] sm:$0xf]
  %v526 = vld [vmem:[%s2 + $0x24] sm:$0xf]
  %v527 = vld [vmem:[%s2 + $0x28] sm:$0xf]
  %v528 = vld [vmem:[%s2 + $0x2c] sm:$0xf]
  %v529 = vld [vmem:[%s2 + $0x30] sm:$0xf]
  %v530 = vld [vmem:[%s2 + $0x34] sm:$0xf]
  %v531 = vld [vmem:[%s2 + $0x38] sm:$0xf]
  %v532 = vld [vmem:[%s2 + $0x3c] sm:$0xf]
  %v549 = vunpack.c.l.b16 %v517
  %v550 = vunpack.c.l.b16 %v518
  %v551 = vunpack.c.l.b16 %v519
  %v552 = vunpack.c.l.b16 %v520
  %v553 = vunpack.c.l.b16 %v521
  %v554 = vunpack.c.l.b16 %v522
  %v555 = vunpack.c.l.b16 %v523
  %v556 = vunpack.c.l.b16 %v524
  %v557 = vunpack.c.l.b16 %v525
  %v558 = vunpack.c.l.b16 %v526
  %v559 = vunpack.c.l.b16 %v527
  %v560 = vunpack.c.l.b16 %v528
  %v561 = vunpack.c.l.b16 %v529
  %v562 = vunpack.c.l.b16 %v530
  %v563 = vunpack.c.l.b16 %v531
  %v564 = vunpack.c.l.b16 %v532
  %v565 = vpack.c.b16 %v550, %v549
  %v566 = vpack.c.b16 %v552, %v551
  %v567 = vpack.c.b16 %v554, %v553
  %v568 = vpack.c.b16 %v556, %v555
  %v569 = vpack.c.b16 %v558, %v557
  %v570 = vpack.c.b16 %v560, %v559
  %v571 = vpack.c.b16 %v562, %v561
  %v572 = vpack.c.b16 %v564, %v563
  %581 = vmatprep.subr.bf16.mxu0 0
  %582 = vmatpush1.bf16.msra.mxu0 %v565
  %583 = vmatprep.subr.bf16.mxu0 0
  %584 = vmatpush1.bf16.msra.mxu0 %v566
  %585 = vmatprep.subr.bf16.mxu0 0
  %586 = vmatpush1.bf16.msra.mxu0 %v567
  %587 = vmatprep.subr.bf16.mxu0 0
  %588 = vmatpush1.bf16.msra.mxu0 %v568
  %589 = vmatprep.subr.bf16.mxu0 0
  %590 = vmatpush1.bf16.msra.mxu0 %v569
  %591 = vmatprep.subr.bf16.mxu0 0
  %592 = vmatpush1.bf16.msra.mxu0 %v570
  %593 = vmatprep.subr.bf16.mxu0 0
  %594 = vmatpush1.bf16.msra.mxu0 %v571
  %595 = vmatprep.subr.bf16.mxu0 0
  %596 = vmatpush1.bf16.msra.mxu0 %v572
  %597 = vmatprep.subr.bf16.mxu0 0
  %598 = vmatpush1.bf16.msra.mxu0 0
  %599 = vmatprep.subr.bf16.mxu0 0
  %600 = vmatpush1.bf16.msra.mxu0 0
  %601 = vmatprep.subr.bf16.mxu0 0
  %602 = vmatpush1.bf16.msra.mxu0 0
  %603 = vmatprep.subr.bf16.mxu0 0
  %604 = vmatpush1.bf16.msra.mxu0 0
  %605 = vmatprep.subr.bf16.mxu0 0
  %606 = vmatpush1.bf16.msra.mxu0 0
  %607 = vmatprep.subr.bf16.mxu0 0
  %608 = vmatpush1.bf16.msra.mxu0 0
  %609 = vmatprep.subr.bf16.mxu0 0
  %610 = vmatpush1.bf16.msra.mxu0 0
  %611 = vmatprep.subr.bf16.mxu0 0
  %612 = vmatpush1.bf16.msra.mxu0 0
  %613 = vmatprep.mubr.bf16.mxu0 0
  %614 = vmatmul.mubr.bf16.gmra.mrb[0].mxu0 %v485
  %v615 = vpop.f32.mrb[0].mxu0
  %v616 = vadd.f32 0.0, %v615
  %v617 = vpop.f32.mrb[0].mxu0
  %v618 = vpop.f32.mrb[0].mxu0
  %v619 = vadd.f32 0.0, %v618
  %v620 = vpop.f32.mrb[0].mxu0
  %621 = vmatprep.mubr.bf16.mxu0 0
  %622 = vmatmul.mubr.bf16.gmra.mrb[0].mxu0 %v486
  %v623 = vpop.f32.mrb[0].mxu0
  %v624 = vadd.f32 0.0, %v623
  %v625 = vpop.f32.mrb[0].mxu0
  %v626 = vpop.f32.mrb[0].mxu0
  %v627 = vadd.f32 0.0, %v626
  %v628 = vpop.f32.mrb[0].mxu0
  %629 = vmatprep.mubr.bf16.mxu0 0
  %630 = vmatmul.mubr.bf16.gmra.mrb[0].mxu0 %v487
  %v631 = vpop.f32.mrb[0].mxu0
  %v632 = vadd.f32 0.0, %v631
  %v633 = vpop.f32.mrb[0].mxu0
  %v634 = vpop.f32.mrb[0].mxu0
  %v635 = vadd.f32 0.0, %v634
  %v636 = vpop.f32.mrb[0].mxu0
  %637 = vmatprep.mubr.bf16.mxu0 0
  %638 = vmatmul.mubr.bf16.gmra.mrb[0].mxu0 %v488
  %v639 = vpop.f32.mrb[0].mxu0
  %v640 = vadd.f32 0.0, %v639
  %v641 = vpop.f32.mrb[0].mxu0
  %v642 = vpop.f32.mrb[0].mxu0
  %v643 = vadd.f32 0.0, %v642
  %v644 = vpop.f32.mrb[0].mxu0
  %645 = vmatprep.mubr.bf16.mxu0 0
  %646 = vmatmul.mubr.bf16.gmra.mrb[0].mxu0 %v489
  %v647 = vpop.f32.mrb[0].mxu0
  %v648 = vadd.f32 0.0, %v647
  %v649 = vpop.f32.mrb[0].mxu0
  %v650 = vpop.f32.mrb[0].mxu0
  %v651 = vadd.f32 0.0, %v650
  %v652 = vpop.f32.mrb[0].mxu0
  %653 = vmatprep.mubr.bf16.mxu0 0
  %654 = vmatmul.mubr.bf16.gmra.mrb[0].mxu0 %v490
  %v655 = vpop.f32.mrb[0].mxu0
  %v656 = vadd.f32 0.0, %v655
  %v657 = vpop.f32.mrb[0].mxu0
  %v658 = vpop.f32.mrb[0].mxu0
  %v659 = vadd.f32 0.0, %v658
  %v660 = vpop.f32.mrb[0].mxu0
  %661 = vmatprep.mubr.bf16.mxu0 0
  %662 = vmatmul.mubr.bf16.gmra.mrb[0].mxu0 %v491
  %v663 = vpop.f32.mrb[0].mxu0
  %v664 = vadd.f32 0.0, %v663
  %v665 = vpop.f32.mrb[0].mxu0
  %v666 = vpop.f32.mrb[0].mxu0
  %v667 = vadd.f32 0.0, %v666
  %v668 = vpop.f32.mrb[0].mxu0
  %669 = vmatprep.mubr.bf16.mxu0 0
  %670 = vmatmul.mubr.bf16.gmra.mrb[0].mxu0 %v492
  %v671 = vpop.f32.mrb[0].mxu0
  %v672 = vadd.f32 0.0, %v671
  %v673 = vpop.f32.mrb[0].mxu0
  %v674 = vpop.f32.mrb[0].mxu0
  %v675 = vadd.f32 0.0, %v674
  %v676 = vpop.f32.mrb[0].mxu0
  %677 = vmatprep.mubr.bf16.mxu0 0
  %678 = vmatmul.mubr.bf16.gmra.mrb[0].mxu0 %v493
  %v679 = vpop.f32.mrb[0].mxu0
  %v680 = vadd.f32 0.0, %v679
  %v681 = vpop.f32.mrb[0].mxu0
  %v682 = vpop.f32.mrb[0].mxu0
  %v683 = vadd.f32 0.0, %v682
  %v684 = vpop.f32.mrb[0].mxu0
  %685 = vmatprep.mubr.bf16.mxu0 0
  %686 = vmatmul.mubr.bf16.gmra.mrb[0].mxu0 %v494
  %v687 = vpop.f32.mrb[0].mxu0
  %v688 = vadd.f32 0.0, %v687
  %v689 = vpop.f32.mrb[0].mxu0
  %v690 = vpop.f32.mrb[0].mxu0
  %v691 = vadd.f32 0.0, %v690
  %v692 = vpop.f32.mrb[0].mxu0
  %693 = vmatprep.mubr.bf16.mxu0 0
  %694 = vmatmul.mubr.bf16.gmra.mrb[0].mxu0 %v495
  %v695 = vpop.f32.mrb[0].mxu0
  %v696 = vadd.f32 0.0, %v695
  %v697 = vpop.f32.mrb[0].mxu0
  %v698 = vpop.f32.mrb[0].mxu0
  %v699 = vadd.f32 0.0, %v698
  %v700 = vpop.f32.mrb[0].mxu0
  %701 = vmatprep.mubr.bf16.mxu0 0
  %702 = vmatmul.mubr.bf16.gmra.mrb[0].mxu0 %v496
  %v703 = vpop.f32.mrb[0].mxu0
  %v704 = vadd.f32 0.0, %v703
  %v705 = vpop.f32.mrb[0].mxu0
  %v706 = vpop.f32.mrb[0].mxu0
  %v707 = vadd.f32 0.0, %v706
  %v708 = vpop.f32.mrb[0].mxu0
  %709 = vmatprep.mubr.bf16.mxu0 0
  %710 = vmatmul.mubr.bf16.gmra.mrb[0].mxu0 %v497
  %v711 = vpop.f32.mrb[0].mxu0
  %v712 = vadd.f32 0.0, %v711
  %v713 = vpop.f32.mrb[0].mxu0
  %v714 = vpop.f32.mrb[0].mxu0
  %v715 = vadd.f32 0.0, %v714
  %v716 = vpop.f32.mrb[0].mxu0
  %717 = vmatprep.mubr.bf16.mxu0 0
  %718 = vmatmul.mubr.bf16.gmra.mrb[0].mxu0 %v498
  %v719 = vpop.f32.mrb[0].mxu0
  %v720 = vadd.f32 0.0, %v719
  %v721 = vpop.f32.mrb[0].mxu0
  %v722 = vpop.f32.mrb[0].mxu0
  %v723 = vadd.f32 0.0, %v722
  %v724 = vpop.f32.mrb[0].mxu0
  %725 = vmatprep.mubr.bf16.mxu0 0
  %726 = vmatmul.mubr.bf16.gmra.mrb[0].mxu0 %v499
  %v727 = vpop.f32.mrb[0].mxu0
  %v728 = vadd.f32 0.0, %v727
  %v729 = vpop.f32.mrb[0].mxu0
  %v730 = vpop.f32.mrb[0].mxu0
  %v731 = vadd.f32 0.0, %v730
  %v732 = vpop.f32.mrb[0].mxu0
  %733 = vmatprep.mubr.bf16.mxu0 0
  %734 = vmatmul.mubr.bf16.gmra.mrb[0].mxu0 %v500
  %v735 = vpop.f32.mrb[0].mxu0
  %v736 = vadd.f32 0.0, %v735
  %v737 = vpop.f32.mrb[0].mxu0
  %v738 = vpop.f32.mrb[0].mxu0
  %v739 = vadd.f32 0.0, %v738
  %v740 = vpop.f32.mrb[0].mxu0
  %741 = vmatprep.mubr.bf16.mxu0 0
  %742 = vmatmul.mubr.bf16.gmra.mrb[0].mxu0 %v501
  %v743 = vpop.f32.mrb[0].mxu0
  %v744 = vadd.f32 0.0, %v743
  %v745 = vpop.f32.mrb[0].mxu0
  %v746 = vpop.f32.mrb[0].mxu0
  %v747 = vadd.f32 0.0, %v746
  %v748 = vpop.f32.mrb[0].mxu0
  %749 = vmatprep.mubr.bf16.mxu0 0
  %750 = vmatmul.mubr.bf16.gmra.mrb[0].mxu0 %v502
  %v751 = vpop.f32.mrb[0].mxu0
  %v752 = vadd.f32 0.0, %v751
  %v753 = vpop.f32.mrb[0].mxu0
  %v754 = vpop.f32.mrb[0].mxu0
  %v755 = vadd.f32 0.0, %v754
  %v756 = vpop.f32.mrb[0].mxu0
  %757 = vmatprep.mubr.bf16.mxu0 0
  %758 = vmatmul.mubr.bf16.gmra.mrb[0].mxu0 %v503
  %v759 = vpop.f32.mrb[0].mxu0
  %v760 = vadd.f32 0.0, %v759
  %v761 = vpop.f32.mrb[0].mxu0
  %v762 = vpop.f32.mrb[0].mxu0
  %v763 = vadd.f32 0.0, %v762
  %v764 = vpop.f32.mrb[0].mxu0
  %765 = vmatprep.mubr.bf16.mxu0 0
  %766 = vmatmul.mubr.bf16.gmra.mrb[0].mxu0 %v504
  %v767 = vpop.f32.mrb[0].mxu0
  %v768 = vadd.f32 0.0, %v767
  %v769 = vpop.f32.mrb[0].mxu0
  %v770 = vpop.f32.mrb[0].mxu0
  %v771 = vadd.f32 0.0, %v770
  %v772 = vpop.f32.mrb[0].mxu0
  %773 = vmatprep.mubr.bf16.mxu0 0
  %774 = vmatmul.mubr.bf16.gmra.mrb[0].mxu0 %v505
  %v775 = vpop.f32.mrb[0].mxu0
  %v776 = vadd.f32 0.0, %v775
  %v777 = vpop.f32.mrb[0].mxu0
  %v778 = vpop.f32.mrb[0].mxu0
  %v779 = vadd.f32 0.0, %v778
  %v780 = vpop.f32.mrb[0].mxu0
  %781 = vmatprep.mubr.bf16.mxu0 0
  %782 = vmatmul.mubr.bf16.gmra.mrb[0].mxu0 %v506
  %v783 = vpop.f32.mrb[0].mxu0
  %v784 = vadd.f32 0.0, %v783
  %v785 = vpop.f32.mrb[0].mxu0
  %v786 = vpop.f32.mrb[0].mxu0
  %v787 = vadd.f32 0.0, %v786
  %v788 = vpop.f32.mrb[0].mxu0
  %789 = vmatprep.mubr.bf16.mxu0 0
  %790 = vmatmul.mubr.bf16.gmra.mrb[0].mxu0 %v507
  %v791 = vpop.f32.mrb[0].mxu0
  %v792 = vadd.f32 0.0, %v791
  %v793 = vpop.f32.mrb[0].mxu0
  %v794 = vpop.f32.mrb[0].mxu0
  %v795 = vadd.f32 0.0, %v794
  %v796 = vpop.f32.mrb[0].mxu0
  %797 = vmatprep.mubr.bf16.mxu0 0
  %798 = vmatmul.mubr.bf16.gmra.mrb[0].mxu0 %v508
  %v799 = vpop.f32.mrb[0].mxu0
  %v800 = vadd.f32 0.0, %v799
  %v801 = vpop.f32.mrb[0].mxu0
  %v802 = vpop.f32.mrb[0].mxu0
  %v803 = vadd.f32 0.0, %v802
  %v804 = vpop.f32.mrb[0].mxu0
  %805 = vmatprep.mubr.bf16.mxu0 0
  %806 = vmatmul.mubr.bf16.gmra.mrb[0].mxu0 %v509
  %v807 = vpop.f32.mrb[0].mxu0
  %v808 = vadd.f32 0.0, %v807
  %v809 = vpop.f32.mrb[0].mxu0
  %v810 = vpop.f32.mrb[0].mxu0
  %v811 = vadd.f32 0.0, %v810
  %v812 = vpop.f32.mrb[0].mxu0
  %813 = vmatprep.mubr.bf16.mxu0 0
  %814 = vmatmul.mubr.bf16.gmra.mrb[0].mxu0 %v510
  %v815 = vpop.f32.mrb[0].mxu0
  %v816 = vadd.f32 0.0, %v815
  %v817 = vpop.f32.mrb[0].mxu0
  %v818 = vpop.f32.mrb[0].mxu0
  %v819 = vadd.f32 0.0, %v818
  %v820 = vpop.f32.mrb[0].mxu0
  %821 = vmatprep.mubr.bf16.mxu0 0
  %822 = vmatmul.mubr.bf16.gmra.mrb[0].mxu0 %v511
  %v823 = vpop.f32.mrb[0].mxu0
  %v824 = vadd.f32 0.0, %v823
  %v825 = vpop.f32.mrb[0].mxu0
  %v826 = vpop.f32.mrb[0].mxu0
  %v827 = vadd.f32 0.0, %v826
  %v828 = vpop.f32.mrb[0].mxu0
  %829 = vmatprep.mubr.bf16.mxu0 0
  %830 = vmatmul.mubr.bf16.gmra.mrb[0].mxu0 %v512
  %v831 = vpop.f32.mrb[0].mxu0
  %v832 = vadd.f32 0.0, %v831
  %v833 = vpop.f32.mrb[0].mxu0
  %v834 = vpop.f32.mrb[0].mxu0
  %v835 = vadd.f32 0.0, %v834
  %v836 = vpop.f32.mrb[0].mxu0
  %837 = vmatprep.mubr.bf16.mxu0 0
  %838 = vmatmul.mubr.bf16.gmra.mrb[0].mxu0 %v513
  %v839 = vpop.f32.mrb[0].mxu0
  %v840 = vadd.f32 0.0, %v839
  %v841 = vpop.f32.mrb[0].mxu0
  %v842 = vpop.f32.mrb[0].mxu0
  %v843 = vadd.f32 0.0, %v842
  %v844 = vpop.f32.mrb[0].mxu0
  %845 = vmatprep.mubr.bf16.mxu0 0
  %846 = vmatmul.mubr.bf16.gmra.mrb[0].mxu0 %v514
  %v847 = vpop.f32.mrb[0].mxu0
  %v848 = vadd.f32 0.0, %v847
  %v849 = vpop.f32.mrb[0].mxu0
  %v850 = vpop.f32.mrb[0].mxu0
  %v851 = vadd.f32 0.0, %v850
  %v852 = vpop.f32.mrb[0].mxu0
  %853 = vmatprep.mubr.bf16.mxu0 0
  %854 = vmatmul.mubr.bf16.gmra.mrb[0].mxu0 %v515
  %v855 = vpop.f32.mrb[0].mxu0
  %v856 = vadd.f32 0.0, %v855
  %v857 = vpop.f32.mrb[0].mxu0
  %v858 = vpop.f32.mrb[0].mxu0
  %v859 = vadd.f32 0.0, %v858
  %v860 = vpop.f32.mrb[0].mxu0
  %861 = vmatprep.mubr.bf16.mxu0 0
  %862 = vmatmul.mubr.bf16.gmra.mrb[0].mxu0 %v516
  %v863 = vpop.f32.mrb[0].mxu0
  %v864 = vadd.f32 0.0, %v863
  %v865 = vpop.f32.mrb[0].mxu0
  %v866 = vpop.f32.mrb[0].mxu0
  %v867 = vadd.f32 0.0, %v866
  %v868 = vpop.f32.mrb[0].mxu0
  %869 = vdwg.mxu0
  %v870 = vld [vmem:[%s3] sm:$0x1]
  %v871 = vstv %s27
  %v872 = vmul.f32 %v870, %v871
  %v874 = vlaneseq
  %v875 = vshrl.u32 %v874, 7
  %v876 = vsub.s32 0, %v875
  %v877 = vrot.slane %v872, %v876
  %v879 = vmul.f32 %v616, %v877
  %v880 = vmul.f32 %v619, %v877
  %v881 = vmul.f32 %v624, %v877
  %v882 = vmul.f32 %v627, %v877
  %v883 = vmul.f32 %v632, %v877
  %v884 = vmul.f32 %v635, %v877
  %v885 = vmul.f32 %v640, %v877
  %v886 = vmul.f32 %v643, %v877
  %v887 = vmul.f32 %v648, %v877
  %v888 = vmul.f32 %v651, %v877
  %v889 = vmul.f32 %v656, %v877
  %v890 = vmul.f32 %v659, %v877
  %v891 = vmul.f32 %v664, %v877
  %v892 = vmul.f32 %v667, %v877
  %v893 = vmul.f32 %v672, %v877
  %v894 = vmul.f32 %v675, %v877
  %v895 = vmul.f32 %v680, %v877
  %v896 = vmul.f32 %v683, %v877
  %v897 = vmul.f32 %v688, %v877
  %v898 = vmul.f32 %v691, %v877
  %v899 = vmul.f32 %v696, %v877
  %v900 = vmul.f32 %v699, %v877
  %v901 = vmul.f32 %v704, %v877
  %v902 = vmul.f32 %v707, %v877
  %v903 = vmul.f32 %v712, %v877
  %v904 = vmul.f32 %v715, %v877
  %v905 = vmul.f32 %v720, %v877
  %v906 = vmul.f32 %v723, %v877
  %v907 = vmul.f32 %v728, %v877
  %v908 = vmul.f32 %v731, %v877
  %v909 = vmul.f32 %v736, %v877
  %v910 = vmul.f32 %v739, %v877
  %v911 = vmul.f32 %v744, %v877
  %v912 = vmul.f32 %v747, %v877
  %v913 = vmul.f32 %v752, %v877
  %v914 = vmul.f32 %v755, %v877
  %v915 = vmul.f32 %v760, %v877
  %v916 = vmul.f32 %v763, %v877
  %v917 = vmul.f32 %v768, %v877
  %v918 = vmul.f32 %v771, %v877
  %v919 = vmul.f32 %v776, %v877
  %v920 = vmul.f32 %v779, %v877
  %v921 = vmul.f32 %v784, %v877
  %v922 = vmul.f32 %v787, %v877
  %v923 = vmul.f32 %v792, %v877
  %v924 = vmul.f32 %v795, %v877
  %v925 = vmul.f32 %v800, %v877
  %v926 = vmul.f32 %v803, %v877
  %v927 = vmul.f32 %v808, %v877
  %v928 = vmul.f32 %v811, %v877
  %v929 = vmul.f32 %v816, %v877
  %v930 = vmul.f32 %v819, %v877
  %v931 = vmul.f32 %v824, %v877
  %v932 = vmul.f32 %v827, %v877
  %v933 = vmul.f32 %v832, %v877
  %v934 = vmul.f32 %v835, %v877
  %v935 = vmul.f32 %v840, %v877
  %v936 = vmul.f32 %v843, %v877
  %v937 = vmul.f32 %v848, %v877
  %v938 = vmul.f32 %v851, %v877
  %v939 = vmul.f32 %v856, %v877
  %v940 = vmul.f32 %v859, %v877
  %v941 = vmul.f32 %v864, %v877
  %v942 = vmul.f32 %v867, %v877
  %v943 = vld [vmem:[%s4] sm:$0x1]
  %v945 = vlaneseq
  %v946 = vshrl.u32 %v945, 7
  %v947 = vsub.s32 0, %v946
  %v948 = vrot.slane %v943, %v947
  %v950 = vadd.f32 %v879, %v948
  %v951 = vadd.f32 %v880, %v948
  %v952 = vadd.f32 %v881, %v948
  %v953 = vadd.f32 %v882, %v948
  %v954 = vadd.f32 %v883, %v948
  %v955 = vadd.f32 %v884, %v948
  %v956 = vadd.f32 %v885, %v948
  %v957 = vadd.f32 %v886, %v948
  %v958 = vadd.f32 %v887, %v948
  %v959 = vadd.f32 %v888, %v948
  %v960 = vadd.f32 %v889, %v948
  %v961 = vadd.f32 %v890, %v948
  %v962 = vadd.f32 %v891, %v948
  %v963 = vadd.f32 %v892, %v948
  %v964 = vadd.f32 %v893, %v948
  %v965 = vadd.f32 %v894, %v948
  %v966 = vadd.f32 %v895, %v948
  %v967 = vadd.f32 %v896, %v948
  %v968 = vadd.f32 %v897, %v948
  %v969 = vadd.f32 %v898, %v948
  %v970 = vadd.f32 %v899, %v948
  %v971 = vadd.f32 %v900, %v948
  %v972 = vadd.f32 %v901, %v948
  %v973 = vadd.f32 %v902, %v948
  %v974 = vadd.f32 %v903, %v948
  %v975 = vadd.f32 %v904, %v948
  %v976 = vadd.f32 %v905, %v948
  %v977 = vadd.f32 %v906, %v948
  %v978 = vadd.f32 %v907, %v948
  %v979 = vadd.f32 %v908, %v948
  %v980 = vadd.f32 %v909, %v948
  %v981 = vadd.f32 %v910, %v948
  %v982 = vadd.f32 %v911, %v948
  %v983 = vadd.f32 %v912, %v948
  %v984 = vadd.f32 %v913, %v948
  %v985 = vadd.f32 %v914, %v948
  %v986 = vadd.f32 %v915, %v948
  %v987 = vadd.f32 %v916, %v948
  %v988 = vadd.f32 %v917, %v948
  %v989 = vadd.f32 %v918, %v948
  %v990 = vadd.f32 %v919, %v948
  %v991 = vadd.f32 %v920, %v948
  %v992 = vadd.f32 %v921, %v948
  %v993 = vadd.f32 %v922, %v948
  %v994 = vadd.f32 %v923, %v948
  %v995 = vadd.f32 %v924, %v948
  %v996 = vadd.f32 %v925, %v948
  %v997 = vadd.f32 %v926, %v948
  %v998 = vadd.f32 %v927, %v948
  %v999 = vadd.f32 %v928, %v948
  %v1000 = vadd.f32 %v929, %v948
  %v1001 = vadd.f32 %v930, %v948
  %v1002 = vadd.f32 %v931, %v948
  %v1003 = vadd.f32 %v932, %v948
  %v1004 = vadd.f32 %v933, %v948
  %v1005 = vadd.f32 %v934, %v948
  %v1006 = vadd.f32 %v935, %v948
  %v1007 = vadd.f32 %v936, %v948
  %v1008 = vadd.f32 %v937, %v948
  %v1009 = vadd.f32 %v938, %v948
  %v1010 = vadd.f32 %v939, %v948
  %v1011 = vadd.f32 %v940, %v948
  %v1012 = vadd.f32 %v941, %v948
  %v1013 = vadd.f32 %v942, %v948
  %v1014 = vld [vmem:[%s5] sm:$0xff]
  %v1015 = vld [vmem:[%s5 + $0x8] sm:$0xff]
  %v1016 = vld [vmem:[%s5 + $0x10] sm:$0xff]
  %v1017 = vld [vmem:[%s5 + $0x18] sm:$0xff]
  %v1018 = vld [vmem:[%s5 + $0x20] sm:$0xff]
  %v1019 = vld [vmem:[%s5 + $0x28] sm:$0xff]
  %v1020 = vld [vmem:[%s5 + $0x30] sm:$0xff]
  %v1021 = vld [vmem:[%s5 + $0x38] sm:$0xff]
  %v1022 = vld [vmem:[%s5 + $0x40] sm:$0xff]
  %v1023 = vld [vmem:[%s5 + $0x48] sm:$0xff]
  %v1024 = vld [vmem:[%s5 + $0x50] sm:$0xff]
  %v1025 = vld [vmem:[%s5 + $0x58] sm:$0xff]
  %v1026 = vld [vmem:[%s5 + $0x60] sm:$0xff]
  %v1027 = vld [vmem:[%s5 + $0x68] sm:$0xff]
  %v1028 = vld [vmem:[%s5 + $0x70] sm:$0xff]
  %v1029 = vld [vmem:[%s5 + $0x78] sm:$0xff]
  %v1030 = vld [vmem:[%s5 + $0x80] sm:$0xff]
  %v1031 = vld [vmem:[%s5 + $0x88] sm:$0xff]
  %v1032 = vld [vmem:[%s5 + $0x90] sm:$0xff]
  %v1033 = vld [vmem:[%s5 + $0x98] sm:$0xff]
  %v1034 = vld [vmem:[%s5 + $0xa0] sm:$0xff]
  %v1035 = vld [vmem:[%s5 + $0xa8] sm:$0xff]
  %v1036 = vld [vmem:[%s5 + $0xb0] sm:$0xff]
  %v1037 = vld [vmem:[%s5 + $0xb8] sm:$0xff]
  %v1038 = vld [vmem:[%s5 + $0xc0] sm:$0xff]
  %v1039 = vld [vmem:[%s5 + $0xc8] sm:$0xff]
  %v1040 = vld [vmem:[%s5 + $0xd0] sm:$0xff]
  %v1041 = vld [vmem:[%s5 + $0xd8] sm:$0xff]
  %v1042 = vld [vmem:[%s5 + $0xe0] sm:$0xff]
  %v1043 = vld [vmem:[%s5 + $0xe8] sm:$0xff]
  %v1044 = vld [vmem:[%s5 + $0xf0] sm:$0xff]
  %v1045 = vld [vmem:[%s5 + $0xf8] sm:$0xff]
  %v1046 = vld [vmem:[%s5 + $0x100] sm:$0xff]
  %v1047 = vld [vmem:[%s5 + $0x108] sm:$0xff]
  %v1048 = vld [vmem:[%s5 + $0x110] sm:$0xff]
  %v1049 = vld [vmem:[%s5 + $0x118] sm:$0xff]
  %v1050 = vld [vmem:[%s5 + $0x120] sm:$0xff]
  %v1051 = vld [vmem:[%s5 + $0x128] sm:$0xff]
  %v1052 = vld [vmem:[%s5 + $0x130] sm:$0xff]
  %v1053 = vld [vmem:[%s5 + $0x138] sm:$0xff]
  %v1054 = vld [vmem:[%s5 + $0x140] sm:$0xff]
  %v1055 = vld [vmem:[%s5 + $0x148] sm:$0xff]
  %v1056 = vld [vmem:[%s5 + $0x150] sm:$0xff]
  %v1057 = vld [vmem:[%s5 + $0x158] sm:$0xff]
  %v1058 = vld [vmem:[%s5 + $0x160] sm:$0xff]
  %v1059 = vld [vmem:[%s5 + $0x168] sm:$0xff]
  %v1060 = vld [vmem:[%s5 + $0x170] sm:$0xff]
  %v1061 = vld [vmem:[%s5 + $0x178] sm:$0xff]
  %v1062 = vld [vmem:[%s5 + $0x180] sm:$0xff]
  %v1063 = vld [vmem:[%s5 + $0x188] sm:$0xff]
  %v1064 = vld [vmem:[%s5 + $0x190] sm:$0xff]
  %v1065 = vld [vmem:[%s5 + $0x198] sm:$0xff]
  %v1066 = vld [vmem:[%s5 + $0x1a0] sm:$0xff]
  %v1067 = vld [vmem:[%s5 + $0x1a8] sm:$0xff]
  %v1068 = vld [vmem:[%s5 + $0x1b0] sm:$0xff]
  %v1069 = vld [vmem:[%s5 + $0x1b8] sm:$0xff]
  %v1070 = vld [vmem:[%s5 + $0x1c0] sm:$0xff]
  %v1071 = vld [vmem:[%s5 + $0x1c8] sm:$0xff]
  %v1072 = vld [vmem:[%s5 + $0x1d0] sm:$0xff]
  %v1073 = vld [vmem:[%s5 + $0x1d8] sm:$0xff]
  %v1074 = vld [vmem:[%s5 + $0x1e0] sm:$0xff]
  %v1075 = vld [vmem:[%s5 + $0x1e8] sm:$0xff]
  %v1076 = vld [vmem:[%s5 + $0x1f0] sm:$0xff]
  %v1077 = vld [vmem:[%s5 + $0x1f8] sm:$0xff]
  %v1078 = vadd.f32 %v950, %v1014
  %v1079 = vadd.f32 %v951, %v1015
  %v1080 = vadd.f32 %v952, %v1016
  %v1081 = vadd.f32 %v953, %v1017
  %v1082 = vadd.f32 %v954, %v1018
  %v1083 = vadd.f32 %v955, %v1019
  %v1084 = vadd.f32 %v956, %v1020
  %v1085 = vadd.f32 %v957, %v1021
  %v1086 = vadd.f32 %v958, %v1022
  %v1087 = vadd.f32 %v959, %v1023
  %v1088 = vadd.f32 %v960, %v1024
  %v1089 = vadd.f32 %v961, %v1025
  %v1090 = vadd.f32 %v962, %v1026
  %v1091 = vadd.f32 %v963, %v1027
  %v1092 = vadd.f32 %v964, %v1028
  %v1093 = vadd.f32 %v965, %v1029
  %v1094 = vadd.f32 %v966, %v1030
  %v1095 = vadd.f32 %v967, %v1031
  %v1096 = vadd.f32 %v968, %v1032
  %v1097 = vadd.f32 %v969, %v1033
  %v1098 = vadd.f32 %v970, %v1034
  %v1099 = vadd.f32 %v971, %v1035
  %v1100 = vadd.f32 %v972, %v1036
  %v1101 = vadd.f32 %v973, %v1037
  %v1102 = vadd.f32 %v974, %v1038
  %v1103 = vadd.f32 %v975, %v1039
  %v1104 = vadd.f32 %v976, %v1040
  %v1105 = vadd.f32 %v977, %v1041
  %v1106 = vadd.f32 %v978, %v1042
  %v1107 = vadd.f32 %v979, %v1043
  %v1108 = vadd.f32 %v980, %v1044
  %v1109 = vadd.f32 %v981, %v1045
  %v1110 = vadd.f32 %v982, %v1046
  %v1111 = vadd.f32 %v983, %v1047
  %v1112 = vadd.f32 %v984, %v1048
  %v1113 = vadd.f32 %v985, %v1049
  %v1114 = vadd.f32 %v986, %v1050
  %v1115 = vadd.f32 %v987, %v1051
  %v1116 = vadd.f32 %v988, %v1052
  %v1117 = vadd.f32 %v989, %v1053
  %v1118 = vadd.f32 %v990, %v1054
  %v1119 = vadd.f32 %v991, %v1055
  %v1120 = vadd.f32 %v992, %v1056
  %v1121 = vadd.f32 %v993, %v1057
  %v1122 = vadd.f32 %v994, %v1058
  %v1123 = vadd.f32 %v995, %v1059
  %v1124 = vadd.f32 %v996, %v1060
  %v1125 = vadd.f32 %v997, %v1061
  %v1126 = vadd.f32 %v998, %v1062
  %v1127 = vadd.f32 %v999, %v1063
  %v1128 = vadd.f32 %v1000, %v1064
  %v1129 = vadd.f32 %v1001, %v1065
  %v1130 = vadd.f32 %v1002, %v1066
  %v1131 = vadd.f32 %v1003, %v1067
  %v1132 = vadd.f32 %v1004, %v1068
  %v1133 = vadd.f32 %v1005, %v1069
  %v1134 = vadd.f32 %v1006, %v1070
  %v1135 = vadd.f32 %v1007, %v1071
  %v1136 = vadd.f32 %v1008, %v1072
  %v1137 = vadd.f32 %v1009, %v1073
  %v1138 = vadd.f32 %v1010, %v1074
  %v1139 = vadd.f32 %v1011, %v1075
  %v1140 = vadd.f32 %v1012, %v1076
  %v1141 = vadd.f32 %v1013, %v1077
  %1142 = vst [vmem:[%s6] sm:$0xff] %v1078
  %1143 = vst [vmem:[%s6 + $0x8] sm:$0xff] %v1079
  %1144 = vst [vmem:[%s6 + $0x10] sm:$0xff] %v1080
  %1145 = vst [vmem:[%s6 + $0x18] sm:$0xff] %v1081
  %1146 = vst [vmem:[%s6 + $0x20] sm:$0xff] %v1082
  %1147 = vst [vmem:[%s6 + $0x28] sm:$0xff] %v1083
  %1148 = vst [vmem:[%s6 + $0x30] sm:$0xff] %v1084
  %1149 = vst [vmem:[%s6 + $0x38] sm:$0xff] %v1085
  %1150 = vst [vmem:[%s6 + $0x40] sm:$0xff] %v1086
  %1151 = vst [vmem:[%s6 + $0x48] sm:$0xff] %v1087
  %1152 = vst [vmem:[%s6 + $0x50] sm:$0xff] %v1088
  %1153 = vst [vmem:[%s6 + $0x58] sm:$0xff] %v1089
  %1154 = vst [vmem:[%s6 + $0x60] sm:$0xff] %v1090
  %1155 = vst [vmem:[%s6 + $0x68] sm:$0xff] %v1091
  %1156 = vst [vmem:[%s6 + $0x70] sm:$0xff] %v1092
  %1157 = vst [vmem:[%s6 + $0x78] sm:$0xff] %v1093
  %1158 = vst [vmem:[%s6 + $0x80] sm:$0xff] %v1094
  %1159 = vst [vmem:[%s6 + $0x88] sm:$0xff] %v1095
  %1160 = vst [vmem:[%s6 + $0x90] sm:$0xff] %v1096
  %1161 = vst [vmem:[%s6 + $0x98] sm:$0xff] %v1097
  %1162 = vst [vmem:[%s6 + $0xa0] sm:$0xff] %v1098
  %1163 = vst [vmem:[%s6 + $0xa8] sm:$0xff] %v1099
  %1164 = vst [vmem:[%s6 + $0xb0] sm:$0xff] %v1100
  %1165 = vst [vmem:[%s6 + $0xb8] sm:$0xff] %v1101
  %1166 = vst [vmem:[%s6 + $0xc0] sm:$0xff] %v1102
  %1167 = vst [vmem:[%s6 + $0xc8] sm:$0xff] %v1103
  %1168 = vst [vmem:[%s6 + $0xd0] sm:$0xff] %v1104
  %1169 = vst [vmem:[%s6 + $0xd8] sm:$0xff] %v1105
  %1170 = vst [vmem:[%s6 + $0xe0] sm:$0xff] %v1106
  %1171 = vst [vmem:[%s6 + $0xe8] sm:$0xff] %v1107
  %1172 = vst [vmem:[%s6 + $0xf0] sm:$0xff] %v1108
  %1173 = vst [vmem:[%s6 + $0xf8] sm:$0xff] %v1109
  %1174 = vst [vmem:[%s6 + $0x100] sm:$0xff] %v1110
  %1175 = vst [vmem:[%s6 + $0x108] sm:$0xff] %v1111
  %1176 = vst [vmem:[%s6 + $0x110] sm:$0xff] %v1112
  %1177 = vst [vmem:[%s6 + $0x118] sm:$0xff] %v1113
  %1178 = vst [vmem:[%s6 + $0x120] sm:$0xff] %v1114
  %1179 = vst [vmem:[%s6 + $0x128] sm:$0xff] %v1115
  %1180 = vst [vmem:[%s6 + $0x130] sm:$0xff] %v1116
  %1181 = vst [vmem:[%s6 + $0x138] sm:$0xff] %v1117
  %1182 = vst [vmem:[%s6 + $0x140] sm:$0xff] %v1118
  %1183 = vst [vmem:[%s6 + $0x148] sm:$0xff] %v1119
  %1184 = vst [vmem:[%s6 + $0x150] sm:$0xff] %v1120
  %1185 = vst [vmem:[%s6 + $0x158] sm:$0xff] %v1121
  %1186 = vst [vmem:[%s6 + $0x160] sm:$0xff] %v1122
  %1187 = vst [vmem:[%s6 + $0x168] sm:$0xff] %v1123
  %1188 = vst [vmem:[%s6 + $0x170] sm:$0xff] %v1124
  %1189 = vst [vmem:[%s6 + $0x178] sm:$0xff] %v1125
  %1190 = vst [vmem:[%s6 + $0x180] sm:$0xff] %v1126
  %1191 = vst [vmem:[%s6 + $0x188] sm:$0xff] %v1127
  %1192 = vst [vmem:[%s6 + $0x190] sm:$0xff] %v1128
  %1193 = vst [vmem:[%s6 + $0x198] sm:$0xff] %v1129
  %1194 = vst [vmem:[%s6 + $0x1a0] sm:$0xff] %v1130
  %1195 = vst [vmem:[%s6 + $0x1a8] sm:$0xff] %v1131
  %1196 = vst [vmem:[%s6 + $0x1b0] sm:$0xff] %v1132
  %1197 = vst [vmem:[%s6 + $0x1b8] sm:$0xff] %v1133
  %1198 = vst [vmem:[%s6 + $0x1c0] sm:$0xff] %v1134
  %1199 = vst [vmem:[%s6 + $0x1c8] sm:$0xff] %v1135
  %1200 = vst [vmem:[%s6 + $0x1d0] sm:$0xff] %v1136
  %1201 = vst [vmem:[%s6 + $0x1d8] sm:$0xff] %v1137
  %1202 = vst [vmem:[%s6 + $0x1e0] sm:$0xff] %v1138
  %1203 = vst [vmem:[%s6 + $0x1e8] sm:$0xff] %v1139
  %1204 = vst [vmem:[%s6 + $0x1f0] sm:$0xff] %v1140
  %1205 = vst [vmem:[%s6 + $0x1f8] sm:$0xff] %v1141
  %v1206 = vld [vmem:[%s7] sm:$0x1]
  %v1207 = vand.u32 2147483647, %v1078
  %v1208 = vand.u32 2147483647, %v1079
  %v1209 = vand.u32 2147483647, %v1080
  %v1210 = vand.u32 2147483647, %v1081
  %v1211 = vand.u32 2147483647, %v1082
  %v1212 = vand.u32 2147483647, %v1083
  %v1213 = vand.u32 2147483647, %v1084
  %v1214 = vand.u32 2147483647, %v1085
  %v1215 = vand.u32 2147483647, %v1086
  %v1216 = vand.u32 2147483647, %v1087
  %v1217 = vand.u32 2147483647, %v1088
  %v1218 = vand.u32 2147483647, %v1089
  %v1219 = vand.u32 2147483647, %v1090
  %v1220 = vand.u32 2147483647, %v1091
  %v1221 = vand.u32 2147483647, %v1092
  %v1222 = vand.u32 2147483647, %v1093
  %v1223 = vand.u32 2147483647, %v1094
  %v1224 = vand.u32 2147483647, %v1095
  %v1225 = vand.u32 2147483647, %v1096
  %v1226 = vand.u32 2147483647, %v1097
  %v1227 = vand.u32 2147483647, %v1098
  %v1228 = vand.u32 2147483647, %v1099
  %v1229 = vand.u32 2147483647, %v1100
  %v1230 = vand.u32 2147483647, %v1101
  %v1231 = vand.u32 2147483647, %v1102
  %v1232 = vand.u32 2147483647, %v1103
  %v1233 = vand.u32 2147483647, %v1104
  %v1234 = vand.u32 2147483647, %v1105
  %v1235 = vand.u32 2147483647, %v1106
  %v1236 = vand.u32 2147483647, %v1107
  %v1237 = vand.u32 2147483647, %v1108
  %v1238 = vand.u32 2147483647, %v1109
  %v1239 = vand.u32 2147483647, %v1110
  %v1240 = vand.u32 2147483647, %v1111
  %v1241 = vand.u32 2147483647, %v1112
  %v1242 = vand.u32 2147483647, %v1113
  %v1243 = vand.u32 2147483647, %v1114
  %v1244 = vand.u32 2147483647, %v1115
  %v1245 = vand.u32 2147483647, %v1116
  %v1246 = vand.u32 2147483647, %v1117
  %v1247 = vand.u32 2147483647, %v1118
  %v1248 = vand.u32 2147483647, %v1119
  %v1249 = vand.u32 2147483647, %v1120
  %v1250 = vand.u32 2147483647, %v1121
  %v1251 = vand.u32 2147483647, %v1122
  %v1252 = vand.u32 2147483647, %v1123
  %v1253 = vand.u32 2147483647, %v1124
  %v1254 = vand.u32 2147483647, %v1125
  %v1255 = vand.u32 2147483647, %v1126
  %v1256 = vand.u32 2147483647, %v1127
  %v1257 = vand.u32 2147483647, %v1128
  %v1258 = vand.u32 2147483647, %v1129
  %v1259 = vand.u32 2147483647, %v1130
  %v1260 = vand.u32 2147483647, %v1131
  %v1261 = vand.u32 2147483647, %v1132
  %v1262 = vand.u32 2147483647, %v1133
  %v1263 = vand.u32 2147483647, %v1134
  %v1264 = vand.u32 2147483647, %v1135
  %v1265 = vand.u32 2147483647, %v1136
  %v1266 = vand.u32 2147483647, %v1137
  %v1267 = vand.u32 2147483647, %v1138
  %v1268 = vand.u32 2147483647, %v1139
  %v1269 = vand.u32 2147483647, %v1140
  %v1270 = vand.u32 2147483647, %v1141
  %v1271 = vmax.f32 %v1207, %v1211
  %v1272 = vmax.f32 %v1208, %v1212
  %v1273 = vmax.f32 %v1209, %v1213
  %v1274 = vmax.f32 %v1210, %v1214
  %v1275 = vmax.f32 %v1271, %v1215
  %v1276 = vmax.f32 %v1272, %v1216
  %v1277 = vmax.f32 %v1273, %v1217
  %v1278 = vmax.f32 %v1274, %v1218
  %v1279 = vmax.f32 %v1275, %v1219
  %v1280 = vmax.f32 %v1276, %v1220
  %v1281 = vmax.f32 %v1277, %v1221
  %v1282 = vmax.f32 %v1278, %v1222
  %v1283 = vmax.f32 %v1279, %v1223
  %v1284 = vmax.f32 %v1280, %v1224
  %v1285 = vmax.f32 %v1281, %v1225
  %v1286 = vmax.f32 %v1282, %v1226
  %v1287 = vmax.f32 %v1283, %v1227
  %v1288 = vmax.f32 %v1284, %v1228
  %v1289 = vmax.f32 %v1285, %v1229
  %v1290 = vmax.f32 %v1286, %v1230
  %v1291 = vmax.f32 %v1287, %v1231
  %v1292 = vmax.f32 %v1288, %v1232
  %v1293 = vmax.f32 %v1289, %v1233
  %v1294 = vmax.f32 %v1290, %v1234
  %v1295 = vmax.f32 %v1291, %v1235
  %v1296 = vmax.f32 %v1292, %v1236
  %v1297 = vmax.f32 %v1293, %v1237
  %v1298 = vmax.f32 %v1294, %v1238
  %v1299 = vmax.f32 %v1295, %v1239
  %v1300 = vmax.f32 %v1296, %v1240
  %v1301 = vmax.f32 %v1297, %v1241
  %v1302 = vmax.f32 %v1298, %v1242
  %v1303 = vmax.f32 %v1299, %v1243
  %v1304 = vmax.f32 %v1300, %v1244
  %v1305 = vmax.f32 %v1301, %v1245
  %v1306 = vmax.f32 %v1302, %v1246
  %v1307 = vmax.f32 %v1303, %v1247
  %v1308 = vmax.f32 %v1304, %v1248
  %v1309 = vmax.f32 %v1305, %v1249
  %v1310 = vmax.f32 %v1306, %v1250
  %v1311 = vmax.f32 %v1307, %v1251
  %v1312 = vmax.f32 %v1308, %v1252
  %v1313 = vmax.f32 %v1309, %v1253
  %v1314 = vmax.f32 %v1310, %v1254
  %v1315 = vmax.f32 %v1311, %v1255
  %v1316 = vmax.f32 %v1312, %v1256
  %v1317 = vmax.f32 %v1313, %v1257
  %v1318 = vmax.f32 %v1314, %v1258
  %v1319 = vmax.f32 %v1315, %v1259
  %v1320 = vmax.f32 %v1316, %v1260
  %v1321 = vmax.f32 %v1317, %v1261
  %v1322 = vmax.f32 %v1318, %v1262
  %v1323 = vmax.f32 %v1319, %v1263
  %v1324 = vmax.f32 %v1320, %v1264
  %v1325 = vmax.f32 %v1321, %v1265
  %v1326 = vmax.f32 %v1322, %v1266
  %v1327 = vmax.f32 %v1323, %v1267
  %v1328 = vmax.f32 %v1324, %v1268
  %v1329 = vmax.f32 %v1325, %v1269
  %v1330 = vmax.f32 %v1326, %v1270
  %v1331 = vmax.f32 %v1327, %v1328
  %v1332 = vmax.f32 %v1329, %v1330
  %v1333 = vmax.f32 %v1331, %v1332
  %1334 = vmax.xlane.f32.xlu0 %v1333
  %v1335 = vpop.xlane.xlu0 %1334
  %v1336 = vrot.slane %v1335, 4
  %v1337 = vmax.f32 %v1335, %v1336
  %v1338 = vrot.slane %v1337, 2
  %v1339 = vmax.f32 %v1337, %v1338
  %v1340 = vrot.slane %v1339, 1
  %v1341 = vmax.f32 %v1339, %v1340
  %s1342 = vtos %v1341
  %v1343 = vstv %s1342
  %v1344 = vmax.f32 %v1206, %v1343
  %1345 = vst [vmem:[%s7] sm:$0x1] %v1344
  // Predicated region
  $region30: #{_unnamed_function_.7} parent=0 // pred_check
    _
  $region31: #{_unnamed_function_.7} parent=0 // pred_check_branch
    %1347 = sbr.rel (0) target = $region33
  $region32: #{_unnamed_function_.7} parent=0 // pred_region
    _
  $region33: #{_unnamed_function_.7} parent=0 // pred_fallthru
    _
  // Predicated region
  $region34: #{_unnamed_function_.7} parent=0 // pred_check
    _
  $region35: #{_unnamed_function_.7} parent=0 // pred_check_branch
    %1349 = sbr.rel (0) target = $region37
  $region36: #{_unnamed_function_.7} parent=0 // pred_region
    _
  $region37: #{_unnamed_function_.7} parent=0 // pred_fallthru
    _
  // Predicated region
  $region38: #{_unnamed_function_.7} parent=0 // pred_check
    _
  $region39: #{_unnamed_function_.7} parent=0 // pred_check_branch
    %1351 = sbr.rel (0) target = $region41
  $region40: #{_unnamed_function_.7} parent=0 // pred_region
    _
  $region41: #{_unnamed_function_.7} parent=0 // pred_fallthru
    _
  // Predicated region
  $region42: #{_unnamed_function_.7} parent=0 // pred_check
    _
  $region43: #{_unnamed_function_.7} parent=0 // pred_check_branch
    %1353 = sbr.rel (0) target = $region45
  $region44: #{_unnamed_function_.7} parent=0 // pred_region
    _
  $region45: #{_unnamed_function_.7} parent=0 // pred_fallthru
    _

// kernel: _unnamed_function_.6
$region0: #{_unnamed_function_.6}
  #allocation0 [shape = 'u32[]', space=smem, size = 0x4, offset = 0x4, fixed_abs, tag = 'smem constant byte address 0x4 - core index']
  #allocation1 [shape = 'u32[144,128]{1,0:T(1,128)}', space=vmem, size = 0x12000, scoped, tag = 'internal scratch']
  #allocation2 [shape = 'f32[18,18,128]{2,1,0:T(8,128)}', space=vmem, size = 0x36000, scoped, tag = 'scratch operand']
  #allocation3 [shape = 'f32[1,1]{1,0:T(1,128)S(6)}', space=smem, size = 0x200, scoped, tag = 'scoped memory for _unnamed_function_.6']
  %s0 = inlined_call_operand.<no memory space> [shape: f32[1,1], index: 0, kind: input, shape index: {}]
  %s1 = inlined_call_operand.vmem [shape: bf16[2,16,16,128], index: 1, kind: input, shape index: {}]
  %s2 = inlined_call_operand.vmem [shape: f32[9,128], index: 2, kind: input, shape index: {}]
  %s3 = inlined_call_operand.vmem [shape: f32[1,128], index: 3, kind: input, shape index: {}]
  %s4 = inlined_call_operand.vmem [shape: bf16[2,16,16,128], index: 4, kind: output, shape index: {0}]
  %s5 = inlined_call_operand.vmem [shape: f32[2,1,128], index: 5, kind: output, shape index: {1}]
  %6 = xla_tuple %s4, %s5
  %s7 = sld [smem:[#allocation0]]
  $region61: #{_unnamed_function_.6} parent=0
    _
  %s9 = ssub.s32 1, %s7
  %s10 = scalar_select 0, %s9, %s7
  %11 = sst [smem:[#allocation3]] %s0
  loop: start=0, step=1, limit=4
  $region2: #{_unnamed_function_.6} parent=0 // loop_pre_header
    _
  $region3: #{_unnamed_function_.6} parent=0 // loop_header
    %s13 = sphi 0, %s17
    %p14 = scmp.ge.s32.totalorder %s13, 4
    %s20 = sphi 0, %s39
    %s21 = sphi 0, %s35
    %s22 = sphi 0, %s31
    %s23 = sphi 0, %s20
    %s24 = sphi 0, %s21
    %s25 = sphi 0, %s22
    %s26 = sphi 0, %s23
    %s27 = sphi 0, %s24
    %s28 = sphi 0, %s25
    %s40 = sphi 0, %s40
    %s42 = sphi 0, %s40
    %s43 = sphi 0, %s42
    %s57 = sphi 0, %s43
    %s65 = sphi 0, %s67
    %s68 = sphi 0, %s65
    %s69 = sphi 0, %s68
    %s85 = sphi 0, %s69
    %s91 = sphi 0, %s93
    %s94 = sphi 0, %s91
    %s95 = sphi 0, %s94
    %s111 = sphi 0, %s95
    %s117 = sphi 0, %s119
    %s120 = sphi 0, %s117
    %s121 = sphi 0, %s120
    %s137 = sphi 0, %s121
    %s147 = sphi 0, %s149
    %s150 = sphi 0, %s147
    %s151 = sphi 0, %s150
    %s167 = sphi 0, %s151
    %s175 = sphi 0, %s177
    %s178 = sphi 0, %s175
    %s179 = sphi 0, %s178
    %s195 = sphi 0, %s179
  $region4: #{_unnamed_function_.6} parent=0 // loop_header_branch
    %16 = sbr.rel (%p14) target = $region8
  $region5: #{_unnamed_function_.6} parent=0 // loop_body
    %s18 = ssub.s32 %s13, 1
    %s19 = ssub.s32 %s13, 2
    %s29 = sadd.s32 1, %s22
    %p30 = scmp.ge.s32.totalorder %s29, 1
    %s31 = scalar_select %p30, 0, %s29
    %s32 = sadd.s32 1, %s21
    %s33 = scalar_select %p30, %s32, %s21
    %p34 = scmp.ge.s32.totalorder %s33, 1
    %s35 = scalar_select %p34, 0, %s33
    %s36 = sadd.s32 1, %s20
    %s37 = scalar_select %p34, %s36, %s20
    %p38 = scmp.ge.s32.totalorder %s37, 2
    %s39 = scalar_select %p38, 0, %s37
    %s41 = sadd.s32 %s40, 1
    %p44 = scmp.eq.s32.totalorder %s13, 1
    %p45 = scmp.ne.s32.totalorder %s40, %s42
    %p46 = scmp.eq.s32.totalorder %s13, 0
    %p47 = por %p45, %p46
    %p48 = scmp.ne.s32.totalorder %s40, %s42
    %p49 = scmp.eq.s32.totalorder %s18, 1
    %p50 = por %p48, %p49
    %p51 = scmp.ne.s32.totalorder %s42, %s43
    %p52 = scmp.eq.s32.totalorder %s18, 0
    %p53 = por %p51, %p52
    %p54 = scmp.ne.s32.totalorder %s42, %s43
    %p55 = scmp.eq.s32.totalorder %s19, 1
    %p56 = por %p54, %p55
    %p58 = scmp.ne.s32.totalorder %s43, %s57
    %p59 = scmp.eq.s32.totalorder %s19, 0
    %p60 = por %p58, %p59
    %s61 = ssub.s32 %s20, %s39
    %s62 = ssub.s32 %s21, %s35
    %s63 = sor.u32 %s61, %s62
    %p64 = scmp.eq.s32.totalorder %s63, 0
    %s66 = sadd.s32 %s65, 1
    %s67 = scalar_select %p64, %s65, %s66
    %p70 = pneg %p64
    %p71 = scmp.eq.s32.totalorder %s13, 1
    %p72 = por %p70, %p71
    %p73 = scmp.ne.s32.totalorder %s65, %s68
    %p74 = scmp.eq.s32.totalorder %s13, 0
    %p75 = por %p73, %p74
    %p76 = scmp.ne.s32.totalorder %s65, %s68
    %p77 = scmp.eq.s32.totalorder %s18, 1
    %p78 = por %p76, %p77
    %p79 = scmp.ne.s32.totalorder %s68, %s69
    %p80 = scmp.eq.s32.totalorder %s18, 0
    %p81 = por %p79, %p80
    %p82 = scmp.ne.s32.totalorder %s68, %s69
    %p83 = scmp.eq.s32.totalorder %s19, 1
    %p84 = por %p82, %p83
    %p86 = scmp.ne.s32.totalorder %s69, %s85
    %p87 = scmp.eq.s32.totalorder %s19, 0
    %p88 = por %p86, %p87
    %s89 = ssub.s32 %s21, %s35
    %p90 = scmp.eq.s32.totalorder %s89, 0
    %s92 = sadd.s32 %s91, 1
    %s93 = scalar_select %p90, %s91, %s92
    %p96 = pneg %p90
    %p97 = scmp.eq.s32.totalorder %s13, 1
    %p98 = por %p96, %p97
    %p99 = scmp.ne.s32.totalorder %s91, %s94
    %p100 = scmp.eq.s32.totalorder %s13, 0
    %p101 = por %p99, %p100
    %p102 = scmp.ne.s32.totalorder %s91, %s94
    %p103 = scmp.eq.s32.totalorder %s18, 1
    %p104 = por %p102, %p103
    %p105 = scmp.ne.s32.totalorder %s94, %s95
    %p106 = scmp.eq.s32.totalorder %s18, 0
    %p107 = por %p105, %p106
    %p108 = scmp.ne.s32.totalorder %s94, %s95
    %p109 = scmp.eq.s32.totalorder %s19, 1
    %p110 = por %p108, %p109
    %p112 = scmp.ne.s32.totalorder %s95, %s111
    %p113 = scmp.eq.s32.totalorder %s19, 0
    %p114 = por %p112, %p113
    %s115 = ssub.s32 %s21, %s35
    %p116 = scmp.eq.s32.totalorder %s115, 0
    %s118 = sadd.s32 %s117, 1
    %s119 = scalar_select %p116, %s117, %s118
    %p122 = pneg %p116
    %p123 = scmp.eq.s32.totalorder %s13, 1
    %p124 = por %p122, %p123
    %p125 = scmp.ne.s32.totalorder %s117, %s120
    %p126 = scmp.eq.s32.totalorder %s13, 0
    %p127 = por %p125, %p126
    %p128 = scmp.ne.s32.totalorder %s117, %s120
    %p129 = scmp.eq.s32.totalorder %s18, 1
    %p130 = por %p128, %p129
    %p131 = scmp.ne.s32.totalorder %s120, %s121
    %p132 = scmp.eq.s32.totalorder %s18, 0
    %p133 = por %p131, %p132
    %p134 = scmp.ne.s32.totalorder %s120, %s121
    %p135 = scmp.eq.s32.totalorder %s19, 1
    %p136 = por %p134, %p135
    %p138 = scmp.ne.s32.totalorder %s121, %s137
    %p139 = scmp.eq.s32.totalorder %s19, 0
    %p140 = por %p138, %p139
    %s141 = ssub.s32 %s20, %s39
    %s142 = ssub.s32 %s22, %s31
    %s143 = sor.u32 %s141, %s142
    %s144 = ssub.s32 %s21, %s35
    %s145 = sor.u32 %s143, %s144
    %p146 = scmp.eq.s32.totalorder %s145, 0
    %s148 = sadd.s32 %s147, 1
    %s149 = scalar_select %p146, %s147, %s148
    %p152 = pneg %p146
    %p153 = scmp.eq.s32.totalorder %s13, 1
    %p154 = por %p152, %p153
    %p155 = scmp.ne.s32.totalorder %s147, %s150
    %p156 = scmp.eq.s32.totalorder %s13, 0
    %p157 = por %p155, %p156
    %p158 = scmp.ne.s32.totalorder %s147, %s150
    %p159 = scmp.eq.s32.totalorder %s18, 1
    %p160 = por %p158, %p159
    %p161 = scmp.ne.s32.totalorder %s150, %s151
    %p162 = scmp.eq.s32.totalorder %s18, 0
    %p163 = por %p161, %p162
    %p164 = scmp.ne.s32.totalorder %s150, %s151
    %p165 = scmp.eq.s32.totalorder %s19, 1
    %p166 = por %p164, %p165
    %p168 = scmp.ne.s32.totalorder %s151, %s167
    %p169 = scmp.eq.s32.totalorder %s19, 0
    %p170 = por %p168, %p169
    %s171 = sadd.s32 %s20, %s21
    %s172 = sadd.s32 %s39, %s35
    %s173 = ssub.s32 %s171, %s172
    %p174 = scmp.eq.s32.totalorder %s173, 0
    %s176 = sadd.s32 %s175, 1
    %s177 = scalar_select %p174, %s175, %s176
    %p180 = pneg %p174
    %p181 = scmp.eq.s32.totalorder %s13, 1
    %p182 = por %p180, %p181
    %p183 = scmp.ne.s32.totalorder %s175, %s178
    %p184 = scmp.eq.s32.totalorder %s13, 0
    %p185 = por %p183, %p184
    %p186 = scmp.ne.s32.totalorder %s175, %s178
    %p187 = scmp.eq.s32.totalorder %s18, 1
    %p188 = por %p186, %p187
    %p189 = scmp.ne.s32.totalorder %s178, %s179
    %p190 = scmp.eq.s32.totalorder %s18, 0
    %p191 = por %p189, %p190
    %p192 = scmp.ne.s32.totalorder %s178, %s179
    %p193 = scmp.eq.s32.totalorder %s19, 1
    %p194 = por %p192, %p193
    %p196 = scmp.ne.s32.totalorder %s179, %s195
    %p197 = scmp.eq.s32.totalorder %s19, 0
    %p198 = por %p196, %p197
    %p199 = scmp.le.s32.totalorder 1, %s13
    %p200 = scmp.lt.s32.totalorder %s13, 3
    %p201 = pnand %p199, %p200
    %p202 = pneg %p201
    // Predicated region
    $region9: #{_unnamed_function_.6} parent=5 // pred_check
      _
    $region10: #{_unnamed_function_.6} parent=5 // pred_check_branch
      %204 = sbr.rel (%p201) target = $region12
    $region11: #{_unnamed_function_.6} parent=5 // pred_region
      %s205 = ssub.s32 %s13, 1
      // Predicated region
      $region13: #{_unnamed_function_.6} parent=11 // pred_check
        %p206 = pneg %p53
      $region14: #{_unnamed_function_.6} parent=11 // pred_check_branch
        %208 = sbr.rel (%p206) target = $region16
      $region15: #{_unnamed_function_.6} parent=11 // pred_region
        _
      $region16: #{_unnamed_function_.6} parent=11 // pred_fallthru
        _
      // Predicated region
      $region17: #{_unnamed_function_.6} parent=11 // pred_check
        %p209 = pneg %p107
      $region18: #{_unnamed_function_.6} parent=11 // pred_check_branch
        %211 = sbr.rel (%p209) target = $region20
      $region19: #{_unnamed_function_.6} parent=11 // pred_region
        %p212 = scmp.lt.s32.totalorder %s24, 0
        %s213 = scalar_select %p212, %s24, 0
        %s214 = smul.addr %s213, 8
        %s215 = scalar_lea.vmem %s2, %s214
      $region20: #{_unnamed_function_.6} parent=11 // pred_fallthru
        _
      // Predicated region
      $region21: #{_unnamed_function_.6} parent=11 // pred_check
        %p216 = pneg %p133
      $region22: #{_unnamed_function_.6} parent=11 // pred_check_branch
        %218 = sbr.rel (%p216) target = $region24
      $region23: #{_unnamed_function_.6} parent=11 // pred_region
        %p219 = scmp.lt.s32.totalorder %s24, 0
        %s220 = scalar_select %p219, %s24, 0
        %s221 = scalar_lea.vmem %s3, %s220
      $region24: #{_unnamed_function_.6} parent=11 // pred_fallthru
        _
    $region12: #{_unnamed_function_.6} parent=5 // pred_fallthru
      _
    %p222 = scmp.lt.s32.totalorder %s13, 2
    // Predicated region
    $region25: #{_unnamed_function_.6} parent=5 // pred_check
      %p223 = pneg %p222
    $region26: #{_unnamed_function_.6} parent=5 // pred_check_branch
      %225 = sbr.rel (%p223) target = $region28
    $region27: #{_unnamed_function_.6} parent=5 // pred_region
      // Predicated region
      $region29: #{_unnamed_function_.6} parent=27 // pred_check
        %p226 = pneg %p75
      $region30: #{_unnamed_function_.6} parent=27 // pred_check_branch
        %228 = sbr.rel (%p226) target = $region32
      $region31: #{_unnamed_function_.6} parent=27 // pred_region
        %p229 = scmp.lt.s32.totalorder %s20, 1
        %s230 = scalar_select %p229, %s20, 1
        %p231 = scmp.lt.s32.totalorder %s21, 0
        %s232 = scalar_select %p231, %s21, 0
        %s233 = smul.addr %s230, 32
        %s234 = sadd.s32 %s232, %s233
        %s235 = smul.addr %s234, 4
        %s236 = scalar_lea.vmem %s1, %s235
      $region32: #{_unnamed_function_.6} parent=27 // pred_fallthru
        _
    $region28: #{_unnamed_function_.6} parent=5 // pred_fallthru
      _
    %p237 = scmp.le.s32.totalorder 1, %s13
    %p238 = scmp.lt.s32.totalorder %s13, 3
    %p239 = pnand %p237, %p238
    %p240 = pneg %p239
    // Predicated region
    $region33: #{_unnamed_function_.6} parent=5 // pred_check
      _
    $region34: #{_unnamed_function_.6} parent=5 // pred_check_branch
      %242 = sbr.rel (%p239) target = $region36
    $region35: #{_unnamed_function_.6} parent=5 // pred_region
      %s243 = ssub.s32 %s13, 1
      %p244 = pneg %p53
      %p245 = pneg %p50
      %p246 = scmp.lt.s32.totalorder %s23, 1
      %s247 = scalar_select %p246, %s23, 1
      %p248 = scmp.lt.s32.totalorder %s24, 0
      %s249 = scalar_select %p248, %s24, 0
      %s250 = smul.addr %s247, 32
      %s251 = sadd.s32 %s249, %s250
      %s252 = smul.addr %s251, 4
      %s253 = scalar_lea.vmem %s1, %s252
      %p254 = pneg %p81
      %p255 = pneg %p78
      %p256 = scmp.lt.s32.totalorder %s24, 0
      %s257 = scalar_select %p256, %s24, 0
      %s258 = smul.addr %s257, 8
      %s259 = scalar_lea.vmem %s2, %s258
      %p260 = pneg %p107
      %p261 = pneg %p104
      %p262 = scmp.lt.s32.totalorder %s24, 0
      %s263 = scalar_select %p262, %s24, 0
      %s264 = scalar_lea.vmem %s3, %s263
      %p265 = pneg %p133
      %p266 = pneg %p130
      %p267 = pneg %p163
      %p268 = pneg %p160
      %s269 = smul.u32 16, %s25
      %p270 = scmp.lt.s32.totalorder %s23, 1
      %s271 = scalar_select %p270, %s23, 1
      %p272 = scmp.lt.s32.totalorder %s269, 15
      %s273 = scalar_select %p272, %s269, 15
      %p274 = scmp.lt.s32.totalorder %s24, 0
      %s275 = scalar_select %p274, %s24, 0
      %s276 = smul.addr %s273, 2
      %s277 = sadd.s32 %s275, %s276
      %s278 = smul.addr %s271, 32
      %s279 = sadd.s32 %s277, %s278
      %s280 = smul.addr %s279, 4
      %s281 = scalar_lea.vmem %s4, %s280
      %p282 = pneg %p191
      %p283 = pneg %p188
      %s284 = sadd.s32 %s23, %s24
      %p285 = scmp.lt.s32.totalorder %s284, 1
      %s286 = scalar_select %p285, %s284, 1
      %s287 = scalar_lea.vmem %s5, %s286
      %p288 = scmp.lt.s32.totalorder %s23, 1
      %s289 = scalar_select %p288, %s23, 1
      %p290 = scmp.lt.s32.totalorder %s24, 0
      %s291 = scalar_select %p290, %s24, 0
      %s292 = smul.addr %s289, 32
      %s293 = sadd.s32 %s291, %s292
      %s294 = smul.addr %s293, 4
      %s295 = scalar_lea.vmem %s1, %s294
      %p296 = scmp.lt.s32.totalorder %s24, 0
      %s297 = scalar_select %p296, %s24, 0
      %s298 = smul.addr %s297, 8
      %s299 = scalar_lea.vmem %s2, %s298
      %p300 = scmp.lt.s32.totalorder %s24, 0
      %s301 = scalar_select %p300, %s24, 0
      %s302 = scalar_lea.vmem %s3, %s301
      %s303 = smul.u32 16, %s25
      %p304 = scmp.lt.s32.totalorder %s23, 1
      %s305 = scalar_select %p304, %s23, 1
      %p306 = scmp.lt.s32.totalorder %s303, 15
      %s307 = scalar_select %p306, %s303, 15
      %p308 = scmp.lt.s32.totalorder %s24, 0
      %s309 = scalar_select %p308, %s24, 0
      %s310 = smul.addr %s307, 2
      %s311 = sadd.s32 %s309, %s310
      %s312 = smul.addr %s305, 32
      %s313 = sadd.s32 %s311, %s312
      %s314 = smul.addr %s313, 4
      %s315 = scalar_lea.vmem %s4, %s314
      %s316 = smul.u32 16, %s25
      %s317 = sadd.s32 %s23, %s24
      %p318 = scmp.lt.s32.totalorder %s317, 1
      %s319 = scalar_select %p318, %s317, 1
      %s320 = scalar_lea.vmem %s5, %s319
      %s321 = sadd.s32 %s23, %s24
      %s322 = sld [smem:[#allocation3]]
      %p323 = scmp.eq.s32.totalorder %s25, 0
      // Predicated region
      $region37: #{_unnamed_function_.6} parent=35 // pred_check
        %p324 = pneg %p323
      $region38: #{_unnamed_function_.6} parent=35 // pred_check_branch
        %326 = sbr.rel (%p324) target = $region40
      $region39: #{_unnamed_function_.6} parent=35 // pred_region
        %v327 = vstv %s322
        %v328 = vrcp.pop %v327
        %s329 = vtos %v328
        %v330 = vld [vmem:[%s295] sm:$0xf]
        %v331 = vld [vmem:[%s295 + $0x4] sm:$0xf]
        %v332 = vld [vmem:[%s295 + $0x8] sm:$0xf]
        %v333 = vld [vmem:[%s295 + $0xc] sm:$0xf]
        %v334 = vld [vmem:[%s295 + $0x10] sm:$0xf]
        %v335 = vld [vmem:[%s295 + $0x14] sm:$0xf]
        %v336 = vld [vmem:[%s295 + $0x18] sm:$0xf]
        %v337 = vld [vmem:[%s295 + $0x1c] sm:$0xf]
        %v338 = vld [vmem:[%s295 + $0x20] sm:$0xf]
        %v339 = vld [vmem:[%s295 + $0x24] sm:$0xf]
        %v340 = vld [vmem:[%s295 + $0x28] sm:$0xf]
        %v341 = vld [vmem:[%s295 + $0x2c] sm:$0xf]
        %v342 = vld [vmem:[%s295 + $0x30] sm:$0xf]
        %v343 = vld [vmem:[%s295 + $0x34] sm:$0xf]
        %v344 = vld [vmem:[%s295 + $0x38] sm:$0xf]
        %v345 = vld [vmem:[%s295 + $0x3c] sm:$0xf]
        %v346 = vld [vmem:[%s295 + $0x40] sm:$0xf]
        %v347 = vld [vmem:[%s295 + $0x44] sm:$0xf]
        %v348 = vld [vmem:[%s295 + $0x48] sm:$0xf]
        %v349 = vld [vmem:[%s295 + $0x4c] sm:$0xf]
        %v350 = vld [vmem:[%s295 + $0x50] sm:$0xf]
        %v351 = vld [vmem:[%s295 + $0x54] sm:$0xf]
        %v352 = vld [vmem:[%s295 + $0x58] sm:$0xf]
        %v353 = vld [vmem:[%s295 + $0x5c] sm:$0xf]
        %v354 = vld [vmem:[%s295 + $0x60] sm:$0xf]
        %v355 = vld [vmem:[%s295 + $0x64] sm:$0xf]
        %v356 = vld [vmem:[%s295 + $0x68] sm:$0xf]
        %v357 = vld [vmem:[%s295 + $0x6c] sm:$0xf]
        %v358 = vld [vmem:[%s295 + $0x70] sm:$0xf]
        %v359 = vld [vmem:[%s295 + $0x74] sm:$0xf]
        %v360 = vld [vmem:[%s295 + $0x78] sm:$0xf]
        %v361 = vld [vmem:[%s295 + $0x7c] sm:$0xf]
        %v362 = vunpack.c.l.bf16 %v330
        %v363 = vunpack.c.l.bf16 %v331
        %v364 = vunpack.c.l.bf16 %v332
        %v365 = vunpack.c.l.bf16 %v333
        %v366 = vunpack.c.l.bf16 %v334
        %v367 = vunpack.c.l.bf16 %v335
        %v368 = vunpack.c.l.bf16 %v336
        %v369 = vunpack.c.l.bf16 %v337
        %v370 = vunpack.c.l.bf16 %v338
        %v371 = vunpack.c.l.bf16 %v339
        %v372 = vunpack.c.l.bf16 %v340
        %v373 = vunpack.c.l.bf16 %v341
        %v374 = vunpack.c.l.bf16 %v342
        %v375 = vunpack.c.l.bf16 %v343
        %v376 = vunpack.c.l.bf16 %v344
        %v377 = vunpack.c.l.bf16 %v345
        %v378 = vunpack.c.l.bf16 %v346
        %v379 = vunpack.c.l.bf16 %v347
        %v380 = vunpack.c.l.bf16 %v348
        %v381 = vunpack.c.l.bf16 %v349
        %v382 = vunpack.c.l.bf16 %v350
        %v383 = vunpack.c.l.bf16 %v351
        %v384 = vunpack.c.l.bf16 %v352
        %v385 = vunpack.c.l.bf16 %v353
        %v386 = vunpack.c.l.bf16 %v354
        %v387 = vunpack.c.l.bf16 %v355
        %v388 = vunpack.c.l.bf16 %v356
        %v389 = vunpack.c.l.bf16 %v357
        %v390 = vunpack.c.l.bf16 %v358
        %v391 = vunpack.c.l.bf16 %v359
        %v392 = vunpack.c.l.bf16 %v360
        %v393 = vunpack.c.l.bf16 %v361
        %v394 = vstv %s329
        %v395 = vmul.f32 %v362, %v394
        %v396 = vmul.f32 %v363, %v394
        %v397 = vmul.f32 %v364, %v394
        %v398 = vmul.f32 %v365, %v394
        %v399 = vmul.f32 %v366, %v394
        %v400 = vmul.f32 %v367, %v394
        %v401 = vmul.f32 %v368, %v394
        %v402 = vmul.f32 %v369, %v394
        %v403 = vmul.f32 %v370, %v394
        %v404 = vmul.f32 %v371, %v394
        %v405 = vmul.f32 %v372, %v394
        %v406 = vmul.f32 %v373, %v394
        %v407 = vmul.f32 %v374, %v394
        %v408 = vmul.f32 %v375, %v394
        %v409 = vmul.f32 %v376, %v394
        %v410 = vmul.f32 %v377, %v394
        %v411 = vmul.f32 %v378, %v394
        %v412 = vmul.f32 %v379, %v394
        %v413 = vmul.f32 %v380, %v394
        %v414 = vmul.f32 %v381, %v394
        %v415 = vmul.f32 %v382, %v394
        %v416 = vmul.f32 %v383, %v394
        %v417 = vmul.f32 %v384, %v394
        %v418 = vmul.f32 %v385, %v394
        %v419 = vmul.f32 %v386, %v394
        %v420 = vmul.f32 %v387, %v394
        %v421 = vmul.f32 %v388, %v394
        %v422 = vmul.f32 %v389, %v394
        %v423 = vmul.f32 %v390, %v394
        %v424 = vmul.f32 %v391, %v394
        %v425 = vmul.f32 %v392, %v394
        %v426 = vmul.f32 %v393, %v394
        %v427 = vround.ne.pseudo %v395
        %v428 = vround.ne.pseudo %v396
        %v429 = vround.ne.pseudo %v397
        %v430 = vround.ne.pseudo %v398
        %v431 = vround.ne.pseudo %v399
        %v432 = vround.ne.pseudo %v400
        %v433 = vround.ne.pseudo %v401
        %v434 = vround.ne.pseudo %v402
        %v435 = vround.ne.pseudo %v403
        %v436 = vround.ne.pseudo %v404
        %v437 = vround.ne.pseudo %v405
        %v438 = vround.ne.pseudo %v406
        %v439 = vround.ne.pseudo %v407
        %v440 = vround.ne.pseudo %v408
        %v441 = vround.ne.pseudo %v409
        %v442 = vround.ne.pseudo %v410
        %v443 = vround.ne.pseudo %v411
        %v444 = vround.ne.pseudo %v412
        %v445 = vround.ne.pseudo %v413
        %v446 = vround.ne.pseudo %v414
        %v447 = vround.ne.pseudo %v415
        %v448 = vround.ne.pseudo %v416
        %v449 = vround.ne.pseudo %v417
        %v450 = vround.ne.pseudo %v418
        %v451 = vround.ne.pseudo %v419
        %v452 = vround.ne.pseudo %v420
        %v453 = vround.ne.pseudo %v421
        %v454 = vround.ne.pseudo %v422
        %v455 = vround.ne.pseudo %v423
        %v456 = vround.ne.pseudo %v424
        %v457 = vround.ne.pseudo %v425
        %v458 = vround.ne.pseudo %v426
        %v459 = vmax.f32 %v427, -127.0
        %v460 = vmax.f32 %v428, -127.0
        %v461 = vmax.f32 %v429, -127.0
        %v462 = vmax.f32 %v430, -127.0
        %v463 = vmax.f32 %v431, -127.0
        %v464 = vmax.f32 %v432, -127.0
        %v465 = vmax.f32 %v433, -127.0
        %v466 = vmax.f32 %v434, -127.0
        %v467 = vmax.f32 %v435, -127.0
        %v468 = vmax.f32 %v436, -127.0
        %v469 = vmax.f32 %v437, -127.0
        %v470 = vmax.f32 %v438, -127.0
        %v471 = vmax.f32 %v439, -127.0
        %v472 = vmax.f32 %v440, -127.0
        %v473 = vmax.f32 %v441, -127.0
        %v474 = vmax.f32 %v442, -127.0
        %v475 = vmax.f32 %v443, -127.0
        %v476 = vmax.f32 %v444, -127.0
        %v477 = vmax.f32 %v445, -127.0
        %v478 = vmax.f32 %v446, -127.0
        %v479 = vmax.f32 %v447, -127.0
        %v480 = vmax.f32 %v448, -127.0
        %v481 = vmax.f32 %v449, -127.0
        %v482 = vmax.f32 %v450, -127.0
        %v483 = vmax.f32 %v451, -127.0
        %v484 = vmax.f32 %v452, -127.0
        %v485 = vmax.f32 %v453, -127.0
        %v486 = vmax.f32 %v454, -127.0
        %v487 = vmax.f32 %v455, -127.0
        %v488 = vmax.f32 %v456, -127.0
        %v489 = vmax.f32 %v457, -127.0
        %v490 = vmax.f32 %v458, -127.0
        %v491 = vmin.f32 %v459, 127.0
        %v492 = vmin.f32 %v460, 127.0
        %v493 = vmin.f32 %v461, 127.0
        %v494 = vmin.f32 %v462, 127.0
        %v495 = vmin.f32 %v463, 127.0
        %v496 = vmin.f32 %v464, 127.0
        %v497 = vmin.f32 %v465, 127.0
        %v498 = vmin.f32 %v466, 127.0
        %v499 = vmin.f32 %v467, 127.0
        %v500 = vmin.f32 %v468, 127.0
        %v501 = vmin.f32 %v469, 127.0
        %v502 = vmin.f32 %v470, 127.0
        %v503 = vmin.f32 %v471, 127.0
        %v504 = vmin.f32 %v472, 127.0
        %v505 = vmin.f32 %v473, 127.0
        %v506 = vmin.f32 %v474, 127.0
        %v507 = vmin.f32 %v475, 127.0
        %v508 = vmin.f32 %v476, 127.0
        %v509 = vmin.f32 %v477, 127.0
        %v510 = vmin.f32 %v478, 127.0
        %v511 = vmin.f32 %v479, 127.0
        %v512 = vmin.f32 %v480, 127.0
        %v513 = vmin.f32 %v481, 127.0
        %v514 = vmin.f32 %v482, 127.0
        %v515 = vmin.f32 %v483, 127.0
        %v516 = vmin.f32 %v484, 127.0
        %v517 = vmin.f32 %v485, 127.0
        %v518 = vmin.f32 %v486, 127.0
        %v519 = vmin.f32 %v487, 127.0
        %v520 = vmin.f32 %v488, 127.0
        %v521 = vmin.f32 %v489, 127.0
        %v522 = vmin.f32 %v490, 127.0
        %523 = vst [vmem:[#allocation2] sm:$0xff] 0.0
        %524 = vst [vmem:[#allocation2 + $0x8] sm:$0xff] 0.0
        %525 = vst [vmem:[#allocation2 + $0x10] sm:$0x3] 0.0
        %s526 = scalar_lea.vmem [#allocation2], 408
        %527 = vst [vmem:[%s526] sm:$0xff] 0.0
        %528 = vst [vmem:[%s526 + $0x8] sm:$0xff] 0.0
        %529 = vst [vmem:[%s526 + $0x10] sm:$0x3] 0.0
        %530 = vst [vmem:[#allocation2] sm:$0x1] 0.0
        %531 = vst [vmem:[#allocation2 + $0x18] sm:$0x1] 0.0
        %532 = vst [vmem:[#allocation2 + $0x30] sm:$0x1] 0.0
        %533 = vst [vmem:[#allocation2 + $0x48] sm:$0x1] 0.0
        %534 = vst [vmem:[#allocation2 + $0x60] sm:$0x1] 0.0
        %535 = vst [vmem:[#allocation2 + $0x78] sm:$0x1] 0.0
        %536 = vst [vmem:[#allocation2 + $0x90] sm:$0x1] 0.0
        %537 = vst [vmem:[#allocation2 + $0xa8] sm:$0x1] 0.0
        %538 = vst [vmem:[#allocation2 + $0xc0] sm:$0x1] 0.0
        %539 = vst [vmem:[#allocation2 + $0xd8] sm:$0x1] 0.0
        %540 = vst [vmem:[#allocation2 + $0xf0] sm:$0x1] 0.0
        %541 = vst [vmem:[#allocation2 + $0x108] sm:$0x1] 0.0
        %542 = vst [vmem:[#allocation2 + $0x120] sm:$0x1] 0.0
        %543 = vst [vmem:[#allocation2 + $0x138] sm:$0x1] 0.0
        %544 = vst [vmem:[#allocation2 + $0x150] sm:$0x1] 0.0
        %545 = vst [vmem:[#allocation2 + $0x168] sm:$0x1] 0.0
        %546 = vst [vmem:[#allocation2 + $0x180] sm:$0x1] 0.0
        %547 = vst [vmem:[#allocation2 + $0x198] sm:$0x1] 0.0
        %548 = vst [vmem:[#allocation2 + $0x11] sm:$0x1] 0.0
        %549 = vst [vmem:[#allocation2 + $0x29] sm:$0x1] 0.0
        %550 = vst [vmem:[#allocation2 + $0x41] sm:$0x1] 0.0
        %551 = vst [vmem:[#allocation2 + $0x59] sm:$0x1] 0.0
        %552 = vst [vmem:[#allocation2 + $0x71] sm:$0x1] 0.0
        %553 = vst [vmem:[#allocation2 + $0x89] sm:$0x1] 0.0
        %554 = vst [vmem:[#allocation2 + $0xa1] sm:$0x1] 0.0
        %555 = vst [vmem:[#allocation2 + $0xb9] sm:$0x1] 0.0
        %556 = vst [vmem:[#allocation2 + $0xd1] sm:$0x1] 0.0
        %557 = vst [vmem:[#allocation2 + $0xe9] sm:$0x1] 0.0
        %558 = vst [vmem:[#allocation2 + $0x101] sm:$0x1] 0.0
        %559 = vst [vmem:[#allocation2 + $0x119] sm:$0x1] 0.0
        %560 = vst [vmem:[#allocation2 + $0x131] sm:$0x1] 0.0
        %561 = vst [vmem:[#allocation2 + $0x149] sm:$0x1] 0.0
        %562 = vst [vmem:[#allocation2 + $0x161] sm:$0x1] 0.0
        %563 = vst [vmem:[#allocation2 + $0x179] sm:$0x1] 0.0
        %564 = vst [vmem:[#allocation2 + $0x191] sm:$0x1] 0.0
        %565 = vst [vmem:[#allocation2 + $0x1a9] sm:$0x1] 0.0
        %s566 = scalar_lea.vmem [#allocation2], 24
        %567 = vst [vmem:[%s566 + $0x1] sm:$0xff] %v491
        %568 = vst [vmem:[%s566 + $0x9] sm:$0xff] %v492
        %569 = vst [vmem:[%s566 + $0x19] sm:$0xff] %v493
        %570 = vst [vmem:[%s566 + $0x21] sm:$0xff] %v494
        %571 = vst [vmem:[%s566 + $0x31] sm:$0xff] %v495
        %572 = vst [vmem:[%s566 + $0x39] sm:$0xff] %v496
        %573 = vst [vmem:[%s566 + $0x49] sm:$0xff] %v497
        %574 = vst [vmem:[%s566 + $0x51] sm:$0xff] %v498
        %575 = vst [vmem:[%s566 + $0x61] sm:$0xff] %v499
        %576 = vst [vmem:[%s566 + $0x69] sm:$0xff] %v500
        %577 = vst [vmem:[%s566 + $0x79] sm:$0xff] %v501
        %578 = vst [vmem:[%s566 + $0x81] sm:$0xff] %v502
        %579 = vst [vmem:[%s566 + $0x91] sm:$0xff] %v503
        %580 = vst [vmem:[%s566 + $0x99] sm:$0xff] %v504
        %581 = vst [vmem:[%s566 + $0xa9] sm:$0xff] %v505
        %582 = vst [vmem:[%s566 + $0xb1] sm:$0xff] %v506
        %583 = vst [vmem:[%s566 + $0xc1] sm:$0xff] %v507
        %584 = vst [vmem:[%s566 + $0xc9] sm:$0xff] %v508
        %585 = vst [vmem:[%s566 + $0xd9] sm:$0xff] %v509
        %586 = vst [vmem:[%s566 + $0xe1] sm:$0xff] %v510
        %587 = vst [vmem:[%s566 + $0xf1] sm:$0xff] %v511
        %588 = vst [vmem:[%s566 + $0xf9] sm:$0xff] %v512
        %589 = vst [vmem:[%s566 + $0x109] sm:$0xff] %v513
        %590 = vst [vmem:[%s566 + $0x111] sm:$0xff] %v514
        %591 = vst [vmem:[%s566 + $0x121] sm:$0xff] %v515
        %592 = vst [vmem:[%s566 + $0x129] sm:$0xff] %v516
        %593 = vst [vmem:[%s566 + $0x139] sm:$0xff] %v517
        %594 = vst [vmem:[%s566 + $0x141] sm:$0xff] %v518
        %595 = vst [vmem:[%s566 + $0x151] sm:$0xff] %v519
        %596 = vst [vmem:[%s566 + $0x159] sm:$0xff] %v520
        %597 = vst [vmem:[%s566 + $0x169] sm:$0xff] %v521
        %598 = vst [vmem:[%s566 + $0x171] sm:$0xff] %v522
        %599 = vst [vmem:[%s320] sm:$0x1] 0.0
      $region40: #{_unnamed_function_.6} parent=35 // pred_fallthru
        _
      %s600 = smul.u32 %s25, 16
      %v601 = vld [vmem:[%s299] sm:$0xff]
      %v602 = vld [vmem:[%s299 + $0x8] sm:$0x1]
      %s603 = smul.u32 %s600, 24
      %s604 = scalar_lea.vmem [#allocation2], %s603
      %v605 = vld [vmem:[%s604] sm:$0xff]
      %v606 = vld [vmem:[%s604 + $0x8] sm:$0xff]
      %v607 = vld [vmem:[%s604 + $0x18] sm:$0xff]
      %v608 = vld [vmem:[%s604 + $0x20] sm:$0xff]
      %v609 = vld [vmem:[%s604 + $0x30] sm:$0xff]
      %v610 = vld [vmem:[%s604 + $0x38] sm:$0xff]
      %v611 = vld [vmem:[%s604 + $0x48] sm:$0xff]
      %v612 = vld [vmem:[%s604 + $0x50] sm:$0xff]
      %v613 = vld [vmem:[%s604 + $0x60] sm:$0xff]
      %v614 = vld [vmem:[%s604 + $0x68] sm:$0xff]
      %v615 = vld [vmem:[%s604 + $0x78] sm:$0xff]
      %v616 = vld [vmem:[%s604 + $0x80] sm:$0xff]
      %v617 = vld [vmem:[%s604 + $0x90] sm:$0xff]
      %v618 = vld [vmem:[%s604 + $0x98] sm:$0xff]
      %v619 = vld [vmem:[%s604 + $0xa8] sm:$0xff]
      %v620 = vld [vmem:[%s604 + $0xb0] sm:$0xff]
      %v621 = vld [vmem:[%s604 + $0xc0] sm:$0xff]
      %v622 = vld [vmem:[%s604 + $0xc8] sm:$0xff]
      %v623 = vld [vmem:[%s604 + $0xd8] sm:$0xff]
      %v624 = vld [vmem:[%s604 + $0xe0] sm:$0xff]
      %v625 = vld [vmem:[%s604 + $0xf0] sm:$0xff]
      %v626 = vld [vmem:[%s604 + $0xf8] sm:$0xff]
      %v627 = vld [vmem:[%s604 + $0x108] sm:$0xff]
      %v628 = vld [vmem:[%s604 + $0x110] sm:$0xff]
      %v629 = vld [vmem:[%s604 + $0x120] sm:$0xff]
      %v630 = vld [vmem:[%s604 + $0x128] sm:$0xff]
      %v631 = vld [vmem:[%s604 + $0x138] sm:$0xff]
      %v632 = vld [vmem:[%s604 + $0x140] sm:$0xff]
      %v633 = vld [vmem:[%s604 + $0x150] sm:$0xff]
      %v634 = vld [vmem:[%s604 + $0x158] sm:$0xff]
      %v635 = vld [vmem:[%s604 + $0x168] sm:$0xff]
      %v636 = vld [vmem:[%s604 + $0x170] sm:$0xff]
      %v637 = vlaneseq
      %v638 = vshrl.u32 %v637, 7
      %v639 = vsub.s32 0, %v638
      %v640 = vrot.slane %v601, %v639
      %v641 = vmul.f32 %v605, %v640
      %v642 = vmul.f32 %v606, %v640
      %v643 = vmul.f32 %v607, %v640
      %v644 = vmul.f32 %v608, %v640
      %v645 = vmul.f32 %v609, %v640
      %v646 = vmul.f32 %v610, %v640
      %v647 = vmul.f32 %v611, %v640
      %v648 = vmul.f32 %v612, %v640
      %v649 = vmul.f32 %v613, %v640
      %v650 = vmul.f32 %v614, %v640
      %v651 = vmul.f32 %v615, %v640
      %v652 = vmul.f32 %v616, %v640
      %v653 = vmul.f32 %v617, %v640
      %v654 = vmul.f32 %v618, %v640
      %v655 = vmul.f32 %v619, %v640
      %v656 = vmul.f32 %v620, %v640
      %v657 = vmul.f32 %v621, %v640
      %v658 = vmul.f32 %v622, %v640
      %v659 = vmul.f32 %v623, %v640
      %v660 = vmul.f32 %v624, %v640
      %v661 = vmul.f32 %v625, %v640
      %v662 = vmul.f32 %v626, %v640
      %v663 = vmul.f32 %v627, %v640
      %v664 = vmul.f32 %v628, %v640
      %v665 = vmul.f32 %v629, %v640
      %v666 = vmul.f32 %v630, %v640
      %v667 = vmul.f32 %v631, %v640
      %v668 = vmul.f32 %v632, %v640
      %v669 = vmul.f32 %v633, %v640
      %v670 = vmul.f32 %v634, %v640
      %v671 = vmul.f32 %v635, %v640
      %v672 = vmul.f32 %v636, %v640
      %v673 = vadd.f32 %v641, 0.0
      %v674 = vadd.f32 %v642, 0.0
      %v675 = vadd.f32 %v643, 0.0
      %v676 = vadd.f32 %v644, 0.0
      %v677 = vadd.f32 %v645, 0.0
      %v678 = vadd.f32 %v646, 0.0
      %v679 = vadd.f32 %v647, 0.0
      %v680 = vadd.f32 %v648, 0.0
      %v681 = vadd.f32 %v649, 0.0
      %v682 = vadd.f32 %v650, 0.0
      %v683 = vadd.f32 %v651, 0.0
      %v684 = vadd.f32 %v652, 0.0
      %v685 = vadd.f32 %v653, 0.0
      %v686 = vadd.f32 %v654, 0.0
      %v687 = vadd.f32 %v655, 0.0
      %v688 = vadd.f32 %v656, 0.0
      %v689 = vadd.f32 %v657, 0.0
      %v690 = vadd.f32 %v658, 0.0
      %v691 = vadd.f32 %v659, 0.0
      %v692 = vadd.f32 %v660, 0.0
      %v693 = vadd.f32 %v661, 0.0
      %v694 = vadd.f32 %v662, 0.0
      %v695 = vadd.f32 %v663, 0.0
      %v696 = vadd.f32 %v664, 0.0
      %v697 = vadd.f32 %v665, 0.0
      %v698 = vadd.f32 %v666, 0.0
      %v699 = vadd.f32 %v667, 0.0
      %v700 = vadd.f32 %v668, 0.0
      %v701 = vadd.f32 %v669, 0.0
      %v702 = vadd.f32 %v670, 0.0
      %v703 = vadd.f32 %v671, 0.0
      %v704 = vadd.f32 %v672, 0.0
      %v705 = vld [vmem:[%s604 + $0x1] sm:$0xff]
      %v706 = vld [vmem:[%s604 + $0x9] sm:$0xff]
      %v707 = vld [vmem:[%s604 + $0x19] sm:$0xff]
      %v708 = vld [vmem:[%s604 + $0x21] sm:$0xff]
      %v709 = vld [vmem:[%s604 + $0x31] sm:$0xff]
      %v710 = vld [vmem:[%s604 + $0x39] sm:$0xff]
      %v711 = vld [vmem:[%s604 + $0x49] sm:$0xff]
      %v712 = vld [vmem:[%s604 + $0x51] sm:$0xff]
      %v713 = vld [vmem:[%s604 + $0x61] sm:$0xff]
      %v714 = vld [vmem:[%s604 + $0x69] sm:$0xff]
      %v715 = vld [vmem:[%s604 + $0x79] sm:$0xff]
      %v716 = vld [vmem:[%s604 + $0x81] sm:$0xff]
      %v717 = vld [vmem:[%s604 + $0x91] sm:$0xff]
      %v718 = vld [vmem:[%s604 + $0x99] sm:$0xff]
      %v719 = vld [vmem:[%s604 + $0xa9] sm:$0xff]
      %v720 = vld [vmem:[%s604 + $0xb1] sm:$0xff]
      %v721 = vld [vmem:[%s604 + $0xc1] sm:$0xff]
      %v722 = vld [vmem:[%s604 + $0xc9] sm:$0xff]
      %v723 = vld [vmem:[%s604 + $0xd9] sm:$0xff]
      %v724 = vld [vmem:[%s604 + $0xe1] sm:$0xff]
      %v725 = vld [vmem:[%s604 + $0xf1] sm:$0xff]
      %v726 = vld [vmem:[%s604 + $0xf9] sm:$0xff]
      %v727 = vld [vmem:[%s604 + $0x109] sm:$0xff]
      %v728 = vld [vmem:[%s604 + $0x111] sm:$0xff]
      %v729 = vld [vmem:[%s604 + $0x121] sm:$0xff]
      %v730 = vld [vmem:[%s604 + $0x129] sm:$0xff]
      %v731 = vld [vmem:[%s604 + $0x139] sm:$0xff]
      %v732 = vld [vmem:[%s604 + $0x141] sm:$0xff]
      %v733 = vld [vmem:[%s604 + $0x151] sm:$0xff]
      %v734 = vld [vmem:[%s604 + $0x159] sm:$0xff]
      %v735 = vld [vmem:[%s604 + $0x169] sm:$0xff]
      %v736 = vld [vmem:[%s604 + $0x171] sm:$0xff]
      %v737 = vlaneseq
      %v738 = vshrl.u32 %v737, 7
      %v739 = vsub.s32 1, %v738
      %v740 = vrot.slane %v601, %v739
      %v741 = vmul.f32 %v705, %v740
      %v742 = vmul.f32 %v706, %v740
      %v743 = vmul.f32 %v707, %v740
      %v744 = vmul.f32 %v708, %v740
      %v745 = vmul.f32 %v709, %v740
      %v746 = vmul.f32 %v710, %v740
      %v747 = vmul.f32 %v711, %v740
      %v748 = vmul.f32 %v712, %v740
      %v749 = vmul.f32 %v713, %v740
      %v750 = vmul.f32 %v714, %v740
      %v751 = vmul.f32 %v715, %v740
      %v752 = vmul.f32 %v716, %v740
      %v753 = vmul.f32 %v717, %v740
      %v754 = vmul.f32 %v718, %v740
      %v755 = vmul.f32 %v719, %v740
      %v756 = vmul.f32 %v720, %v740
      %v757 = vmul.f32 %v721, %v740
      %v758 = vmul.f32 %v722, %v740
      %v759 = vmul.f32 %v723, %v740
      %v760 = vmul.f32 %v724, %v740
      %v761 = vmul.f32 %v725, %v740
      %v762 = vmul.f32 %v726, %v740
      %v763 = vmul.f32 %v727, %v740
      %v764 = vmul.f32 %v728, %v740
      %v765 = vmul.f32 %v729, %v740
      %v766 = vmul.f32 %v730, %v740
      %v767 = vmul.f32 %v731, %v740
      %v768 = vmul.f32 %v732, %v740
      %v769 = vmul.f32 %v733, %v740
      %v770 = vmul.f32 %v734, %v740
      %v771 = vmul.f32 %v735, %v740
      %v772 = vmul.f32 %v736, %v740
      %v773 = vadd.f32 %v673, %v741
      %v774 = vadd.f32 %v674, %v742
      %v775 = vadd.f32 %v675, %v743
      %v776 = vadd.f32 %v676, %v744
      %v777 = vadd.f32 %v677, %v745
      %v778 = vadd.f32 %v678, %v746
      %v779 = vadd.f32 %v679, %v747
      %v780 = vadd.f32 %v680, %v748
      %v781 = vadd.f32 %v681, %v749
      %v782 = vadd.f32 %v682, %v750
      %v783 = vadd.f32 %v683, %v751
      %v784 = vadd.f32 %v684, %v752
      %v785 = vadd.f32 %v685, %v753
      %v786 = vadd.f32 %v686, %v754
      %v787 = vadd.f32 %v687, %v755
      %v788 = vadd.f32 %v688, %v756
      %v789 = vadd.f32 %v689, %v757
      %v790 = vadd.f32 %v690, %v758
      %v791 = vadd.f32 %v691, %v759
      %v792 = vadd.f32 %v692, %v760
      %v793 = vadd.f32 %v693, %v761
      %v794 = vadd.f32 %v694, %v762
      %v795 = vadd.f32 %v695, %v763
      %v796 = vadd.f32 %v696, %v764
      %v797 = vadd.f32 %v697, %v765
      %v798 = vadd.f32 %v698, %v766
      %v799 = vadd.f32 %v699, %v767
      %v800 = vadd.f32 %v700, %v768
      %v801 = vadd.f32 %v701, %v769
      %v802 = vadd.f32 %v702, %v770
      %v803 = vadd.f32 %v703, %v771
      %v804 = vadd.f32 %v704, %v772
      %v805 = vld [vmem:[%s604 + $0x2] sm:$0xff]
      %v806 = vld [vmem:[%s604 + $0xa] sm:$0xff]
      %v807 = vld [vmem:[%s604 + $0x1a] sm:$0xff]
      %v808 = vld [vmem:[%s604 + $0x22] sm:$0xff]
      %v809 = vld [vmem:[%s604 + $0x32] sm:$0xff]
      %v810 = vld [vmem:[%s604 + $0x3a] sm:$0xff]
      %v811 = vld [vmem:[%s604 + $0x4a] sm:$0xff]
      %v812 = vld [vmem:[%s604 + $0x52] sm:$0xff]
      %v813 = vld [vmem:[%s604 + $0x62] sm:$0xff]
      %v814 = vld [vmem:[%s604 + $0x6a] sm:$0xff]
      %v815 = vld [vmem:[%s604 + $0x7a] sm:$0xff]
      %v816 = vld [vmem:[%s604 + $0x82] sm:$0xff]
      %v817 = vld [vmem:[%s604 + $0x92] sm:$0xff]
      %v818 = vld [vmem:[%s604 + $0x9a] sm:$0xff]
      %v819 = vld [vmem:[%s604 + $0xaa] sm:$0xff]
      %v820 = vld [vmem:[%s604 + $0xb2] sm:$0xff]
      %v821 = vld [vmem:[%s604 + $0xc2] sm:$0xff]
      %v822 = vld [vmem:[%s604 + $0xca] sm:$0xff]
      %v823 = vld [vmem:[%s604 + $0xda] sm:$0xff]
      %v824 = vld [vmem:[%s604 + $0xe2] sm:$0xff]
      %v825 = vld [vmem:[%s604 + $0xf2] sm:$0xff]
      %v826 = vld [vmem:[%s604 + $0xfa] sm:$0xff]
      %v827 = vld [vmem:[%s604 + $0x10a] sm:$0xff]
      %v828 = vld [vmem:[%s604 + $0x112] sm:$0xff]
      %v829 = vld [vmem:[%s604 + $0x122] sm:$0xff]
      %v830 = vld [vmem:[%s604 + $0x12a] sm:$0xff]
      %v831 = vld [vmem:[%s604 + $0x13a] sm:$0xff]
      %v832 = vld [vmem:[%s604 + $0x142] sm:$0xff]
      %v833 = vld [vmem:[%s604 + $0x152] sm:$0xff]
      %v834 = vld [vmem:[%s604 + $0x15a] sm:$0xff]
      %v835 = vld [vmem:[%s604 + $0x16a] sm:$0xff]
      %v836 = vld [vmem:[%s604 + $0x172] sm:$0xff]
      %v837 = vlaneseq
      %v838 = vshrl.u32 %v837, 7
      %v839 = vsub.s32 2, %v838
      %v840 = vrot.slane %v601, %v839
      %v841 = vmul.f32 %v805, %v840
      %v842 = vmul.f32 %v806, %v840
      %v843 = vmul.f32 %v807, %v840
      %v844 = vmul.f32 %v808, %v840
      %v845 = vmul.f32 %v809, %v840
      %v846 = vmul.f32 %v810, %v840
      %v847 = vmul.f32 %v811, %v840
      %v848 = vmul.f32 %v812, %v840
      %v849 = vmul.f32 %v813, %v840
      %v850 = vmul.f32 %v814, %v840
      %v851 = vmul.f32 %v815, %v840
      %v852 = vmul.f32 %v816, %v840
      %v853 = vmul.f32 %v817, %v840
      %v854 = vmul.f32 %v818, %v840
      %v855 = vmul.f32 %v819, %v840
      %v856 = vmul.f32 %v820, %v840
      %v857 = vmul.f32 %v821, %v840
      %v858 = vmul.f32 %v822, %v840
      %v859 = vmul.f32 %v823, %v840
      %v860 = vmul.f32 %v824, %v840
      %v861 = vmul.f32 %v825, %v840
      %v862 = vmul.f32 %v826, %v840
      %v863 = vmul.f32 %v827, %v840
      %v864 = vmul.f32 %v828, %v840
      %v865 = vmul.f32 %v829, %v840
      %v866 = vmul.f32 %v830, %v840
      %v867 = vmul.f32 %v831, %v840
      %v868 = vmul.f32 %v832, %v840
      %v869 = vmul.f32 %v833, %v840
      %v870 = vmul.f32 %v834, %v840
      %v871 = vmul.f32 %v835, %v840
      %v872 = vmul.f32 %v836, %v840
      %v873 = vadd.f32 %v773, %v841
      %v874 = vadd.f32 %v774, %v842
      %v875 = vadd.f32 %v775, %v843
      %v876 = vadd.f32 %v776, %v844
      %v877 = vadd.f32 %v777, %v845
      %v878 = vadd.f32 %v778, %v846
      %v879 = vadd.f32 %v779, %v847
      %v880 = vadd.f32 %v780, %v848
      %v881 = vadd.f32 %v781, %v849
      %v882 = vadd.f32 %v782, %v850
      %v883 = vadd.f32 %v783, %v851
      %v884 = vadd.f32 %v784, %v852
      %v885 = vadd.f32 %v785, %v853
      %v886 = vadd.f32 %v786, %v854
      %v887 = vadd.f32 %v787, %v855
      %v888 = vadd.f32 %v788, %v856
      %v889 = vadd.f32 %v789, %v857
      %v890 = vadd.f32 %v790, %v858
      %v891 = vadd.f32 %v791, %v859
      %v892 = vadd.f32 %v792, %v860
      %v893 = vadd.f32 %v793, %v861
      %v894 = vadd.f32 %v794, %v862
      %v895 = vadd.f32 %v795, %v863
      %v896 = vadd.f32 %v796, %v864
      %v897 = vadd.f32 %v797, %v865
      %v898 = vadd.f32 %v798, %v866
      %v899 = vadd.f32 %v799, %v867
      %v900 = vadd.f32 %v800, %v868
      %v901 = vadd.f32 %v801, %v869
      %v902 = vadd.f32 %v802, %v870
      %v903 = vadd.f32 %v803, %v871
      %v904 = vadd.f32 %v804, %v872
      %s905 = sadd.s32 %s600, 1
      %s906 = smul.u32 %s905, 24
      %s907 = scalar_lea.vmem [#allocation2], %s906
      %v908 = vld [vmem:[%s907] sm:$0xff]
      %v909 = vld [vmem:[%s907 + $0x8] sm:$0xff]
      %v910 = vld [vmem:[%s907 + $0x18] sm:$0xff]
      %v911 = vld [vmem:[%s907 + $0x20] sm:$0xff]
      %v912 = vld [vmem:[%s907 + $0x30] sm:$0xff]
      %v913 = vld [vmem:[%s907 + $0x38] sm:$0xff]
      %v914 = vld [vmem:[%s907 + $0x48] sm:$0xff]
      %v915 = vld [vmem:[%s907 + $0x50] sm:$0xff]
      %v916 = vld [vmem:[%s907 + $0x60] sm:$0xff]
      %v917 = vld [vmem:[%s907 + $0x68] sm:$0xff]
      %v918 = vld [vmem:[%s907 + $0x78] sm:$0xff]
      %v919 = vld [vmem:[%s907 + $0x80] sm:$0xff]
      %v920 = vld [vmem:[%s907 + $0x90] sm:$0xff]
      %v921 = vld [vmem:[%s907 + $0x98] sm:$0xff]
      %v922 = vld [vmem:[%s907 + $0xa8] sm:$0xff]
      %v923 = vld [vmem:[%s907 + $0xb0] sm:$0xff]
      %v924 = vld [vmem:[%s907 + $0xc0] sm:$0xff]
      %v925 = vld [vmem:[%s907 + $0xc8] sm:$0xff]
      %v926 = vld [vmem:[%s907 + $0xd8] sm:$0xff]
      %v927 = vld [vmem:[%s907 + $0xe0] sm:$0xff]
      %v928 = vld [vmem:[%s907 + $0xf0] sm:$0xff]
      %v929 = vld [vmem:[%s907 + $0xf8] sm:$0xff]
      %v930 = vld [vmem:[%s907 + $0x108] sm:$0xff]
      %v931 = vld [vmem:[%s907 + $0x110] sm:$0xff]
      %v932 = vld [vmem:[%s907 + $0x120] sm:$0xff]
      %v933 = vld [vmem:[%s907 + $0x128] sm:$0xff]
      %v934 = vld [vmem:[%s907 + $0x138] sm:$0xff]
      %v935 = vld [vmem:[%s907 + $0x140] sm:$0xff]
      %v936 = vld [vmem:[%s907 + $0x150] sm:$0xff]
      %v937 = vld [vmem:[%s907 + $0x158] sm:$0xff]
      %v938 = vld [vmem:[%s907 + $0x168] sm:$0xff]
      %v939 = vld [vmem:[%s907 + $0x170] sm:$0xff]
      %v940 = vlaneseq
      %v941 = vshrl.u32 %v940, 7
      %v942 = vsub.s32 3, %v941
      %v943 = vrot.slane %v601, %v942
      %v944 = vmul.f32 %v908, %v943
      %v945 = vmul.f32 %v909, %v943
      %v946 = vmul.f32 %v910, %v943
      %v947 = vmul.f32 %v911, %v943
      %v948 = vmul.f32 %v912, %v943
      %v949 = vmul.f32 %v913, %v943
      %v950 = vmul.f32 %v914, %v943
      %v951 = vmul.f32 %v915, %v943
      %v952 = vmul.f32 %v916, %v943
      %v953 = vmul.f32 %v917, %v943
      %v954 = vmul.f32 %v918, %v943
      %v955 = vmul.f32 %v919, %v943
      %v956 = vmul.f32 %v920, %v943
      %v957 = vmul.f32 %v921, %v943
      %v958 = vmul.f32 %v922, %v943
      %v959 = vmul.f32 %v923, %v943
      %v960 = vmul.f32 %v924, %v943
      %v961 = vmul.f32 %v925, %v943
      %v962 = vmul.f32 %v926, %v943
      %v963 = vmul.f32 %v927, %v943
      %v964 = vmul.f32 %v928, %v943
      %v965 = vmul.f32 %v929, %v943
      %v966 = vmul.f32 %v930, %v943
      %v967 = vmul.f32 %v931, %v943
      %v968 = vmul.f32 %v932, %v943
      %v969 = vmul.f32 %v933, %v943
      %v970 = vmul.f32 %v934, %v943
      %v971 = vmul.f32 %v935, %v943
      %v972 = vmul.f32 %v936, %v943
      %v973 = vmul.f32 %v937, %v943
      %v974 = vmul.f32 %v938, %v943
      %v975 = vmul.f32 %v939, %v943
      %v976 = vadd.f32 %v873, %v944
      %v977 = vadd.f32 %v874, %v945
      %v978 = vadd.f32 %v875, %v946
      %v979 = vadd.f32 %v876, %v947
      %v980 = vadd.f32 %v877, %v948
      %v981 = vadd.f32 %v878, %v949
      %v982 = vadd.f32 %v879, %v950
      %v983 = vadd.f32 %v880, %v951
      %v984 = vadd.f32 %v881, %v952
      %v985 = vadd.f32 %v882, %v953
      %v986 = vadd.f32 %v883, %v954
      %v987 = vadd.f32 %v884, %v955
      %v988 = vadd.f32 %v885, %v956
      %v989 = vadd.f32 %v886, %v957
      %v990 = vadd.f32 %v887, %v958
      %v991 = vadd.f32 %v888, %v959
      %v992 = vadd.f32 %v889, %v960
      %v993 = vadd.f32 %v890, %v961
      %v994 = vadd.f32 %v891, %v962
      %v995 = vadd.f32 %v892, %v963
      %v996 = vadd.f32 %v893, %v964
      %v997 = vadd.f32 %v894, %v965
      %v998 = vadd.f32 %v895, %v966
      %v999 = vadd.f32 %v896, %v967
      %v1000 = vadd.f32 %v897, %v968
      %v1001 = vadd.f32 %v898, %v969
      %v1002 = vadd.f32 %v899, %v970
      %v1003 = vadd.f32 %v900, %v971
      %v1004 = vadd.f32 %v901, %v972
      %v1005 = vadd.f32 %v902, %v973
      %v1006 = vadd.f32 %v903, %v974
      %v1007 = vadd.f32 %v904, %v975
      %v1008 = vld [vmem:[%s907 + $0x1] sm:$0xff]
      %v1009 = vld [vmem:[%s907 + $0x9] sm:$0xff]
      %v1010 = vld [vmem:[%s907 + $0x19] sm:$0xff]
      %v1011 = vld [vmem:[%s907 + $0x21] sm:$0xff]
      %v1012 = vld [vmem:[%s907 + $0x31] sm:$0xff]
      %v1013 = vld [vmem:[%s907 + $0x39] sm:$0xff]
      %v1014 = vld [vmem:[%s907 + $0x49] sm:$0xff]
      %v1015 = vld [vmem:[%s907 + $0x51] sm:$0xff]
      %v1016 = vld [vmem:[%s907 + $0x61] sm:$0xff]
      %v1017 = vld [vmem:[%s907 + $0x69] sm:$0xff]
      %v1018 = vld [vmem:[%s907 + $0x79] sm:$0xff]
      %v1019 = vld [vmem:[%s907 + $0x81] sm:$0xff]
      %v1020 = vld [vmem:[%s907 + $0x91] sm:$0xff]
      %v1021 = vld [vmem:[%s907 + $0x99] sm:$0xff]
      %v1022 = vld [vmem:[%s907 + $0xa9] sm:$0xff]
      %v1023 = vld [vmem:[%s907 + $0xb1] sm:$0xff]
      %v1024 = vld [vmem:[%s907 + $0xc1] sm:$0xff]
      %v1025 = vld [vmem:[%s907 + $0xc9] sm:$0xff]
      %v1026 = vld [vmem:[%s907 + $0xd9] sm:$0xff]
      %v1027 = vld [vmem:[%s907 + $0xe1] sm:$0xff]
      %v1028 = vld [vmem:[%s907 + $0xf1] sm:$0xff]
      %v1029 = vld [vmem:[%s907 + $0xf9] sm:$0xff]
      %v1030 = vld [vmem:[%s907 + $0x109] sm:$0xff]
      %v1031 = vld [vmem:[%s907 + $0x111] sm:$0xff]
      %v1032 = vld [vmem:[%s907 + $0x121] sm:$0xff]
      %v1033 = vld [vmem:[%s907 + $0x129] sm:$0xff]
      %v1034 = vld [vmem:[%s907 + $0x139] sm:$0xff]
      %v1035 = vld [vmem:[%s907 + $0x141] sm:$0xff]
      %v1036 = vld [vmem:[%s907 + $0x151] sm:$0xff]
      %v1037 = vld [vmem:[%s907 + $0x159] sm:$0xff]
      %v1038 = vld [vmem:[%s907 + $0x169] sm:$0xff]
      %v1039 = vld [vmem:[%s907 + $0x171] sm:$0xff]
      %v1040 = vlaneseq
      %v1041 = vshrl.u32 %v1040, 7
      %v1042 = vsub.s32 4, %v1041
      %v1043 = vrot.slane %v601, %v1042
      %v1044 = vmul.f32 %v1008, %v1043
      %v1045 = vmul.f32 %v1009, %v1043
      %v1046 = vmul.f32 %v1010, %v1043
      %v1047 = vmul.f32 %v1011, %v1043
      %v1048 = vmul.f32 %v1012, %v1043
      %v1049 = vmul.f32 %v1013, %v1043
      %v1050 = vmul.f32 %v1014, %v1043
      %v1051 = vmul.f32 %v1015, %v1043
      %v1052 = vmul.f32 %v1016, %v1043
      %v1053 = vmul.f32 %v1017, %v1043
      %v1054 = vmul.f32 %v1018, %v1043
      %v1055 = vmul.f32 %v1019, %v1043
      %v1056 = vmul.f32 %v1020, %v1043
      %v1057 = vmul.f32 %v1021, %v1043
      %v1058 = vmul.f32 %v1022, %v1043
      %v1059 = vmul.f32 %v1023, %v1043
      %v1060 = vmul.f32 %v1024, %v1043
      %v1061 = vmul.f32 %v1025, %v1043
      %v1062 = vmul.f32 %v1026, %v1043
      %v1063 = vmul.f32 %v1027, %v1043
      %v1064 = vmul.f32 %v1028, %v1043
      %v1065 = vmul.f32 %v1029, %v1043
      %v1066 = vmul.f32 %v1030, %v1043
      %v1067 = vmul.f32 %v1031, %v1043
      %v1068 = vmul.f32 %v1032, %v1043
      %v1069 = vmul.f32 %v1033, %v1043
      %v1070 = vmul.f32 %v1034, %v1043
      %v1071 = vmul.f32 %v1035, %v1043
      %v1072 = vmul.f32 %v1036, %v1043
      %v1073 = vmul.f32 %v1037, %v1043
      %v1074 = vmul.f32 %v1038, %v1043
      %v1075 = vmul.f32 %v1039, %v1043
      %v1076 = vadd.f32 %v976, %v1044
      %v1077 = vadd.f32 %v977, %v1045
      %v1078 = vadd.f32 %v978, %v1046
      %v1079 = vadd.f32 %v979, %v1047
      %v1080 = vadd.f32 %v980, %v1048
      %v1081 = vadd.f32 %v981, %v1049
      %v1082 = vadd.f32 %v982, %v1050
      %v1083 = vadd.f32 %v983, %v1051
      %v1084 = vadd.f32 %v984, %v1052
      %v1085 = vadd.f32 %v985, %v1053
      %v1086 = vadd.f32 %v986, %v1054
      %v1087 = vadd.f32 %v987, %v1055
      %v1088 = vadd.f32 %v988, %v1056
      %v1089 = vadd.f32 %v989, %v1057
      %v1090 = vadd.f32 %v990, %v1058
      %v1091 = vadd.f32 %v991, %v1059
      %v1092 = vadd.f32 %v992, %v1060
      %v1093 = vadd.f32 %v993, %v1061
      %v1094 = vadd.f32 %v994, %v1062
      %v1095 = vadd.f32 %v995, %v1063
      %v1096 = vadd.f32 %v996, %v1064
      %v1097 = vadd.f32 %v997, %v1065
      %v1098 = vadd.f32 %v998, %v1066
      %v1099 = vadd.f32 %v999, %v1067
      %v1100 = vadd.f32 %v1000, %v1068
      %v1101 = vadd.f32 %v1001, %v1069
      %v1102 = vadd.f32 %v1002, %v1070
      %v1103 = vadd.f32 %v1003, %v1071
      %v1104 = vadd.f32 %v1004, %v1072
      %v1105 = vadd.f32 %v1005, %v1073
      %v1106 = vadd.f32 %v1006, %v1074
      %v1107 = vadd.f32 %v1007, %v1075
      %v1108 = vld [vmem:[%s907 + $0x2] sm:$0xff]
      %v1109 = vld [vmem:[%s907 + $0xa] sm:$0xff]
      %v1110 = vld [vmem:[%s907 + $0x1a] sm:$0xff]
      %v1111 = vld [vmem:[%s907 + $0x22] sm:$0xff]
      %v1112 = vld [vmem:[%s907 + $0x32] sm:$0xff]
      %v1113 = vld [vmem:[%s907 + $0x3a] sm:$0xff]
      %v1114 = vld [vmem:[%s907 + $0x4a] sm:$0xff]
      %v1115 = vld [vmem:[%s907 + $0x52] sm:$0xff]
      %v1116 = vld [vmem:[%s907 + $0x62] sm:$0xff]
      %v1117 = vld [vmem:[%s907 + $0x6a] sm:$0xff]
      %v1118 = vld [vmem:[%s907 + $0x7a] sm:$0xff]
      %v1119 = vld [vmem:[%s907 + $0x82] sm:$0xff]
      %v1120 = vld [vmem:[%s907 + $0x92] sm:$0xff]
      %v1121 = vld [vmem:[%s907 + $0x9a] sm:$0xff]
      %v1122 = vld [vmem:[%s907 + $0xaa] sm:$0xff]
      %v1123 = vld [vmem:[%s907 + $0xb2] sm:$0xff]
      %v1124 = vld [vmem:[%s907 + $0xc2] sm:$0xff]
      %v1125 = vld [vmem:[%s907 + $0xca] sm:$0xff]
      %v1126 = vld [vmem:[%s907 + $0xda] sm:$0xff]
      %v1127 = vld [vmem:[%s907 + $0xe2] sm:$0xff]
      %v1128 = vld [vmem:[%s907 + $0xf2] sm:$0xff]
      %v1129 = vld [vmem:[%s907 + $0xfa] sm:$0xff]
      %v1130 = vld [vmem:[%s907 + $0x10a] sm:$0xff]
      %v1131 = vld [vmem:[%s907 + $0x112] sm:$0xff]
      %v1132 = vld [vmem:[%s907 + $0x122] sm:$0xff]
      %v1133 = vld [vmem:[%s907 + $0x12a] sm:$0xff]
      %v1134 = vld [vmem:[%s907 + $0x13a] sm:$0xff]
      %v1135 = vld [vmem:[%s907 + $0x142] sm:$0xff]
      %v1136 = vld [vmem:[%s907 + $0x152] sm:$0xff]
      %v1137 = vld [vmem:[%s907 + $0x15a] sm:$0xff]
      %v1138 = vld [vmem:[%s907 + $0x16a] sm:$0xff]
      %v1139 = vld [vmem:[%s907 + $0x172] sm:$0xff]
      %v1140 = vlaneseq
      %v1141 = vshrl.u32 %v1140, 7
      %v1142 = vsub.s32 5, %v1141
      %v1143 = vrot.slane %v601, %v1142
      %v1144 = vmul.f32 %v1108, %v1143
      %v1145 = vmul.f32 %v1109, %v1143
      %v1146 = vmul.f32 %v1110, %v1143
      %v1147 = vmul.f32 %v1111, %v1143
      %v1148 = vmul.f32 %v1112, %v1143
      %v1149 = vmul.f32 %v1113, %v1143
      %v1150 = vmul.f32 %v1114, %v1143
      %v1151 = vmul.f32 %v1115, %v1143
      %v1152 = vmul.f32 %v1116, %v1143
      %v1153 = vmul.f32 %v1117, %v1143
      %v1154 = vmul.f32 %v1118, %v1143
      %v1155 = vmul.f32 %v1119, %v1143
      %v1156 = vmul.f32 %v1120, %v1143
      %v1157 = vmul.f32 %v1121, %v1143
      %v1158 = vmul.f32 %v1122, %v1143
      %v1159 = vmul.f32 %v1123, %v1143
      %v1160 = vmul.f32 %v1124, %v1143
      %v1161 = vmul.f32 %v1125, %v1143
      %v1162 = vmul.f32 %v1126, %v1143
      %v1163 = vmul.f32 %v1127, %v1143
      %v1164 = vmul.f32 %v1128, %v1143
      %v1165 = vmul.f32 %v1129, %v1143
      %v1166 = vmul.f32 %v1130, %v1143
      %v1167 = vmul.f32 %v1131, %v1143
      %v1168 = vmul.f32 %v1132, %v1143
      %v1169 = vmul.f32 %v1133, %v1143
      %v1170 = vmul.f32 %v1134, %v1143
      %v1171 = vmul.f32 %v1135, %v1143
      %v1172 = vmul.f32 %v1136, %v1143
      %v1173 = vmul.f32 %v1137, %v1143
      %v1174 = vmul.f32 %v1138, %v1143
      %v1175 = vmul.f32 %v1139, %v1143
      %v1176 = vadd.f32 %v1076, %v1144
      %v1177 = vadd.f32 %v1077, %v1145
      %v1178 = vadd.f32 %v1078, %v1146
      %v1179 = vadd.f32 %v1079, %v1147
      %v1180 = vadd.f32 %v1080, %v1148
      %v1181 = vadd.f32 %v1081, %v1149
      %v1182 = vadd.f32 %v1082, %v1150
      %v1183 = vadd.f32 %v1083, %v1151
      %v1184 = vadd.f32 %v1084, %v1152
      %v1185 = vadd.f32 %v1085, %v1153
      %v1186 = vadd.f32 %v1086, %v1154
      %v1187 = vadd.f32 %v1087, %v1155
      %v1188 = vadd.f32 %v1088, %v1156
      %v1189 = vadd.f32 %v1089, %v1157
      %v1190 = vadd.f32 %v1090, %v1158
      %v1191 = vadd.f32 %v1091, %v1159
      %v1192 = vadd.f32 %v1092, %v1160
      %v1193 = vadd.f32 %v1093, %v1161
      %v1194 = vadd.f32 %v1094, %v1162
      %v1195 = vadd.f32 %v1095, %v1163
      %v1196 = vadd.f32 %v1096, %v1164
      %v1197 = vadd.f32 %v1097, %v1165
      %v1198 = vadd.f32 %v1098, %v1166
      %v1199 = vadd.f32 %v1099, %v1167
      %v1200 = vadd.f32 %v1100, %v1168
      %v1201 = vadd.f32 %v1101, %v1169
      %v1202 = vadd.f32 %v1102, %v1170
      %v1203 = vadd.f32 %v1103, %v1171
      %v1204 = vadd.f32 %v1104, %v1172
      %v1205 = vadd.f32 %v1105, %v1173
      %v1206 = vadd.f32 %v1106, %v1174
      %v1207 = vadd.f32 %v1107, %v1175
      %s1208 = sadd.s32 %s600, 2
      %s1209 = smul.u32 %s1208, 24
      %s1210 = scalar_lea.vmem [#allocation2], %s1209
      %v1211 = vld [vmem:[%s1210] sm:$0xff]
      %v1212 = vld [vmem:[%s1210 + $0x8] sm:$0xff]
      %v1213 = vld [vmem:[%s1210 + $0x18] sm:$0xff]
      %v1214 = vld [vmem:[%s1210 + $0x20] sm:$0xff]
      %v1215 = vld [vmem:[%s1210 + $0x30] sm:$0xff]
      %v1216 = vld [vmem:[%s1210 + $0x38] sm:$0xff]
      %v1217 = vld [vmem:[%s1210 + $0x48] sm:$0xff]
      %v1218 = vld [vmem:[%s1210 + $0x50] sm:$0xff]
      %v1219 = vld [vmem:[%s1210 + $0x60] sm:$0xff]
      %v1220 = vld [vmem:[%s1210 + $0x68] sm:$0xff]
      %v1221 = vld [vmem:[%s1210 + $0x78] sm:$0xff]
      %v1222 = vld [vmem:[%s1210 + $0x80] sm:$0xff]
      %v1223 = vld [vmem:[%s1210 + $0x90] sm:$0xff]
      %v1224 = vld [vmem:[%s1210 + $0x98] sm:$0xff]
      %v1225 = vld [vmem:[%s1210 + $0xa8] sm:$0xff]
      %v1226 = vld [vmem:[%s1210 + $0xb0] sm:$0xff]
      %v1227 = vld [vmem:[%s1210 + $0xc0] sm:$0xff]
      %v1228 = vld [vmem:[%s1210 + $0xc8] sm:$0xff]
      %v1229 = vld [vmem:[%s1210 + $0xd8] sm:$0xff]
      %v1230 = vld [vmem:[%s1210 + $0xe0] sm:$0xff]
      %v1231 = vld [vmem:[%s1210 + $0xf0] sm:$0xff]
      %v1232 = vld [vmem:[%s1210 + $0xf8] sm:$0xff]
      %v1233 = vld [vmem:[%s1210 + $0x108] sm:$0xff]
      %v1234 = vld [vmem:[%s1210 + $0x110] sm:$0xff]
      %v1235 = vld [vmem:[%s1210 + $0x120] sm:$0xff]
      %v1236 = vld [vmem:[%s1210 + $0x128] sm:$0xff]
      %v1237 = vld [vmem:[%s1210 + $0x138] sm:$0xff]
      %v1238 = vld [vmem:[%s1210 + $0x140] sm:$0xff]
      %v1239 = vld [vmem:[%s1210 + $0x150] sm:$0xff]
      %v1240 = vld [vmem:[%s1210 + $0x158] sm:$0xff]
      %v1241 = vld [vmem:[%s1210 + $0x168] sm:$0xff]
      %v1242 = vld [vmem:[%s1210 + $0x170] sm:$0xff]
      %v1243 = vlaneseq
      %v1244 = vshrl.u32 %v1243, 7
      %v1245 = vsub.s32 6, %v1244
      %v1246 = vrot.slane %v601, %v1245
      %v1247 = vmul.f32 %v1211, %v1246
      %v1248 = vmul.f32 %v1212, %v1246
      %v1249 = vmul.f32 %v1213, %v1246
      %v1250 = vmul.f32 %v1214, %v1246
      %v1251 = vmul.f32 %v1215, %v1246
      %v1252 = vmul.f32 %v1216, %v1246
      %v1253 = vmul.f32 %v1217, %v1246
      %v1254 = vmul.f32 %v1218, %v1246
      %v1255 = vmul.f32 %v1219, %v1246
      %v1256 = vmul.f32 %v1220, %v1246
      %v1257 = vmul.f32 %v1221, %v1246
      %v1258 = vmul.f32 %v1222, %v1246
      %v1259 = vmul.f32 %v1223, %v1246
      %v1260 = vmul.f32 %v1224, %v1246
      %v1261 = vmul.f32 %v1225, %v1246
      %v1262 = vmul.f32 %v1226, %v1246
      %v1263 = vmul.f32 %v1227, %v1246
      %v1264 = vmul.f32 %v1228, %v1246
      %v1265 = vmul.f32 %v1229, %v1246
      %v1266 = vmul.f32 %v1230, %v1246
      %v1267 = vmul.f32 %v1231, %v1246
      %v1268 = vmul.f32 %v1232, %v1246
      %v1269 = vmul.f32 %v1233, %v1246
      %v1270 = vmul.f32 %v1234, %v1246
      %v1271 = vmul.f32 %v1235, %v1246
      %v1272 = vmul.f32 %v1236, %v1246
      %v1273 = vmul.f32 %v1237, %v1246
      %v1274 = vmul.f32 %v1238, %v1246
      %v1275 = vmul.f32 %v1239, %v1246
      %v1276 = vmul.f32 %v1240, %v1246
      %v1277 = vmul.f32 %v1241, %v1246
      %v1278 = vmul.f32 %v1242, %v1246
      %v1279 = vadd.f32 %v1176, %v1247
      %v1280 = vadd.f32 %v1177, %v1248
      %v1281 = vadd.f32 %v1178, %v1249
      %v1282 = vadd.f32 %v1179, %v1250
      %v1283 = vadd.f32 %v1180, %v1251
      %v1284 = vadd.f32 %v1181, %v1252
      %v1285 = vadd.f32 %v1182, %v1253
      %v1286 = vadd.f32 %v1183, %v1254
      %v1287 = vadd.f32 %v1184, %v1255
      %v1288 = vadd.f32 %v1185, %v1256
      %v1289 = vadd.f32 %v1186, %v1257
      %v1290 = vadd.f32 %v1187, %v1258
      %v1291 = vadd.f32 %v1188, %v1259
      %v1292 = vadd.f32 %v1189, %v1260
      %v1293 = vadd.f32 %v1190, %v1261
      %v1294 = vadd.f32 %v1191, %v1262
      %v1295 = vadd.f32 %v1192, %v1263
      %v1296 = vadd.f32 %v1193, %v1264
      %v1297 = vadd.f32 %v1194, %v1265
      %v1298 = vadd.f32 %v1195, %v1266
      %v1299 = vadd.f32 %v1196, %v1267
      %v1300 = vadd.f32 %v1197, %v1268
      %v1301 = vadd.f32 %v1198, %v1269
      %v1302 = vadd.f32 %v1199, %v1270
      %v1303 = vadd.f32 %v1200, %v1271
      %v1304 = vadd.f32 %v1201, %v1272
      %v1305 = vadd.f32 %v1202, %v1273
      %v1306 = vadd.f32 %v1203, %v1274
      %v1307 = vadd.f32 %v1204, %v1275
      %v1308 = vadd.f32 %v1205, %v1276
      %v1309 = vadd.f32 %v1206, %v1277
      %v1310 = vadd.f32 %v1207, %v1278
      %v1311 = vld [vmem:[%s1210 + $0x1] sm:$0xff]
      %v1312 = vld [vmem:[%s1210 + $0x9] sm:$0xff]
      %v1313 = vld [vmem:[%s1210 + $0x19] sm:$0xff]
      %v1314 = vld [vmem:[%s1210 + $0x21] sm:$0xff]
      %v1315 = vld [vmem:[%s1210 + $0x31] sm:$0xff]
      %v1316 = vld [vmem:[%s1210 + $0x39] sm:$0xff]
      %v1317 = vld [vmem:[%s1210 + $0x49] sm:$0xff]
      %v1318 = vld [vmem:[%s1210 + $0x51] sm:$0xff]
      %v1319 = vld [vmem:[%s1210 + $0x61] sm:$0xff]
      %v1320 = vld [vmem:[%s1210 + $0x69] sm:$0xff]
      %v1321 = vld [vmem:[%s1210 + $0x79] sm:$0xff]
      %v1322 = vld [vmem:[%s1210 + $0x81] sm:$0xff]
      %v1323 = vld [vmem:[%s1210 + $0x91] sm:$0xff]
      %v1324 = vld [vmem:[%s1210 + $0x99] sm:$0xff]
      %v1325 = vld [vmem:[%s1210 + $0xa9] sm:$0xff]
      %v1326 = vld [vmem:[%s1210 + $0xb1] sm:$0xff]
      %v1327 = vld [vmem:[%s1210 + $0xc1] sm:$0xff]
      %v1328 = vld [vmem:[%s1210 + $0xc9] sm:$0xff]
      %v1329 = vld [vmem:[%s1210 + $0xd9] sm:$0xff]
      %v1330 = vld [vmem:[%s1210 + $0xe1] sm:$0xff]
      %v1331 = vld [vmem:[%s1210 + $0xf1] sm:$0xff]
      %v1332 = vld [vmem:[%s1210 + $0xf9] sm:$0xff]
      %v1333 = vld [vmem:[%s1210 + $0x109] sm:$0xff]
      %v1334 = vld [vmem:[%s1210 + $0x111] sm:$0xff]
      %v1335 = vld [vmem:[%s1210 + $0x121] sm:$0xff]
      %v1336 = vld [vmem:[%s1210 + $0x129] sm:$0xff]
      %v1337 = vld [vmem:[%s1210 + $0x139] sm:$0xff]
      %v1338 = vld [vmem:[%s1210 + $0x141] sm:$0xff]
      %v1339 = vld [vmem:[%s1210 + $0x151] sm:$0xff]
      %v1340 = vld [vmem:[%s1210 + $0x159] sm:$0xff]
      %v1341 = vld [vmem:[%s1210 + $0x169] sm:$0xff]
      %v1342 = vld [vmem:[%s1210 + $0x171] sm:$0xff]
      %v1343 = vlaneseq
      %v1344 = vshrl.u32 %v1343, 7
      %v1345 = vsub.s32 7, %v1344
      %v1346 = vrot.slane %v601, %v1345
      %v1347 = vmul.f32 %v1311, %v1346
      %v1348 = vmul.f32 %v1312, %v1346
      %v1349 = vmul.f32 %v1313, %v1346
      %v1350 = vmul.f32 %v1314, %v1346
      %v1351 = vmul.f32 %v1315, %v1346
      %v1352 = vmul.f32 %v1316, %v1346
      %v1353 = vmul.f32 %v1317, %v1346
      %v1354 = vmul.f32 %v1318, %v1346
      %v1355 = vmul.f32 %v1319, %v1346
      %v1356 = vmul.f32 %v1320, %v1346
      %v1357 = vmul.f32 %v1321, %v1346
      %v1358 = vmul.f32 %v1322, %v1346
      %v1359 = vmul.f32 %v1323, %v1346
      %v1360 = vmul.f32 %v1324, %v1346
      %v1361 = vmul.f32 %v1325, %v1346
      %v1362 = vmul.f32 %v1326, %v1346
      %v1363 = vmul.f32 %v1327, %v1346
      %v1364 = vmul.f32 %v1328, %v1346
      %v1365 = vmul.f32 %v1329, %v1346
      %v1366 = vmul.f32 %v1330, %v1346
      %v1367 = vmul.f32 %v1331, %v1346
      %v1368 = vmul.f32 %v1332, %v1346
      %v1369 = vmul.f32 %v1333, %v1346
      %v1370 = vmul.f32 %v1334, %v1346
      %v1371 = vmul.f32 %v1335, %v1346
      %v1372 = vmul.f32 %v1336, %v1346
      %v1373 = vmul.f32 %v1337, %v1346
      %v1374 = vmul.f32 %v1338, %v1346
      %v1375 = vmul.f32 %v1339, %v1346
      %v1376 = vmul.f32 %v1340, %v1346
      %v1377 = vmul.f32 %v1341, %v1346
      %v1378 = vmul.f32 %v1342, %v1346
      %v1379 = vadd.f32 %v1279, %v1347
      %v1380 = vadd.f32 %v1280, %v1348
      %v1381 = vadd.f32 %v1281, %v1349
      %v1382 = vadd.f32 %v1282, %v1350
      %v1383 = vadd.f32 %v1283, %v1351
      %v1384 = vadd.f32 %v1284, %v1352
      %v1385 = vadd.f32 %v1285, %v1353
      %v1386 = vadd.f32 %v1286, %v1354
      %v1387 = vadd.f32 %v1287, %v1355
      %v1388 = vadd.f32 %v1288, %v1356
      %v1389 = vadd.f32 %v1289, %v1357
      %v1390 = vadd.f32 %v1290, %v1358
      %v1391 = vadd.f32 %v1291, %v1359
      %v1392 = vadd.f32 %v1292, %v1360
      %v1393 = vadd.f32 %v1293, %v1361
      %v1394 = vadd.f32 %v1294, %v1362
      %v1395 = vadd.f32 %v1295, %v1363
      %v1396 = vadd.f32 %v1296, %v1364
      %v1397 = vadd.f32 %v1297, %v1365
      %v1398 = vadd.f32 %v1298, %v1366
      %v1399 = vadd.f32 %v1299, %v1367
      %v1400 = vadd.f32 %v1300, %v1368
      %v1401 = vadd.f32 %v1301, %v1369
      %v1402 = vadd.f32 %v1302, %v1370
      %v1403 = vadd.f32 %v1303, %v1371
      %v1404 = vadd.f32 %v1304, %v1372
      %v1405 = vadd.f32 %v1305, %v1373
      %v1406 = vadd.f32 %v1306, %v1374
      %v1407 = vadd.f32 %v1307, %v1375
      %v1408 = vadd.f32 %v1308, %v1376
      %v1409 = vadd.f32 %v1309, %v1377
      %v1410 = vadd.f32 %v1310, %v1378
      %v1411 = vld [vmem:[%s1210 + $0x2] sm:$0xff]
      %v1412 = vld [vmem:[%s1210 + $0xa] sm:$0xff]
      %v1413 = vld [vmem:[%s1210 + $0x1a] sm:$0xff]
      %v1414 = vld [vmem:[%s1210 + $0x22] sm:$0xff]
      %v1415 = vld [vmem:[%s1210 + $0x32] sm:$0xff]
      %v1416 = vld [vmem:[%s1210 + $0x3a] sm:$0xff]
      %v1417 = vld [vmem:[%s1210 + $0x4a] sm:$0xff]
      %v1418 = vld [vmem:[%s1210 + $0x52] sm:$0xff]
      %v1419 = vld [vmem:[%s1210 + $0x62] sm:$0xff]
      %v1420 = vld [vmem:[%s1210 + $0x6a] sm:$0xff]
      %v1421 = vld [vmem:[%s1210 + $0x7a] sm:$0xff]
      %v1422 = vld [vmem:[%s1210 + $0x82] sm:$0xff]
      %v1423 = vld [vmem:[%s1210 + $0x92] sm:$0xff]
      %v1424 = vld [vmem:[%s1210 + $0x9a] sm:$0xff]
      %v1425 = vld [vmem:[%s1210 + $0xaa] sm:$0xff]
      %v1426 = vld [vmem:[%s1210 + $0xb2] sm:$0xff]
      %v1427 = vld [vmem:[%s1210 + $0xc2] sm:$0xff]
      %v1428 = vld [vmem:[%s1210 + $0xca] sm:$0xff]
      %v1429 = vld [vmem:[%s1210 + $0xda] sm:$0xff]
      %v1430 = vld [vmem:[%s1210 + $0xe2] sm:$0xff]
      %v1431 = vld [vmem:[%s1210 + $0xf2] sm:$0xff]
      %v1432 = vld [vmem:[%s1210 + $0xfa] sm:$0xff]
      %v1433 = vld [vmem:[%s1210 + $0x10a] sm:$0xff]
      %v1434 = vld [vmem:[%s1210 + $0x112] sm:$0xff]
      %v1435 = vld [vmem:[%s1210 + $0x122] sm:$0xff]
      %v1436 = vld [vmem:[%s1210 + $0x12a] sm:$0xff]
      %v1437 = vld [vmem:[%s1210 + $0x13a] sm:$0xff]
      %v1438 = vld [vmem:[%s1210 + $0x142] sm:$0xff]
      %v1439 = vld [vmem:[%s1210 + $0x152] sm:$0xff]
      %v1440 = vld [vmem:[%s1210 + $0x15a] sm:$0xff]
      %v1441 = vld [vmem:[%s1210 + $0x16a] sm:$0xff]
      %v1442 = vld [vmem:[%s1210 + $0x172] sm:$0xff]
      %v1443 = vlaneseq
      %v1444 = vshrl.u32 %v1443, 7
      %v1445 = vsub.s32 0, %v1444
      %v1446 = vrot.slane %v602, %v1445
      %v1447 = vmul.f32 %v1411, %v1446
      %v1448 = vmul.f32 %v1412, %v1446
      %v1449 = vmul.f32 %v1413, %v1446
      %v1450 = vmul.f32 %v1414, %v1446
      %v1451 = vmul.f32 %v1415, %v1446
      %v1452 = vmul.f32 %v1416, %v1446
      %v1453 = vmul.f32 %v1417, %v1446
      %v1454 = vmul.f32 %v1418, %v1446
      %v1455 = vmul.f32 %v1419, %v1446
      %v1456 = vmul.f32 %v1420, %v1446
      %v1457 = vmul.f32 %v1421, %v1446
      %v1458 = vmul.f32 %v1422, %v1446
      %v1459 = vmul.f32 %v1423, %v1446
      %v1460 = vmul.f32 %v1424, %v1446
      %v1461 = vmul.f32 %v1425, %v1446
      %v1462 = vmul.f32 %v1426, %v1446
      %v1463 = vmul.f32 %v1427, %v1446
      %v1464 = vmul.f32 %v1428, %v1446
      %v1465 = vmul.f32 %v1429, %v1446
      %v1466 = vmul.f32 %v1430, %v1446
      %v1467 = vmul.f32 %v1431, %v1446
      %v1468 = vmul.f32 %v1432, %v1446
      %v1469 = vmul.f32 %v1433, %v1446
      %v1470 = vmul.f32 %v1434, %v1446
      %v1471 = vmul.f32 %v1435, %v1446
      %v1472 = vmul.f32 %v1436, %v1446
      %v1473 = vmul.f32 %v1437, %v1446
      %v1474 = vmul.f32 %v1438, %v1446
      %v1475 = vmul.f32 %v1439, %v1446
      %v1476 = vmul.f32 %v1440, %v1446
      %v1477 = vmul.f32 %v1441, %v1446
      %v1478 = vmul.f32 %v1442, %v1446
      %v1479 = vadd.f32 %v1379, %v1447
      %v1480 = vadd.f32 %v1380, %v1448
      %v1481 = vadd.f32 %v1381, %v1449
      %v1482 = vadd.f32 %v1382, %v1450
      %v1483 = vadd.f32 %v1383, %v1451
      %v1484 = vadd.f32 %v1384, %v1452
      %v1485 = vadd.f32 %v1385, %v1453
      %v1486 = vadd.f32 %v1386, %v1454
      %v1487 = vadd.f32 %v1387, %v1455
      %v1488 = vadd.f32 %v1388, %v1456
      %v1489 = vadd.f32 %v1389, %v1457
      %v1490 = vadd.f32 %v1390, %v1458
      %v1491 = vadd.f32 %v1391, %v1459
      %v1492 = vadd.f32 %v1392, %v1460
      %v1493 = vadd.f32 %v1393, %v1461
      %v1494 = vadd.f32 %v1394, %v1462
      %v1495 = vadd.f32 %v1395, %v1463
      %v1496 = vadd.f32 %v1396, %v1464
      %v1497 = vadd.f32 %v1397, %v1465
      %v1498 = vadd.f32 %v1398, %v1466
      %v1499 = vadd.f32 %v1399, %v1467
      %v1500 = vadd.f32 %v1400, %v1468
      %v1501 = vadd.f32 %v1401, %v1469
      %v1502 = vadd.f32 %v1402, %v1470
      %v1503 = vadd.f32 %v1403, %v1471
      %v1504 = vadd.f32 %v1404, %v1472
      %v1505 = vadd.f32 %v1405, %v1473
      %v1506 = vadd.f32 %v1406, %v1474
      %v1507 = vadd.f32 %v1407, %v1475
      %v1508 = vadd.f32 %v1408, %v1476
      %v1509 = vadd.f32 %v1409, %v1477
      %v1510 = vadd.f32 %v1410, %v1478
      %v1511 = vstv %s322
      %v1512 = vmul.f32 %v1479, %v1511
      %v1513 = vmul.f32 %v1480, %v1511
      %v1514 = vmul.f32 %v1481, %v1511
      %v1515 = vmul.f32 %v1482, %v1511
      %v1516 = vmul.f32 %v1483, %v1511
      %v1517 = vmul.f32 %v1484, %v1511
      %v1518 = vmul.f32 %v1485, %v1511
      %v1519 = vmul.f32 %v1486, %v1511
      %v1520 = vmul.f32 %v1487, %v1511
      %v1521 = vmul.f32 %v1488, %v1511
      %v1522 = vmul.f32 %v1489, %v1511
      %v1523 = vmul.f32 %v1490, %v1511
      %v1524 = vmul.f32 %v1491, %v1511
      %v1525 = vmul.f32 %v1492, %v1511
      %v1526 = vmul.f32 %v1493, %v1511
      %v1527 = vmul.f32 %v1494, %v1511
      %v1528 = vmul.f32 %v1495, %v1511
      %v1529 = vmul.f32 %v1496, %v1511
      %v1530 = vmul.f32 %v1497, %v1511
      %v1531 = vmul.f32 %v1498, %v1511
      %v1532 = vmul.f32 %v1499, %v1511
      %v1533 = vmul.f32 %v1500, %v1511
      %v1534 = vmul.f32 %v1501, %v1511
      %v1535 = vmul.f32 %v1502, %v1511
      %v1536 = vmul.f32 %v1503, %v1511
      %v1537 = vmul.f32 %v1504, %v1511
      %v1538 = vmul.f32 %v1505, %v1511
      %v1539 = vmul.f32 %v1506, %v1511
      %v1540 = vmul.f32 %v1507, %v1511
      %v1541 = vmul.f32 %v1508, %v1511
      %v1542 = vmul.f32 %v1509, %v1511
      %v1543 = vmul.f32 %v1510, %v1511
      %v1544 = vld [vmem:[%s302] sm:$0x1]
      %v1546 = vlaneseq
      %v1547 = vshrl.u32 %v1546, 7
      %v1548 = vsub.s32 0, %v1547
      %v1549 = vrot.slane %v1544, %v1548
      %v1551 = vadd.f32 %v1512, %v1549
      %v1552 = vadd.f32 %v1513, %v1549
      %v1553 = vadd.f32 %v1514, %v1549
      %v1554 = vadd.f32 %v1515, %v1549
      %v1555 = vadd.f32 %v1516, %v1549
      %v1556 = vadd.f32 %v1517, %v1549
      %v1557 = vadd.f32 %v1518, %v1549
      %v1558 = vadd.f32 %v1519, %v1549
      %v1559 = vadd.f32 %v1520, %v1549
      %v1560 = vadd.f32 %v1521, %v1549
      %v1561 = vadd.f32 %v1522, %v1549
      %v1562 = vadd.f32 %v1523, %v1549
      %v1563 = vadd.f32 %v1524, %v1549
      %v1564 = vadd.f32 %v1525, %v1549
      %v1565 = vadd.f32 %v1526, %v1549
      %v1566 = vadd.f32 %v1527, %v1549
      %v1567 = vadd.f32 %v1528, %v1549
      %v1568 = vadd.f32 %v1529, %v1549
      %v1569 = vadd.f32 %v1530, %v1549
      %v1570 = vadd.f32 %v1531, %v1549
      %v1571 = vadd.f32 %v1532, %v1549
      %v1572 = vadd.f32 %v1533, %v1549
      %v1573 = vadd.f32 %v1534, %v1549
      %v1574 = vadd.f32 %v1535, %v1549
      %v1575 = vadd.f32 %v1536, %v1549
      %v1576 = vadd.f32 %v1537, %v1549
      %v1577 = vadd.f32 %v1538, %v1549
      %v1578 = vadd.f32 %v1539, %v1549
      %v1579 = vadd.f32 %v1540, %v1549
      %v1580 = vadd.f32 %v1541, %v1549
      %v1581 = vadd.f32 %v1542, %v1549
      %v1582 = vadd.f32 %v1543, %v1549
      %v1583 = vmax.f32 %v1551, 0.0
      %v1584 = vmax.f32 %v1552, 0.0
      %v1585 = vmax.f32 %v1553, 0.0
      %v1586 = vmax.f32 %v1554, 0.0
      %v1587 = vmax.f32 %v1555, 0.0
      %v1588 = vmax.f32 %v1556, 0.0
      %v1589 = vmax.f32 %v1557, 0.0
      %v1590 = vmax.f32 %v1558, 0.0
      %v1591 = vmax.f32 %v1559, 0.0
      %v1592 = vmax.f32 %v1560, 0.0
      %v1593 = vmax.f32 %v1561, 0.0
      %v1594 = vmax.f32 %v1562, 0.0
      %v1595 = vmax.f32 %v1563, 0.0
      %v1596 = vmax.f32 %v1564, 0.0
      %v1597 = vmax.f32 %v1565, 0.0
      %v1598 = vmax.f32 %v1566, 0.0
      %v1599 = vmax.f32 %v1567, 0.0
      %v1600 = vmax.f32 %v1568, 0.0
      %v1601 = vmax.f32 %v1569, 0.0
      %v1602 = vmax.f32 %v1570, 0.0
      %v1603 = vmax.f32 %v1571, 0.0
      %v1604 = vmax.f32 %v1572, 0.0
      %v1605 = vmax.f32 %v1573, 0.0
      %v1606 = vmax.f32 %v1574, 0.0
      %v1607 = vmax.f32 %v1575, 0.0
      %v1608 = vmax.f32 %v1576, 0.0
      %v1609 = vmax.f32 %v1577, 0.0
      %v1610 = vmax.f32 %v1578, 0.0
      %v1611 = vmax.f32 %v1579, 0.0
      %v1612 = vmax.f32 %v1580, 0.0
      %v1613 = vmax.f32 %v1581, 0.0
      %v1614 = vmax.f32 %v1582, 0.0
      %v1615 = vmin.f32 %v1583, 6.0
      %v1616 = vmin.f32 %v1584, 6.0
      %v1617 = vmin.f32 %v1585, 6.0
      %v1618 = vmin.f32 %v1586, 6.0
      %v1619 = vmin.f32 %v1587, 6.0
      %v1620 = vmin.f32 %v1588, 6.0
      %v1621 = vmin.f32 %v1589, 6.0
      %v1622 = vmin.f32 %v1590, 6.0
      %v1623 = vmin.f32 %v1591, 6.0
      %v1624 = vmin.f32 %v1592, 6.0
      %v1625 = vmin.f32 %v1593, 6.0
      %v1626 = vmin.f32 %v1594, 6.0
      %v1627 = vmin.f32 %v1595, 6.0
      %v1628 = vmin.f32 %v1596, 6.0
      %v1629 = vmin.f32 %v1597, 6.0
      %v1630 = vmin.f32 %v1598, 6.0
      %v1631 = vmin.f32 %v1599, 6.0
      %v1632 = vmin.f32 %v1600, 6.0
      %v1633 = vmin.f32 %v1601, 6.0
      %v1634 = vmin.f32 %v1602, 6.0
      %v1635 = vmin.f32 %v1603, 6.0
      %v1636 = vmin.f32 %v1604, 6.0
      %v1637 = vmin.f32 %v1605, 6.0
      %v1638 = vmin.f32 %v1606, 6.0
      %v1639 = vmin.f32 %v1607, 6.0
      %v1640 = vmin.f32 %v1608, 6.0
      %v1641 = vmin.f32 %v1609, 6.0
      %v1642 = vmin.f32 %v1610, 6.0
      %v1643 = vmin.f32 %v1611, 6.0
      %v1644 = vmin.f32 %v1612, 6.0
      %v1645 = vmin.f32 %v1613, 6.0
      %v1646 = vmin.f32 %v1614, 6.0
      %v1647 = vpack.c.bf16 %v1616, %v1615
      %v1648 = vpack.c.bf16 %v1618, %v1617
      %v1649 = vpack.c.bf16 %v1620, %v1619
      %v1650 = vpack.c.bf16 %v1622, %v1621
      %v1651 = vpack.c.bf16 %v1624, %v1623
      %v1652 = vpack.c.bf16 %v1626, %v1625
      %v1653 = vpack.c.bf16 %v1628, %v1627
      %v1654 = vpack.c.bf16 %v1630, %v1629
      %v1655 = vpack.c.bf16 %v1632, %v1631
      %v1656 = vpack.c.bf16 %v1634, %v1633
      %v1657 = vpack.c.bf16 %v1636, %v1635
      %v1658 = vpack.c.bf16 %v1638, %v1637
      %v1659 = vpack.c.bf16 %v1640, %v1639
      %v1660 = vpack.c.bf16 %v1642, %v1641
      %v1661 = vpack.c.bf16 %v1644, %v1643
      %v1662 = vpack.c.bf16 %v1646, %v1645
      %v1679 = vunpack.c.l.b16 %v1647
      %v1680 = vunpack.c.h.b16 %v1647
      %v1681 = vunpack.c.l.b16 %v1648
      %v1682 = vunpack.c.h.b16 %v1648
      %v1683 = vunpack.c.l.b16 %v1649
      %v1684 = vunpack.c.h.b16 %v1649
      %v1685 = vunpack.c.l.b16 %v1650
      %v1686 = vunpack.c.h.b16 %v1650
      %v1687 = vunpack.c.l.b16 %v1651
      %v1688 = vunpack.c.h.b16 %v1651
      %v1689 = vunpack.c.l.b16 %v1652
      %v1690 = vunpack.c.h.b16 %v1652
      %v1691 = vunpack.c.l.b16 %v1653
      %v1692 = vunpack.c.h.b16 %v1653
      %v1693 = vunpack.c.l.b16 %v1654
      %v1694 = vunpack.c.h.b16 %v1654
      %v1695 = vunpack.c.l.b16 %v1655
      %v1696 = vunpack.c.h.b16 %v1655
      %v1697 = vunpack.c.l.b16 %v1656
      %v1698 = vunpack.c.h.b16 %v1656
      %v1699 = vunpack.c.l.b16 %v1657
      %v1700 = vunpack.c.h.b16 %v1657
      %v1701 = vunpack.c.l.b16 %v1658
      %v1702 = vunpack.c.h.b16 %v1658
      %v1703 = vunpack.c.l.b16 %v1659
      %v1704 = vunpack.c.h.b16 %v1659
      %v1705 = vunpack.c.l.b16 %v1660
      %v1706 = vunpack.c.h.b16 %v1660
      %v1707 = vunpack.c.l.b16 %v1661
      %v1708 = vunpack.c.h.b16 %v1661
      %v1709 = vunpack.c.l.b16 %v1662
      %v1710 = vunpack.c.h.b16 %v1662
      %v1711 = vpack.c.b16 %v1679, %v1679
      %v1712 = vpack.c.b16 %v1680, %v1680
      %v1713 = vpack.c.b16 %v1681, %v1681
      %v1714 = vpack.c.b16 %v1682, %v1682
      %v1715 = vpack.c.b16 %v1683, %v1683
      %v1716 = vpack.c.b16 %v1684, %v1684
      %v1717 = vpack.c.b16 %v1685, %v1685
      %v1718 = vpack.c.b16 %v1686, %v1686
      %v1719 = vpack.c.b16 %v1687, %v1687
      %v1720 = vpack.c.b16 %v1688, %v1688
      %v1721 = vpack.c.b16 %v1689, %v1689
      %v1722 = vpack.c.b16 %v1690, %v1690
      %v1723 = vpack.c.b16 %v1691, %v1691
      %v1724 = vpack.c.b16 %v1692, %v1692
      %v1725 = vpack.c.b16 %v1693, %v1693
      %v1726 = vpack.c.b16 %v1694, %v1694
      %v1727 = vpack.c.b16 %v1695, %v1695
      %v1728 = vpack.c.b16 %v1696, %v1696
      %v1729 = vpack.c.b16 %v1697, %v1697
      %v1730 = vpack.c.b16 %v1698, %v1698
      %v1731 = vpack.c.b16 %v1699, %v1699
      %v1732 = vpack.c.b16 %v1700, %v1700
      %v1733 = vpack.c.b16 %v1701, %v1701
      %v1734 = vpack.c.b16 %v1702, %v1702
      %v1735 = vpack.c.b16 %v1703, %v1703
      %v1736 = vpack.c.b16 %v1704, %v1704
      %v1737 = vpack.c.b16 %v1705, %v1705
      %v1738 = vpack.c.b16 %v1706, %v1706
      %v1739 = vpack.c.b16 %v1707, %v1707
      %v1740 = vpack.c.b16 %v1708, %v1708
      %v1741 = vpack.c.b16 %v1709, %v1709
      %v1742 = vpack.c.b16 %v1710, %v1710
      %1775 = vst [vmem:[%s315] sm:$0xf] %v1711
      %1776 = vst [vmem:[%s315 + $0x4] sm:$0xf] %v1712
      %1777 = vst [vmem:[%s315 + $0x8] sm:$0xf] %v1713
      %1778 = vst [vmem:[%s315 + $0xc] sm:$0xf] %v1714
      %1779 = vst [vmem:[%s315 + $0x10] sm:$0xf] %v1715
      %1780 = vst [vmem:[%s315 + $0x14] sm:$0xf] %v1716
      %1781 = vst [vmem:[%s315 + $0x18] sm:$0xf] %v1717
      %1782 = vst [vmem:[%s315 + $0x1c] sm:$0xf] %v1718
      %1783 = vst [vmem:[%s315 + $0x20] sm:$0xf] %v1719
      %1784 = vst [vmem:[%s315 + $0x24] sm:$0xf] %v1720
      %1785 = vst [vmem:[%s315 + $0x28] sm:$0xf] %v1721
      %1786 = vst [vmem:[%s315 + $0x2c] sm:$0xf] %v1722
      %1787 = vst [vmem:[%s315 + $0x30] sm:$0xf] %v1723
      %1788 = vst [vmem:[%s315 + $0x34] sm:$0xf] %v1724
      %1789 = vst [vmem:[%s315 + $0x38] sm:$0xf] %v1725
      %1790 = vst [vmem:[%s315 + $0x3c] sm:$0xf] %v1726
      %1791 = vst [vmem:[%s315 + $0x40] sm:$0xf] %v1727
      %1792 = vst [vmem:[%s315 + $0x44] sm:$0xf] %v1728
      %1793 = vst [vmem:[%s315 + $0x48] sm:$0xf] %v1729
      %1794 = vst [vmem:[%s315 + $0x4c] sm:$0xf] %v1730
      %1795 = vst [vmem:[%s315 + $0x50] sm:$0xf] %v1731
      %1796 = vst [vmem:[%s315 + $0x54] sm:$0xf] %v1732
      %1797 = vst [vmem:[%s315 + $0x58] sm:$0xf] %v1733
      %1798 = vst [vmem:[%s315 + $0x5c] sm:$0xf] %v1734
      %1799 = vst [vmem:[%s315 + $0x60] sm:$0xf] %v1735
      %1800 = vst [vmem:[%s315 + $0x64] sm:$0xf] %v1736
      %1801 = vst [vmem:[%s315 + $0x68] sm:$0xf] %v1737
      %1802 = vst [vmem:[%s315 + $0x6c] sm:$0xf] %v1738
      %1803 = vst [vmem:[%s315 + $0x70] sm:$0xf] %v1739
      %1804 = vst [vmem:[%s315 + $0x74] sm:$0xf] %v1740
      %1805 = vst [vmem:[%s315 + $0x78] sm:$0xf] %v1741
      %1806 = vst [vmem:[%s315 + $0x7c] sm:$0xf] %v1742
      %v1807 = vld [vmem:[%s320] sm:$0x1]
      %v1808 = vmax.f32 %v1615, %v1619
      %v1809 = vmax.f32 %v1616, %v1620
      %v1810 = vmax.f32 %v1617, %v1621
      %v1811 = vmax.f32 %v1618, %v1622
      %v1812 = vmax.f32 %v1808, %v1623
      %v1813 = vmax.f32 %v1809, %v1624
      %v1814 = vmax.f32 %v1810, %v1625
      %v1815 = vmax.f32 %v1811, %v1626
      %v1816 = vmax.f32 %v1812, %v1627
      %v1817 = vmax.f32 %v1813, %v1628
      %v1818 = vmax.f32 %v1814, %v1629
      %v1819 = vmax.f32 %v1815, %v1630
      %v1820 = vmax.f32 %v1816, %v1631
      %v1821 = vmax.f32 %v1817, %v1632
      %v1822 = vmax.f32 %v1818, %v1633
      %v1823 = vmax.f32 %v1819, %v1634
      %v1824 = vmax.f32 %v1820, %v1635
      %v1825 = vmax.f32 %v1821, %v1636
      %v1826 = vmax.f32 %v1822, %v1637
      %v1827 = vmax.f32 %v1823, %v1638
      %v1828 = vmax.f32 %v1824, %v1639
      %v1829 = vmax.f32 %v1825, %v1640
      %v1830 = vmax.f32 %v1826, %v1641
      %v1831 = vmax.f32 %v1827, %v1642
      %v1832 = vmax.f32 %v1828, %v1643
      %v1833 = vmax.f32 %v1829, %v1644
      %v1834 = vmax.f32 %v1830, %v1645
      %v1835 = vmax.f32 %v1831, %v1646
      %v1836 = vmax.f32 %v1832, %v1833
      %v1837 = vmax.f32 %v1834, %v1835
      %v1838 = vmax.f32 %v1836, %v1837
      %1839 = vmax.xlane.f32.xlu0 %v1838
      %v1840 = vpop.xlane.xlu0 %1839
      %v1841 = vrot.slane %v1840, 4
      %v1842 = vmax.f32 %v1840, %v1841
      %v1843 = vrot.slane %v1842, 2
      %v1844 = vmax.f32 %v1842, %v1843
      %v1845 = vrot.slane %v1844, 1
      %v1846 = vmax.f32 %v1844, %v1845
      %s1847 = vtos %v1846
      %v1848 = vstv %s1847
      %v1849 = vmax.f32 %v1807, %v1848
      %1850 = vst [vmem:[%s320] sm:$0x1] %v1849
      %s1851 = smul.u32 16, %s25
      %p1852 = scmp.lt.s32.totalorder %s23, 1
      %s1853 = scalar_select %p1852, %s23, 1
      %p1854 = scmp.lt.s32.totalorder %s1851, 15
      %s1855 = scalar_select %p1854, %s1851, 15
      %p1856 = scmp.lt.s32.totalorder %s24, 0
      %s1857 = scalar_select %p1856, %s24, 0
      %s1858 = smul.addr %s1855, 2
      %s1859 = sadd.s32 %s1857, %s1858
      %s1860 = smul.addr %s1853, 32
      %s1861 = sadd.s32 %s1859, %s1860
      %s1862 = smul.addr %s1861, 4
      %s1863 = scalar_lea.vmem %s4, %s1862
      %s1864 = sadd.s32 %s23, %s24
      %p1865 = scmp.lt.s32.totalorder %s1864, 1
      %s1866 = scalar_select %p1865, %s1864, 1
      %s1867 = scalar_lea.vmem %s5, %s1866
      // Predicated region
      $region41: #{_unnamed_function_.6} parent=35 // pred_check
        %p1868 = pneg %p160
      $region42: #{_unnamed_function_.6} parent=35 // pred_check_branch
        %1870 = sbr.rel (%p1868) target = $region44
      $region43: #{_unnamed_function_.6} parent=35 // pred_region
        %s1871 = smul.u32 16, %s25
      $region44: #{_unnamed_function_.6} parent=35 // pred_fallthru
        _
      // Predicated region
      $region45: #{_unnamed_function_.6} parent=35 // pred_check
        %p1872 = pneg %p188
      $region46: #{_unnamed_function_.6} parent=35 // pred_check_branch
        %1874 = sbr.rel (%p1872) target = $region48
      $region47: #{_unnamed_function_.6} parent=35 // pred_region
        %s1875 = sadd.s32 %s23, %s24
      $region48: #{_unnamed_function_.6} parent=35 // pred_fallthru
        _
    $region36: #{_unnamed_function_.6} parent=5 // pred_fallthru
      _
    %p1876 = scmp.le.s32.totalorder 2, %s13
    // Predicated region
    $region49: #{_unnamed_function_.6} parent=5 // pred_check
      %p1877 = pneg %p1876
    $region50: #{_unnamed_function_.6} parent=5 // pred_check_branch
      %1879 = sbr.rel (%p1877) target = $region52
    $region51: #{_unnamed_function_.6} parent=5 // pred_region
      %s1880 = ssub.s32 %s13, 2
      // Predicated region
      $region53: #{_unnamed_function_.6} parent=51 // pred_check
        %p1881 = pneg %p166
      $region54: #{_unnamed_function_.6} parent=51 // pred_check_branch
        %1883 = sbr.rel (%p1881) target = $region56
      $region55: #{_unnamed_function_.6} parent=51 // pred_region
        %s1884 = smul.u32 16, %s28
        %p1885 = scmp.lt.s32.totalorder %s26, 1
        %s1886 = scalar_select %p1885, %s26, 1
        %p1887 = scmp.lt.s32.totalorder %s1884, 15
        %s1888 = scalar_select %p1887, %s1884, 15
        %p1889 = scmp.lt.s32.totalorder %s27, 0
        %s1890 = scalar_select %p1889, %s27, 0
        %s1891 = smul.addr %s1888, 2
        %s1892 = sadd.s32 %s1890, %s1891
        %s1893 = smul.addr %s1886, 32
        %s1894 = sadd.s32 %s1892, %s1893
        %s1895 = smul.addr %s1894, 4
        %s1896 = scalar_lea.vmem %s4, %s1895
      $region56: #{_unnamed_function_.6} parent=51 // pred_fallthru
        _
      // Predicated region
      $region57: #{_unnamed_function_.6} parent=51 // pred_check
        %p1897 = pneg %p194
      $region58: #{_unnamed_function_.6} parent=51 // pred_check_branch
        %1899 = sbr.rel (%p1897) target = $region60
      $region59: #{_unnamed_function_.6} parent=51 // pred_region
        %s1900 = sadd.s32 %s26, %s27
        %p1901 = scmp.lt.s32.totalorder %s1900, 1
        %s1902 = scalar_select %p1901, %s1900, 1
        %s1903 = scalar_lea.vmem %s5, %s1902
      $region60: #{_unnamed_function_.6} parent=51 // pred_fallthru
        _
    $region52: #{_unnamed_function_.6} parent=5 // pred_fallthru
      _
  $region6: #{_unnamed_function_.6} parent=0 // loop_footer
    %s17 = sadd.s32 1, %s13
  $region7: #{_unnamed_function_.6} parent=0 // loop_footer_branch
    %12 = sbr.rel target = $region3
  $region8: #{_unnamed_function_.6} parent=0 // loop_exit
    _

</llo_original>
